<compile_context>
chip_gen: v5e
topology: v5e:2x2
jax: 0.10.0
libtpu: 0.0.40
codegen_flags: <defaults>
</compile_context>

<pallas_src>
import math

import jax
import jax.numpy as jnp
from jax.experimental import pallas as pl
from jax.experimental.pallas import tpu as pltpu


def _round_up(x, m):
    return ((x + m - 1) // m) * m


# ---------------------------------------------------------------------------
# Fused LM kernel: token ids in, padded logits out.
# ---------------------------------------------------------------------------
def make_lm_kernel(B, T, cfg):
    K = cfg["key_dim"]
    Vd = cfg["value_dim"]
    VOCAB = cfg["vocab"]
    P = cfg["proj_dim"]          # 3K + Vd (fused q|k|g|v projection width)
    Vpad = cfg["vpad"]           # vocab padded to 128-lane multiple
    n_layers = cfg["num_layers"]
    offs = cfg["offsets"]        # static row offsets into the weight slab
    BT = B * T

    def recurrence(proj):
        # proj: (B*T, P), rows ordered (b*T + t), columns [q | k | g | v].
        q = proj[:, 0:K]
        kg = jax.nn.sigmoid(proj[:, K:3 * K])      # one contiguous EUP stream
        k = kg[:, 0:K]
        g = kg[:, K:2 * K]
        v = proj[:, 3 * K:3 * K + Vd]

        # Lane-dense layout: state is (K, B*Vd).  Broadcasts are built ONCE
        # per layer, outside the serial loop, via per-batch lane-broadcast +
        # lane-concat (only layout ops already proven to lower cleanly).
        def bk_to_lane_dense(x):                   # (B*T, K) -> (T, K, B*Vd)
            xb = x.reshape(B, T, K)
            parts = [jnp.broadcast_to(xb[b][:, :, None], (T, K, Vd))
                     for b in range(B)]
            return jnp.concatenate(parts, axis=-1)

        q3 = bk_to_lane_dense(q)                   # (T, K, B*Vd)
        g3 = bk_to_lane_dense(g)                   # (T, K, B*Vd)
        k3 = bk_to_lane_dense(k)                   # (T, K, B*Vd)
        vb = v.reshape(B, T, Vd)
        v3 = jnp.concatenate([vb[b] for b in range(B)], axis=-1)   # (T, B*Vd)
        kv3 = k3 * v3[:, None, :]                  # per-step outer products

        # Serial chain: only mul+add on a (K, B*Vd) state; T small -> unroll.
        state = jnp.zeros((K, B * Vd), jnp.float32)
        ys = []
        for i in range(T):
            state = state * g3[i] + kv3[i]                          # (K, B*Vd)
            ys.append(jnp.sum(q3[i] * state, axis=0, keepdims=True))  # (1, B*Vd)
        y = jnp.concatenate(ys, axis=0)                             # (T, B*Vd)
        # back to (B*T, Vd), rows (b*T + t)
        return jnp.concatenate(
            [y[:, b * Vd:(b + 1) * Vd] for b in range(B)], axis=0)

    def kernel(ids_ref, w_ref, out_ref):
        # ----- in-kernel embedding gather fused with the layer-0 projection --
        # one-hot (B*T, VOCAB) built from the ids, then a single MXU matmul
        # against (embedding @ Wproj0 + bproj0) precomputed at weight-prep time.
        ids = ids_ref[...]                                          # (B, T) i32
        viota = jax.lax.broadcasted_iota(jnp.int32, (B, T, VOCAB), 2)
        onehot = (viota == ids[:, :, None]).astype(jnp.float32).reshape(BT, VOCAB)
        emb_proj = w_ref[offs[0]:offs[0] + VOCAB, 0:P]              # (VOCAB, P)
        proj = jnp.dot(onehot, emb_proj, preferred_element_type=jnp.float32)
        y = recurrence(proj)                                        # (B*T, Vd)

        # ----- layers 1..n-1: previous out_proj folded into this projection --
        for l in range(1, n_layers):
            off = offs[l]
            wproj = w_ref[off:off + Vd, 0:P]                        # (Vd, P)
            bproj = w_ref[off + Vd:off + Vd + 1, 0:P]               # (1, P)
            proj = jnp.dot(y, wproj, preferred_element_type=jnp.float32) + bproj
            y = recurrence(proj)

        # ----- LM head (last out_proj folded in), 128-lane padded output -----
        off = offs[n_layers]
        head_w = w_ref[off:off + Vd, 0:Vpad]                        # (Vd, Vpad)
        head_b = w_ref[off + Vd:off + Vd + 1, 0:Vpad]               # (1, Vpad)
        logits = jnp.dot(y, head_w, preferred_element_type=jnp.float32) + head_b
        out_ref[...] = logits.reshape(B, T, Vpad)

    return kernel


# ---------------------------------------------------------------------------
# One-time weight preparation (runs ONCE at init, not per forward call):
# fuse projections, pre-compose out_proj into the following linear map,
# pad, and pack everything into a single f32 slab.
# ---------------------------------------------------------------------------
def prepare_weights(params):
    HIGH = jax.lax.Precision.HIGHEST   # keep the pre-composition ~exact in f32
    layers = params["layers"]
    n_layers = len(layers)
    K = layers[0]["wq"].shape[1]
    Vd = layers[0]["wv"].shape[1]
    VOCAB = params["head_w"].shape[1]
    P = 3 * K + Vd
    Vpad = _round_up(VOCAB, 128)
    Cmax = max(P, Vpad)

    def fused_proj(lp):
        w = jnp.concatenate([lp["wq"], lp["wk"], lp["wg"], lp["wv"]], axis=1)
        b = jnp.concatenate([lp["bq"], lp["bk"], lp["bg"], lp["bv"]], axis=1)
        return w, b

    def pad_seg(mat):
        r, c = mat.shape
        return jnp.pad(mat, ((0, _round_up(r, 8) - r), (0, Cmax - c)))

    segs, offs, cur = [], [], 0

    # Layer-0 projection folded into the embedding: the in-kernel gather IS
    # the projection (proj0 = onehot @ emb_proj).
    w0, b0 = fused_proj(layers[0])
    emb_proj = jnp.dot(params["embedding"], w0, precision=HIGH) + b0  # (VOCAB,P)
    offs.append(cur)
    segs.append(pad_seg(emb_proj))
    cur += segs[-1].shape[0]

    # Layers 1..n-1: fold previous out_proj (wo, bo) into this layer's fused
    # projection (exact in f32, only re-association).
    for l in range(1, n_layers):
        wl, bl = fused_proj(layers[l])
        prev = layers[l - 1]
        wf = jnp.dot(prev["wo"], wl, precision=HIGH)                 # (Vd, P)
        bf = jnp.dot(prev["bo"], wl, precision=HIGH) + bl            # (1, P)
        offs.append(cur)
        segs.append(pad_seg(jnp.concatenate([wf, bf], axis=0)))
        cur += segs[-1].shape[0]

    # LM head with the last out_proj folded in; pad vocab to a 128-lane slab.
    # (Padding columns are exact zeros and are sliced off by the wrapper.)
    last = layers[-1]
    hw = jnp.dot(last["wo"], params["head_w"], precision=HIGH)       # (Vd, VOCAB)
    hb = jnp.dot(last["bo"], params["head_w"], precision=HIGH) + params["head_b"]
    offs.append(cur)
    segs.append(pad_seg(jnp.concatenate([hw, hb], axis=0)))
    cur += segs[-1].shape[0]

    wslab = jnp.concatenate(segs, axis=0)                            # (R, Cmax)
    cfg = dict(vocab=VOCAB, key_dim=K, value_dim=Vd, proj_dim=P,
               vpad=Vpad, num_layers=n_layers, offsets=tuple(offs))
    return wslab, cfg


def build_lm_forward(cfg):
    VOCAB = cfg["vocab"]
    Vpad = cfg["vpad"]

    @jax.jit
    def lm_forward(input_ids, wslab):
        B, T = input_ids.shape
        kernel = make_lm_kernel(B, T, cfg)
        padded = pl.pallas_call(
            kernel,
            out_shape=jax.ShapeDtypeStruct((B, T, Vpad), jnp.float32),
        )(input_ids, wslab)
        # Consumers that can handle the padded slab (e.g. a masked softmax)
        # should take `padded` directly; slice only to match module semantics.
        return padded[:, :, :VOCAB]

    return lm_forward


# ---------------------------------------------------------------------------
# Pure-JAX reference (mirrors the PyTorch module exactly, unfused weights)
# ---------------------------------------------------------------------------
def rnn_layer_ref(h, p):
    q = h @ p["wq"] + p["bq"][0]
    k = jax.nn.sigmoid(h @ p["wk"] + p["bk"][0])
    g = jax.nn.sigmoid(h @ p["wg"] + p["bg"][0])
    v = h @ p["wv"] + p["bv"][0]
    B, T, _ = h.shape
    K = q.shape[-1]
    Vd = v.shape[-1]
    state = jnp.zeros((B, K, Vd), jnp.float32)
    outs = []
    for i in range(T):
        state = state * g[:, i, :, None] + k[:, i, :, None] * v[:, i, None, :]
        y = jnp.einsum("bk,bkv->bv", q[:, i], state)
        outs.append(y @ p["wo"] + p["bo"][0])
    return jnp.stack(outs, axis=1), state


def lm_forward_ref(input_ids, params):
    hidden = jnp.take(params["embedding"], input_ids, axis=0)
    for layer_p in params["layers"]:
        hidden, _ = rnn_layer_ref(hidden, layer_p)
    return hidden @ params["head_w"] + params["head_b"][0]


# ---------------------------------------------------------------------------
# Deterministic parameter init (PyTorch-Linear-style uniform bounds)
# ---------------------------------------------------------------------------
def init_linear(key, fan_in, fan_out):
    kw, kb = jax.random.split(key)
    bound = 1.0 / math.sqrt(fan_in)
    w = jax.random.uniform(kw, (fan_in, fan_out), jnp.float32, -bound, bound)
    b = jax.random.uniform(kb, (1, fan_out), jnp.float32, -bound, bound)
    return w, b


def init_rnn_layer(key, in_dim, key_dim, value_dim, out_dim):
    ks = jax.random.split(key, 5)
    wq, bq = init_linear(ks[0], in_dim, key_dim)
    wk, bk = init_linear(ks[1], in_dim, key_dim)
    wv, bv = init_linear(ks[2], in_dim, value_dim)
    wg, bg = init_linear(ks[3], in_dim, key_dim)
    wo, bo = init_linear(ks[4], value_dim, out_dim)
    return dict(wq=wq, bq=bq, wk=wk, bk=bk, wv=wv, bv=bv,
                wg=wg, bg=bg, wo=wo, bo=bo)


def init_lm(key, vocab, hidden, key_dim, value_dim, out_dim, num_layers):
    keys = jax.random.split(key, num_layers + 2)
    emb = jax.random.normal(keys[0], (vocab, hidden), jnp.float32)
    layers = [init_rnn_layer(keys[1], hidden, key_dim, value_dim, out_dim)]
    for i in range(num_layers - 1):
        layers.append(
            init_rnn_layer(keys[2 + i], out_dim, key_dim, value_dim, out_dim))
    head_w, head_b = init_linear(keys[-1], out_dim, vocab)
    return dict(embedding=emb, layers=layers, head_w=head_w, head_b=head_b)


if __name__ == "__main__":
    VOCAB, HIDDEN, KEYD, VALD, OUTD, NLAYERS = 64, 32, 32, 32, 32, 2
    B, T = 2, 8

    root = jax.random.PRNGKey(0)
    k_params, k_ids = jax.random.split(root)
    params = init_lm(k_params, VOCAB, HIDDEN, KEYD, VALD, OUTD, NLAYERS)
    input_ids = jax.random.randint(k_ids, (B, T), 0, VOCAB, dtype=jnp.int32)

    # One-time weight prep (all per-call wrapper HLOs hoisted here).
    wslab, cfg = prepare_weights(params)
    lm_forward = build_lm_forward(cfg)

    logits = lm_forward(input_ids, wslab)
    logits = jax.block_until_ready(logits)

    logits_ref = lm_forward_ref(input_ids, params)
    assert logits.shape == (B, T, VOCAB)
    assert jnp.allclose(logits, logits_ref, atol=1e-4, rtol=1e-4), (
        "Pallas output mismatch vs JAX reference")

    print("KERNEL_OK")
</pallas_src>

<mosaic_0001>
module attributes {stable_mosaic.version = 11 : i64} {
  func.func @kernel(%arg0: memref<2x8xi32, #tpu.memory_space<vmem>>, %arg1: memref<144x128xf32, #tpu.memory_space<vmem>>, %arg2: memref<2x8x128xf32, #tpu.memory_space<vmem>>) attributes {dimension_semantics = [], scalar_prefetch = 0 : i64, scratch_operands = 0 : i64, tpu.core_type = #tpu.core_type<tc>} {
    %c0 = arith.constant 0 : index
    %c0_0 = arith.constant 0 : index
    %0 = vector.load %arg0[%c0, %c0_0] : memref<2x8xi32, #tpu.memory_space<vmem>>, vector<2x8xi32>
    %1 = tpu.iota {dimensions = array<i32: 2>} : vector<2x8x64xi32>
    %2 = vector.shape_cast %0 : vector<2x8xi32> to vector<2x8x1xi32>
    %3 = vector.broadcast %2 : vector<2x8x1xi32> to vector<2x8x64xi32>
    %4 = arith.cmpi eq, %1, %3 : vector<2x8x64xi32>
    %5 = arith.extui %4 : vector<2x8x64xi1> to vector<2x8x64xi32>
    %6 = arith.sitofp %5 : vector<2x8x64xi32> to vector<2x8x64xf32>
    %7 = vector.shape_cast %6 : vector<2x8x64xf32> to vector<16x64xf32>
    %c0_1 = arith.constant 0 : index
    %c0_2 = arith.constant 0 : index
    %8 = vector.load %arg1[%c0_1, %c0_2] : memref<144x128xf32, #tpu.memory_space<vmem>>, vector<64x128xf32>
    %cst = arith.constant dense<0.000000e+00> : vector<16x128xf32>
    %9 = tpu.matmul %7, %8, %cst {dimension_numbers = #tpu.dot_dimension_numbers<[1], [0], [0], [1], [0, 0, 1, 1], [], []>} : vector<16x64xf32>, vector<64x128xf32>, vector<16x128xf32> -> vector<16x128xf32>
    %10 = vector.extract_strided_slice %9 {offsets = [0, 0], sizes = [16, 32], strides = [1, 1]} : vector<16x128xf32> to vector<16x32xf32>
    %11 = vector.extract_strided_slice %9 {offsets = [0, 32], sizes = [16, 64], strides = [1, 1]} : vector<16x128xf32> to vector<16x64xf32>
    %12 = arith.negf %11 : vector<16x64xf32>
    %13 = math.exp %12 : vector<16x64xf32>
    %cst_3 = arith.constant 1.000000e+00 : f32
    %14 = vector.broadcast %cst_3 : f32 to vector<16x64xf32>
    %15 = arith.addf %14, %13 : vector<16x64xf32>
    %16 = arith.divf %14, %15 : vector<16x64xf32>
    %17 = vector.extract_strided_slice %16 {offsets = [0, 0], sizes = [16, 32], strides = [1, 1]} : vector<16x64xf32> to vector<16x32xf32>
    %18 = vector.extract_strided_slice %16 {offsets = [0, 32], sizes = [16, 32], strides = [1, 1]} : vector<16x64xf32> to vector<16x32xf32>
    %19 = vector.extract_strided_slice %9 {offsets = [0, 96], sizes = [16, 32], strides = [1, 1]} : vector<16x128xf32> to vector<16x32xf32>
    %20 = vector.shape_cast %10 : vector<16x32xf32> to vector<2x8x32xf32>
    %21 = vector.extract_strided_slice %20 {offsets = [0, 0, 0], sizes = [1, 8, 32], strides = [1, 1, 1]} : vector<2x8x32xf32> to vector<1x8x32xf32>
    %22 = vector.shape_cast %21 : vector<1x8x32xf32> to vector<8x32xf32>
    %23 = vector.shape_cast %22 : vector<8x32xf32> to vector<8x32x1xf32>
    %24 = vector.shape_cast %23 : vector<8x32x1xf32> to vector<8x32x1xf32>
    %25 = vector.broadcast %24 : vector<8x32x1xf32> to vector<8x32x32xf32>
    %26 = vector.extract_strided_slice %20 {offsets = [1, 0, 0], sizes = [1, 8, 32], strides = [1, 1, 1]} : vector<2x8x32xf32> to vector<1x8x32xf32>
    %27 = vector.shape_cast %26 : vector<1x8x32xf32> to vector<8x32xf32>
    %28 = vector.shape_cast %27 : vector<8x32xf32> to vector<8x32x1xf32>
    %29 = vector.shape_cast %28 : vector<8x32x1xf32> to vector<8x32x1xf32>
    %30 = vector.broadcast %29 : vector<8x32x1xf32> to vector<8x32x32xf32>
    %31 = tpu.concatenate %25, %30 in 2 : vector<8x32x32xf32>, vector<8x32x32xf32> -> vector<8x32x64xf32>
    %32 = vector.shape_cast %18 : vector<16x32xf32> to vector<2x8x32xf32>
    %33 = vector.extract_strided_slice %32 {offsets = [0, 0, 0], sizes = [1, 8, 32], strides = [1, 1, 1]} : vector<2x8x32xf32> to vector<1x8x32xf32>
    %34 = vector.shape_cast %33 : vector<1x8x32xf32> to vector<8x32xf32>
    %35 = vector.shape_cast %34 : vector<8x32xf32> to vector<8x32x1xf32>
    %36 = vector.shape_cast %35 : vector<8x32x1xf32> to vector<8x32x1xf32>
    %37 = vector.broadcast %36 : vector<8x32x1xf32> to vector<8x32x32xf32>
    %38 = vector.extract_strided_slice %32 {offsets = [1, 0, 0], sizes = [1, 8, 32], strides = [1, 1, 1]} : vector<2x8x32xf32> to vector<1x8x32xf32>
    %39 = vector.shape_cast %38 : vector<1x8x32xf32> to vector<8x32xf32>
    %40 = vector.shape_cast %39 : vector<8x32xf32> to vector<8x32x1xf32>
    %41 = vector.shape_cast %40 : vector<8x32x1xf32> to vector<8x32x1xf32>
    %42 = vector.broadcast %41 : vector<8x32x1xf32> to vector<8x32x32xf32>
    %43 = tpu.concatenate %37, %42 in 2 : vector<8x32x32xf32>, vector<8x32x32xf32> -> vector<8x32x64xf32>
    %44 = vector.shape_cast %17 : vector<16x32xf32> to vector<2x8x32xf32>
    %45 = vector.extract_strided_slice %44 {offsets = [0, 0, 0], sizes = [1, 8, 32], strides = [1, 1, 1]} : vector<2x8x32xf32> to vector<1x8x32xf32>
    %46 = vector.shape_cast %45 : vector<1x8x32xf32> to vector<8x32xf32>
    %47 = vector.shape_cast %46 : vector<8x32xf32> to vector<8x32x1xf32>
    %48 = vector.shape_cast %47 : vector<8x32x1xf32> to vector<8x32x1xf32>
    %49 = vector.broadcast %48 : vector<8x32x1xf32> to vector<8x32x32xf32>
    %50 = vector.extract_strided_slice %44 {offsets = [1, 0, 0], sizes = [1, 8, 32], strides = [1, 1, 1]} : vector<2x8x32xf32> to vector<1x8x32xf32>
    %51 = vector.shape_cast %50 : vector<1x8x32xf32> to vector<8x32xf32>
    %52 = vector.shape_cast %51 : vector<8x32xf32> to vector<8x32x1xf32>
    %53 = vector.shape_cast %52 : vector<8x32x1xf32> to vector<8x32x1xf32>
    %54 = vector.broadcast %53 : vector<8x32x1xf32> to vector<8x32x32xf32>
    %55 = tpu.concatenate %49, %54 in 2 : vector<8x32x32xf32>, vector<8x32x32xf32> -> vector<8x32x64xf32>
    %56 = vector.shape_cast %19 : vector<16x32xf32> to vector<2x8x32xf32>
    %57 = vector.extract_strided_slice %56 {offsets = [0, 0, 0], sizes = [1, 8, 32], strides = [1, 1, 1]} : vector<2x8x32xf32> to vector<1x8x32xf32>
    %58 = vector.shape_cast %57 : vector<1x8x32xf32> to vector<8x32xf32>
    %59 = vector.extract_strided_slice %56 {offsets = [1, 0, 0], sizes = [1, 8, 32], strides = [1, 1, 1]} : vector<2x8x32xf32> to vector<1x8x32xf32>
    %60 = vector.shape_cast %59 : vector<1x8x32xf32> to vector<8x32xf32>
    %61 = tpu.concatenate %58, %60 in 1 : vector<8x32xf32>, vector<8x32xf32> -> vector<8x64xf32>
    %62 = vector.shape_cast %61 : vector<8x64xf32> to vector<8x1x64xf32>
    %63 = vector.broadcast %62 : vector<8x1x64xf32> to vector<8x32x64xf32>
    %64 = arith.mulf %55, %63 : vector<8x32x64xf32>
    %cst_4 = arith.constant 0.000000e+00 : f32
    %65 = vector.broadcast %cst_4 : f32 to vector<32x64xf32>
    %66 = vector.extract_strided_slice %43 {offsets = [0, 0, 0], sizes = [1, 32, 64], strides = [1, 1, 1]} : vector<8x32x64xf32> to vector<1x32x64xf32>
    %67 = vector.shape_cast %66 : vector<1x32x64xf32> to vector<32x64xf32>
    %68 = arith.mulf %65, %67 : vector<32x64xf32>
    %69 = vector.extract_strided_slice %64 {offsets = [0, 0, 0], sizes = [1, 32, 64], strides = [1, 1, 1]} : vector<8x32x64xf32> to vector<1x32x64xf32>
    %70 = vector.shape_cast %69 : vector<1x32x64xf32> to vector<32x64xf32>
    %71 = arith.addf %68, %70 : vector<32x64xf32>
    %72 = vector.extract_strided_slice %31 {offsets = [0, 0, 0], sizes = [1, 32, 64], strides = [1, 1, 1]} : vector<8x32x64xf32> to vector<1x32x64xf32>
    %73 = vector.shape_cast %72 : vector<1x32x64xf32> to vector<32x64xf32>
    %74 = arith.mulf %73, %71 : vector<32x64xf32>
    %cst_5 = arith.constant dense<0.000000e+00> : vector<64xf32>
    %75 = vector.multi_reduction <add>, %74, %cst_5 [0] : vector<32x64xf32> to vector<64xf32>
    %76 = vector.shape_cast %75 : vector<64xf32> to vector<1x64xf32>
    %77 = vector.extract_strided_slice %43 {offsets = [1, 0, 0], sizes = [1, 32, 64], strides = [1, 1, 1]} : vector<8x32x64xf32> to vector<1x32x64xf32>
    %78 = vector.shape_cast %77 : vector<1x32x64xf32> to vector<32x64xf32>
    %79 = arith.mulf %71, %78 : vector<32x64xf32>
    %80 = vector.extract_strided_slice %64 {offsets = [1, 0, 0], sizes = [1, 32, 64], strides = [1, 1, 1]} : vector<8x32x64xf32> to vector<1x32x64xf32>
    %81 = vector.shape_cast %80 : vector<1x32x64xf32> to vector<32x64xf32>
    %82 = arith.addf %79, %81 : vector<32x64xf32>
    %83 = vector.extract_strided_slice %31 {offsets = [1, 0, 0], sizes = [1, 32, 64], strides = [1, 1, 1]} : vector<8x32x64xf32> to vector<1x32x64xf32>
    %84 = vector.shape_cast %83 : vector<1x32x64xf32> to vector<32x64xf32>
    %85 = arith.mulf %84, %82 : vector<32x64xf32>
    %cst_6 = arith.constant dense<0.000000e+00> : vector<64xf32>
    %86 = vector.multi_reduction <add>, %85, %cst_6 [0] : vector<32x64xf32> to vector<64xf32>
    %87 = vector.shape_cast %86 : vector<64xf32> to vector<1x64xf32>
    %88 = vector.extract_strided_slice %43 {offsets = [2, 0, 0], sizes = [1, 32, 64], strides = [1, 1, 1]} : vector<8x32x64xf32> to vector<1x32x64xf32>
    %89 = vector.shape_cast %88 : vector<1x32x64xf32> to vector<32x64xf32>
    %90 = arith.mulf %82, %89 : vector<32x64xf32>
    %91 = vector.extract_strided_slice %64 {offsets = [2, 0, 0], sizes = [1, 32, 64], strides = [1, 1, 1]} : vector<8x32x64xf32> to vector<1x32x64xf32>
    %92 = vector.shape_cast %91 : vector<1x32x64xf32> to vector<32x64xf32>
    %93 = arith.addf %90, %92 : vector<32x64xf32>
    %94 = vector.extract_strided_slice %31 {offsets = [2, 0, 0], sizes = [1, 32, 64], strides = [1, 1, 1]} : vector<8x32x64xf32> to vector<1x32x64xf32>
    %95 = vector.shape_cast %94 : vector<1x32x64xf32> to vector<32x64xf32>
    %96 = arith.mulf %95, %93 : vector<32x64xf32>
    %cst_7 = arith.constant dense<0.000000e+00> : vector<64xf32>
    %97 = vector.multi_reduction <add>, %96, %cst_7 [0] : vector<32x64xf32> to vector<64xf32>
    %98 = vector.shape_cast %97 : vector<64xf32> to vector<1x64xf32>
    %99 = vector.extract_strided_slice %43 {offsets = [3, 0, 0], sizes = [1, 32, 64], strides = [1, 1, 1]} : vector<8x32x64xf32> to vector<1x32x64xf32>
    %100 = vector.shape_cast %99 : vector<1x32x64xf32> to vector<32x64xf32>
    %101 = arith.mulf %93, %100 : vector<32x64xf32>
    %102 = vector.extract_strided_slice %64 {offsets = [3, 0, 0], sizes = [1, 32, 64], strides = [1, 1, 1]} : vector<8x32x64xf32> to vector<1x32x64xf32>
    %103 = vector.shape_cast %102 : vector<1x32x64xf32> to vector<32x64xf32>
    %104 = arith.addf %101, %103 : vector<32x64xf32>
    %105 = vector.extract_strided_slice %31 {offsets = [3, 0, 0], sizes = [1, 32, 64], strides = [1, 1, 1]} : vector<8x32x64xf32> to vector<1x32x64xf32>
    %106 = vector.shape_cast %105 : vector<1x32x64xf32> to vector<32x64xf32>
    %107 = arith.mulf %106, %104 : vector<32x64xf32>
    %cst_8 = arith.constant dense<0.000000e+00> : vector<64xf32>
    %108 = vector.multi_reduction <add>, %107, %cst_8 [0] : vector<32x64xf32> to vector<64xf32>
    %109 = vector.shape_cast %108 : vector<64xf32> to vector<1x64xf32>
    %110 = vector.extract_strided_slice %43 {offsets = [4, 0, 0], sizes = [1, 32, 64], strides = [1, 1, 1]} : vector<8x32x64xf32> to vector<1x32x64xf32>
    %111 = vector.shape_cast %110 : vector<1x32x64xf32> to vector<32x64xf32>
    %112 = arith.mulf %104, %111 : vector<32x64xf32>
    %113 = vector.extract_strided_slice %64 {offsets = [4, 0, 0], sizes = [1, 32, 64], strides = [1, 1, 1]} : vector<8x32x64xf32> to vector<1x32x64xf32>
    %114 = vector.shape_cast %113 : vector<1x32x64xf32> to vector<32x64xf32>
    %115 = arith.addf %112, %114 : vector<32x64xf32>
    %116 = vector.extract_strided_slice %31 {offsets = [4, 0, 0], sizes = [1, 32, 64], strides = [1, 1, 1]} : vector<8x32x64xf32> to vector<1x32x64xf32>
    %117 = vector.shape_cast %116 : vector<1x32x64xf32> to vector<32x64xf32>
    %118 = arith.mulf %117, %115 : vector<32x64xf32>
    %cst_9 = arith.constant dense<0.000000e+00> : vector<64xf32>
    %119 = vector.multi_reduction <add>, %118, %cst_9 [0] : vector<32x64xf32> to vector<64xf32>
    %120 = vector.shape_cast %119 : vector<64xf32> to vector<1x64xf32>
    %121 = vector.extract_strided_slice %43 {offsets = [5, 0, 0], sizes = [1, 32, 64], strides = [1, 1, 1]} : vector<8x32x64xf32> to vector<1x32x64xf32>
    %122 = vector.shape_cast %121 : vector<1x32x64xf32> to vector<32x64xf32>
    %123 = arith.mulf %115, %122 : vector<32x64xf32>
    %124 = vector.extract_strided_slice %64 {offsets = [5, 0, 0], sizes = [1, 32, 64], strides = [1, 1, 1]} : vector<8x32x64xf32> to vector<1x32x64xf32>
    %125 = vector.shape_cast %124 : vector<1x32x64xf32> to vector<32x64xf32>
    %126 = arith.addf %123, %125 : vector<32x64xf32>
    %127 = vector.extract_strided_slice %31 {offsets = [5, 0, 0], sizes = [1, 32, 64], strides = [1, 1, 1]} : vector<8x32x64xf32> to vector<1x32x64xf32>
    %128 = vector.shape_cast %127 : vector<1x32x64xf32> to vector<32x64xf32>
    %129 = arith.mulf %128, %126 : vector<32x64xf32>
    %cst_10 = arith.constant dense<0.000000e+00> : vector<64xf32>
    %130 = vector.multi_reduction <add>, %129, %cst_10 [0] : vector<32x64xf32> to vector<64xf32>
    %131 = vector.shape_cast %130 : vector<64xf32> to vector<1x64xf32>
    %132 = vector.extract_strided_slice %43 {offsets = [6, 0, 0], sizes = [1, 32, 64], strides = [1, 1, 1]} : vector<8x32x64xf32> to vector<1x32x64xf32>
    %133 = vector.shape_cast %132 : vector<1x32x64xf32> to vector<32x64xf32>
    %134 = arith.mulf %126, %133 : vector<32x64xf32>
    %135 = vector.extract_strided_slice %64 {offsets = [6, 0, 0], sizes = [1, 32, 64], strides = [1, 1, 1]} : vector<8x32x64xf32> to vector<1x32x64xf32>
    %136 = vector.shape_cast %135 : vector<1x32x64xf32> to vector<32x64xf32>
    %137 = arith.addf %134, %136 : vector<32x64xf32>
    %138 = vector.extract_strided_slice %31 {offsets = [6, 0, 0], sizes = [1, 32, 64], strides = [1, 1, 1]} : vector<8x32x64xf32> to vector<1x32x64xf32>
    %139 = vector.shape_cast %138 : vector<1x32x64xf32> to vector<32x64xf32>
    %140 = arith.mulf %139, %137 : vector<32x64xf32>
    %cst_11 = arith.constant dense<0.000000e+00> : vector<64xf32>
    %141 = vector.multi_reduction <add>, %140, %cst_11 [0] : vector<32x64xf32> to vector<64xf32>
    %142 = vector.shape_cast %141 : vector<64xf32> to vector<1x64xf32>
    %143 = vector.extract_strided_slice %43 {offsets = [7, 0, 0], sizes = [1, 32, 64], strides = [1, 1, 1]} : vector<8x32x64xf32> to vector<1x32x64xf32>
    %144 = vector.shape_cast %143 : vector<1x32x64xf32> to vector<32x64xf32>
    %145 = arith.mulf %137, %144 : vector<32x64xf32>
    %146 = vector.extract_strided_slice %64 {offsets = [7, 0, 0], sizes = [1, 32, 64], strides = [1, 1, 1]} : vector<8x32x64xf32> to vector<1x32x64xf32>
    %147 = vector.shape_cast %146 : vector<1x32x64xf32> to vector<32x64xf32>
    %148 = arith.addf %145, %147 : vector<32x64xf32>
    %149 = vector.extract_strided_slice %31 {offsets = [7, 0, 0], sizes = [1, 32, 64], strides = [1, 1, 1]} : vector<8x32x64xf32> to vector<1x32x64xf32>
    %150 = vector.shape_cast %149 : vector<1x32x64xf32> to vector<32x64xf32>
    %151 = arith.mulf %150, %148 : vector<32x64xf32>
    %cst_12 = arith.constant dense<0.000000e+00> : vector<64xf32>
    %152 = vector.multi_reduction <add>, %151, %cst_12 [0] : vector<32x64xf32> to vector<64xf32>
    %153 = vector.shape_cast %152 : vector<64xf32> to vector<1x64xf32>
    %154 = tpu.concatenate %76, %87, %98, %109, %120, %131, %142, %153 in 0 : vector<1x64xf32>, vector<1x64xf32>, vector<1x64xf32>, vector<1x64xf32>, vector<1x64xf32>, vector<1x64xf32>, vector<1x64xf32>, vector<1x64xf32> -> vector<8x64xf32>
    %155 = vector.extract_strided_slice %154 {offsets = [0, 0], sizes = [8, 32], strides = [1, 1]} : vector<8x64xf32> to vector<8x32xf32>
    %156 = vector.extract_strided_slice %154 {offsets = [0, 32], sizes = [8, 32], strides = [1, 1]} : vector<8x64xf32> to vector<8x32xf32>
    %157 = tpu.concatenate %155, %156 in 0 : vector<8x32xf32>, vector<8x32xf32> -> vector<16x32xf32>
    %c64 = arith.constant 64 : index
    %c0_13 = arith.constant 0 : index
    %158 = vector.load %arg1[%c64, %c0_13] : memref<144x128xf32, #tpu.memory_space<vmem>>, vector<32x128xf32>
    %c96 = arith.constant 96 : index
    %c0_14 = arith.constant 0 : index
    %159 = vector.load %arg1[%c96, %c0_14] : memref<144x128xf32, #tpu.memory_space<vmem>>, vector<1x128xf32>
    %cst_15 = arith.constant dense<0.000000e+00> : vector<16x128xf32>
    %160 = tpu.matmul %157, %158, %cst_15 {dimension_numbers = #tpu.dot_dimension_numbers<[1], [0], [0], [1], [0, 0, 1, 1], [], []>} : vector<16x32xf32>, vector<32x128xf32>, vector<16x128xf32> -> vector<16x128xf32>
    %161 = vector.broadcast %159 : vector<1x128xf32> to vector<16x128xf32>
    %162 = arith.addf %160, %161 : vector<16x128xf32>
    %163 = vector.extract_strided_slice %162 {offsets = [0, 0], sizes = [16, 32], strides = [1, 1]} : vector<16x128xf32> to vector<16x32xf32>
    %164 = vector.extract_strided_slice %162 {offsets = [0, 32], sizes = [16, 64], strides = [1, 1]} : vector<16x128xf32> to vector<16x64xf32>
    %165 = arith.negf %164 : vector<16x64xf32>
    %166 = math.exp %165 : vector<16x64xf32>
    %cst_16 = arith.constant 1.000000e+00 : f32
    %167 = vector.broadcast %cst_16 : f32 to vector<16x64xf32>
    %168 = arith.addf %167, %166 : vector<16x64xf32>
    %169 = arith.divf %167, %168 : vector<16x64xf32>
    %170 = vector.extract_strided_slice %169 {offsets = [0, 0], sizes = [16, 32], strides = [1, 1]} : vector<16x64xf32> to vector<16x32xf32>
    %171 = vector.extract_strided_slice %169 {offsets = [0, 32], sizes = [16, 32], strides = [1, 1]} : vector<16x64xf32> to vector<16x32xf32>
    %172 = vector.extract_strided_slice %162 {offsets = [0, 96], sizes = [16, 32], strides = [1, 1]} : vector<16x128xf32> to vector<16x32xf32>
    %173 = vector.shape_cast %163 : vector<16x32xf32> to vector<2x8x32xf32>
    %174 = vector.extract_strided_slice %173 {offsets = [0, 0, 0], sizes = [1, 8, 32], strides = [1, 1, 1]} : vector<2x8x32xf32> to vector<1x8x32xf32>
    %175 = vector.shape_cast %174 : vector<1x8x32xf32> to vector<8x32xf32>
    %176 = vector.shape_cast %175 : vector<8x32xf32> to vector<8x32x1xf32>
    %177 = vector.shape_cast %176 : vector<8x32x1xf32> to vector<8x32x1xf32>
    %178 = vector.broadcast %177 : vector<8x32x1xf32> to vector<8x32x32xf32>
    %179 = vector.extract_strided_slice %173 {offsets = [1, 0, 0], sizes = [1, 8, 32], strides = [1, 1, 1]} : vector<2x8x32xf32> to vector<1x8x32xf32>
    %180 = vector.shape_cast %179 : vector<1x8x32xf32> to vector<8x32xf32>
    %181 = vector.shape_cast %180 : vector<8x32xf32> to vector<8x32x1xf32>
    %182 = vector.shape_cast %181 : vector<8x32x1xf32> to vector<8x32x1xf32>
    %183 = vector.broadcast %182 : vector<8x32x1xf32> to vector<8x32x32xf32>
    %184 = tpu.concatenate %178, %183 in 2 : vector<8x32x32xf32>, vector<8x32x32xf32> -> vector<8x32x64xf32>
    %185 = vector.shape_cast %171 : vector<16x32xf32> to vector<2x8x32xf32>
    %186 = vector.extract_strided_slice %185 {offsets = [0, 0, 0], sizes = [1, 8, 32], strides = [1, 1, 1]} : vector<2x8x32xf32> to vector<1x8x32xf32>
    %187 = vector.shape_cast %186 : vector<1x8x32xf32> to vector<8x32xf32>
    %188 = vector.shape_cast %187 : vector<8x32xf32> to vector<8x32x1xf32>
    %189 = vector.shape_cast %188 : vector<8x32x1xf32> to vector<8x32x1xf32>
    %190 = vector.broadcast %189 : vector<8x32x1xf32> to vector<8x32x32xf32>
    %191 = vector.extract_strided_slice %185 {offsets = [1, 0, 0], sizes = [1, 8, 32], strides = [1, 1, 1]} : vector<2x8x32xf32> to vector<1x8x32xf32>
    %192 = vector.shape_cast %191 : vector<1x8x32xf32> to vector<8x32xf32>
    %193 = vector.shape_cast %192 : vector<8x32xf32> to vector<8x32x1xf32>
    %194 = vector.shape_cast %193 : vector<8x32x1xf32> to vector<8x32x1xf32>
    %195 = vector.broadcast %194 : vector<8x32x1xf32> to vector<8x32x32xf32>
    %196 = tpu.concatenate %190, %195 in 2 : vector<8x32x32xf32>, vector<8x32x32xf32> -> vector<8x32x64xf32>
    %197 = vector.shape_cast %170 : vector<16x32xf32> to vector<2x8x32xf32>
    %198 = vector.extract_strided_slice %197 {offsets = [0, 0, 0], sizes = [1, 8, 32], strides = [1, 1, 1]} : vector<2x8x32xf32> to vector<1x8x32xf32>
    %199 = vector.shape_cast %198 : vector<1x8x32xf32> to vector<8x32xf32>
    %200 = vector.shape_cast %199 : vector<8x32xf32> to vector<8x32x1xf32>
    %201 = vector.shape_cast %200 : vector<8x32x1xf32> to vector<8x32x1xf32>
    %202 = vector.broadcast %201 : vector<8x32x1xf32> to vector<8x32x32xf32>
    %203 = vector.extract_strided_slice %197 {offsets = [1, 0, 0], sizes = [1, 8, 32], strides = [1, 1, 1]} : vector<2x8x32xf32> to vector<1x8x32xf32>
    %204 = vector.shape_cast %203 : vector<1x8x32xf32> to vector<8x32xf32>
    %205 = vector.shape_cast %204 : vector<8x32xf32> to vector<8x32x1xf32>
    %206 = vector.shape_cast %205 : vector<8x32x1xf32> to vector<8x32x1xf32>
    %207 = vector.broadcast %206 : vector<8x32x1xf32> to vector<8x32x32xf32>
    %208 = tpu.concatenate %202, %207 in 2 : vector<8x32x32xf32>, vector<8x32x32xf32> -> vector<8x32x64xf32>
    %209 = vector.shape_cast %172 : vector<16x32xf32> to vector<2x8x32xf32>
    %210 = vector.extract_strided_slice %209 {offsets = [0, 0, 0], sizes = [1, 8, 32], strides = [1, 1, 1]} : vector<2x8x32xf32> to vector<1x8x32xf32>
    %211 = vector.shape_cast %210 : vector<1x8x32xf32> to vector<8x32xf32>
    %212 = vector.extract_strided_slice %209 {offsets = [1, 0, 0], sizes = [1, 8, 32], strides = [1, 1, 1]} : vector<2x8x32xf32> to vector<1x8x32xf32>
    %213 = vector.shape_cast %212 : vector<1x8x32xf32> to vector<8x32xf32>
    %214 = tpu.concatenate %211, %213 in 1 : vector<8x32xf32>, vector<8x32xf32> -> vector<8x64xf32>
    %215 = vector.shape_cast %214 : vector<8x64xf32> to vector<8x1x64xf32>
    %216 = vector.broadcast %215 : vector<8x1x64xf32> to vector<8x32x64xf32>
    %217 = arith.mulf %208, %216 : vector<8x32x64xf32>
    %cst_17 = arith.constant 0.000000e+00 : f32
    %218 = vector.broadcast %cst_17 : f32 to vector<32x64xf32>
    %219 = vector.extract_strided_slice %196 {offsets = [0, 0, 0], sizes = [1, 32, 64], strides = [1, 1, 1]} : vector<8x32x64xf32> to vector<1x32x64xf32>
    %220 = vector.shape_cast %219 : vector<1x32x64xf32> to vector<32x64xf32>
    %221 = arith.mulf %218, %220 : vector<32x64xf32>
    %222 = vector.extract_strided_slice %217 {offsets = [0, 0, 0], sizes = [1, 32, 64], strides = [1, 1, 1]} : vector<8x32x64xf32> to vector<1x32x64xf32>
    %223 = vector.shape_cast %222 : vector<1x32x64xf32> to vector<32x64xf32>
    %224 = arith.addf %221, %223 : vector<32x64xf32>
    %225 = vector.extract_strided_slice %184 {offsets = [0, 0, 0], sizes = [1, 32, 64], strides = [1, 1, 1]} : vector<8x32x64xf32> to vector<1x32x64xf32>
    %226 = vector.shape_cast %225 : vector<1x32x64xf32> to vector<32x64xf32>
    %227 = arith.mulf %226, %224 : vector<32x64xf32>
    %cst_18 = arith.constant dense<0.000000e+00> : vector<64xf32>
    %228 = vector.multi_reduction <add>, %227, %cst_18 [0] : vector<32x64xf32> to vector<64xf32>
    %229 = vector.shape_cast %228 : vector<64xf32> to vector<1x64xf32>
    %230 = vector.extract_strided_slice %196 {offsets = [1, 0, 0], sizes = [1, 32, 64], strides = [1, 1, 1]} : vector<8x32x64xf32> to vector<1x32x64xf32>
    %231 = vector.shape_cast %230 : vector<1x32x64xf32> to vector<32x64xf32>
    %232 = arith.mulf %224, %231 : vector<32x64xf32>
    %233 = vector.extract_strided_slice %217 {offsets = [1, 0, 0], sizes = [1, 32, 64], strides = [1, 1, 1]} : vector<8x32x64xf32> to vector<1x32x64xf32>
    %234 = vector.shape_cast %233 : vector<1x32x64xf32> to vector<32x64xf32>
    %235 = arith.addf %232, %234 : vector<32x64xf32>
    %236 = vector.extract_strided_slice %184 {offsets = [1, 0, 0], sizes = [1, 32, 64], strides = [1, 1, 1]} : vector<8x32x64xf32> to vector<1x32x64xf32>
    %237 = vector.shape_cast %236 : vector<1x32x64xf32> to vector<32x64xf32>
    %238 = arith.mulf %237, %235 : vector<32x64xf32>
    %cst_19 = arith.constant dense<0.000000e+00> : vector<64xf32>
    %239 = vector.multi_reduction <add>, %238, %cst_19 [0] : vector<32x64xf32> to vector<64xf32>
    %240 = vector.shape_cast %239 : vector<64xf32> to vector<1x64xf32>
    %241 = vector.extract_strided_slice %196 {offsets = [2, 0, 0], sizes = [1, 32, 64], strides = [1, 1, 1]} : vector<8x32x64xf32> to vector<1x32x64xf32>
    %242 = vector.shape_cast %241 : vector<1x32x64xf32> to vector<32x64xf32>
    %243 = arith.mulf %235, %242 : vector<32x64xf32>
    %244 = vector.extract_strided_slice %217 {offsets = [2, 0, 0], sizes = [1, 32, 64], strides = [1, 1, 1]} : vector<8x32x64xf32> to vector<1x32x64xf32>
    %245 = vector.shape_cast %244 : vector<1x32x64xf32> to vector<32x64xf32>
    %246 = arith.addf %243, %245 : vector<32x64xf32>
    %247 = vector.extract_strided_slice %184 {offsets = [2, 0, 0], sizes = [1, 32, 64], strides = [1, 1, 1]} : vector<8x32x64xf32> to vector<1x32x64xf32>
    %248 = vector.shape_cast %247 : vector<1x32x64xf32> to vector<32x64xf32>
    %249 = arith.mulf %248, %246 : vector<32x64xf32>
    %cst_20 = arith.constant dense<0.000000e+00> : vector<64xf32>
    %250 = vector.multi_reduction <add>, %249, %cst_20 [0] : vector<32x64xf32> to vector<64xf32>
    %251 = vector.shape_cast %250 : vector<64xf32> to vector<1x64xf32>
    %252 = vector.extract_strided_slice %196 {offsets = [3, 0, 0], sizes = [1, 32, 64], strides = [1, 1, 1]} : vector<8x32x64xf32> to vector<1x32x64xf32>
    %253 = vector.shape_cast %252 : vector<1x32x64xf32> to vector<32x64xf32>
    %254 = arith.mulf %246, %253 : vector<32x64xf32>
    %255 = vector.extract_strided_slice %217 {offsets = [3, 0, 0], sizes = [1, 32, 64], strides = [1, 1, 1]} : vector<8x32x64xf32> to vector<1x32x64xf32>
    %256 = vector.shape_cast %255 : vector<1x32x64xf32> to vector<32x64xf32>
    %257 = arith.addf %254, %256 : vector<32x64xf32>
    %258 = vector.extract_strided_slice %184 {offsets = [3, 0, 0], sizes = [1, 32, 64], strides = [1, 1, 1]} : vector<8x32x64xf32> to vector<1x32x64xf32>
    %259 = vector.shape_cast %258 : vector<1x32x64xf32> to vector<32x64xf32>
    %260 = arith.mulf %259, %257 : vector<32x64xf32>
    %cst_21 = arith.constant dense<0.000000e+00> : vector<64xf32>
    %261 = vector.multi_reduction <add>, %260, %cst_21 [0] : vector<32x64xf32> to vector<64xf32>
    %262 = vector.shape_cast %261 : vector<64xf32> to vector<1x64xf32>
    %263 = vector.extract_strided_slice %196 {offsets = [4, 0, 0], sizes = [1, 32, 64], strides = [1, 1, 1]} : vector<8x32x64xf32> to vector<1x32x64xf32>
    %264 = vector.shape_cast %263 : vector<1x32x64xf32> to vector<32x64xf32>
    %265 = arith.mulf %257, %264 : vector<32x64xf32>
    %266 = vector.extract_strided_slice %217 {offsets = [4, 0, 0], sizes = [1, 32, 64], strides = [1, 1, 1]} : vector<8x32x64xf32> to vector<1x32x64xf32>
    %267 = vector.shape_cast %266 : vector<1x32x64xf32> to vector<32x64xf32>
    %268 = arith.addf %265, %267 : vector<32x64xf32>
    %269 = vector.extract_strided_slice %184 {offsets = [4, 0, 0], sizes = [1, 32, 64], strides = [1, 1, 1]} : vector<8x32x64xf32> to vector<1x32x64xf32>
    %270 = vector.shape_cast %269 : vector<1x32x64xf32> to vector<32x64xf32>
    %271 = arith.mulf %270, %268 : vector<32x64xf32>
    %cst_22 = arith.constant dense<0.000000e+00> : vector<64xf32>
    %272 = vector.multi_reduction <add>, %271, %cst_22 [0] : vector<32x64xf32> to vector<64xf32>
    %273 = vector.shape_cast %272 : vector<64xf32> to vector<1x64xf32>
    %274 = vector.extract_strided_slice %196 {offsets = [5, 0, 0], sizes = [1, 32, 64], strides = [1, 1, 1]} : vector<8x32x64xf32> to vector<1x32x64xf32>
    %275 = vector.shape_cast %274 : vector<1x32x64xf32> to vector<32x64xf32>
    %276 = arith.mulf %268, %275 : vector<32x64xf32>
    %277 = vector.extract_strided_slice %217 {offsets = [5, 0, 0], sizes = [1, 32, 64], strides = [1, 1, 1]} : vector<8x32x64xf32> to vector<1x32x64xf32>
    %278 = vector.shape_cast %277 : vector<1x32x64xf32> to vector<32x64xf32>
    %279 = arith.addf %276, %278 : vector<32x64xf32>
    %280 = vector.extract_strided_slice %184 {offsets = [5, 0, 0], sizes = [1, 32, 64], strides = [1, 1, 1]} : vector<8x32x64xf32> to vector<1x32x64xf32>
    %281 = vector.shape_cast %280 : vector<1x32x64xf32> to vector<32x64xf32>
    %282 = arith.mulf %281, %279 : vector<32x64xf32>
    %cst_23 = arith.constant dense<0.000000e+00> : vector<64xf32>
    %283 = vector.multi_reduction <add>, %282, %cst_23 [0] : vector<32x64xf32> to vector<64xf32>
    %284 = vector.shape_cast %283 : vector<64xf32> to vector<1x64xf32>
    %285 = vector.extract_strided_slice %196 {offsets = [6, 0, 0], sizes = [1, 32, 64], strides = [1, 1, 1]} : vector<8x32x64xf32> to vector<1x32x64xf32>
    %286 = vector.shape_cast %285 : vector<1x32x64xf32> to vector<32x64xf32>
    %287 = arith.mulf %279, %286 : vector<32x64xf32>
    %288 = vector.extract_strided_slice %217 {offsets = [6, 0, 0], sizes = [1, 32, 64], strides = [1, 1, 1]} : vector<8x32x64xf32> to vector<1x32x64xf32>
    %289 = vector.shape_cast %288 : vector<1x32x64xf32> to vector<32x64xf32>
    %290 = arith.addf %287, %289 : vector<32x64xf32>
    %291 = vector.extract_strided_slice %184 {offsets = [6, 0, 0], sizes = [1, 32, 64], strides = [1, 1, 1]} : vector<8x32x64xf32> to vector<1x32x64xf32>
    %292 = vector.shape_cast %291 : vector<1x32x64xf32> to vector<32x64xf32>
    %293 = arith.mulf %292, %290 : vector<32x64xf32>
    %cst_24 = arith.constant dense<0.000000e+00> : vector<64xf32>
    %294 = vector.multi_reduction <add>, %293, %cst_24 [0] : vector<32x64xf32> to vector<64xf32>
    %295 = vector.shape_cast %294 : vector<64xf32> to vector<1x64xf32>
    %296 = vector.extract_strided_slice %196 {offsets = [7, 0, 0], sizes = [1, 32, 64], strides = [1, 1, 1]} : vector<8x32x64xf32> to vector<1x32x64xf32>
    %297 = vector.shape_cast %296 : vector<1x32x64xf32> to vector<32x64xf32>
    %298 = arith.mulf %290, %297 : vector<32x64xf32>
    %299 = vector.extract_strided_slice %217 {offsets = [7, 0, 0], sizes = [1, 32, 64], strides = [1, 1, 1]} : vector<8x32x64xf32> to vector<1x32x64xf32>
    %300 = vector.shape_cast %299 : vector<1x32x64xf32> to vector<32x64xf32>
    %301 = arith.addf %298, %300 : vector<32x64xf32>
    %302 = vector.extract_strided_slice %184 {offsets = [7, 0, 0], sizes = [1, 32, 64], strides = [1, 1, 1]} : vector<8x32x64xf32> to vector<1x32x64xf32>
    %303 = vector.shape_cast %302 : vector<1x32x64xf32> to vector<32x64xf32>
    %304 = arith.mulf %303, %301 : vector<32x64xf32>
    %cst_25 = arith.constant dense<0.000000e+00> : vector<64xf32>
    %305 = vector.multi_reduction <add>, %304, %cst_25 [0] : vector<32x64xf32> to vector<64xf32>
    %306 = vector.shape_cast %305 : vector<64xf32> to vector<1x64xf32>
    %307 = tpu.concatenate %229, %240, %251, %262, %273, %284, %295, %306 in 0 : vector<1x64xf32>, vector<1x64xf32>, vector<1x64xf32>, vector<1x64xf32>, vector<1x64xf32>, vector<1x64xf32>, vector<1x64xf32>, vector<1x64xf32> -> vector<8x64xf32>
    %308 = vector.extract_strided_slice %307 {offsets = [0, 0], sizes = [8, 32], strides = [1, 1]} : vector<8x64xf32> to vector<8x32xf32>
    %309 = vector.extract_strided_slice %307 {offsets = [0, 32], sizes = [8, 32], strides = [1, 1]} : vector<8x64xf32> to vector<8x32xf32>
    %310 = tpu.concatenate %308, %309 in 0 : vector<8x32xf32>, vector<8x32xf32> -> vector<16x32xf32>
    %c104 = arith.constant 104 : index
    %c0_26 = arith.constant 0 : index
    %311 = vector.load %arg1[%c104, %c0_26] : memref<144x128xf32, #tpu.memory_space<vmem>>, vector<32x128xf32>
    %c136 = arith.constant 136 : index
    %c0_27 = arith.constant 0 : index
    %312 = vector.load %arg1[%c136, %c0_27] : memref<144x128xf32, #tpu.memory_space<vmem>>, vector<1x128xf32>
    %cst_28 = arith.constant dense<0.000000e+00> : vector<16x128xf32>
    %313 = tpu.matmul %310, %311, %cst_28 {dimension_numbers = #tpu.dot_dimension_numbers<[1], [0], [0], [1], [0, 0, 1, 1], [], []>} : vector<16x32xf32>, vector<32x128xf32>, vector<16x128xf32> -> vector<16x128xf32>
    %314 = vector.broadcast %312 : vector<1x128xf32> to vector<16x128xf32>
    %315 = arith.addf %313, %314 : vector<16x128xf32>
    %316 = vector.shape_cast %315 : vector<16x128xf32> to vector<2x8x128xf32>
    %c0_29 = arith.constant 0 : index
    %c0_30 = arith.constant 0 : index
    %c0_31 = arith.constant 0 : index
    %317 = vector.load %arg2[%c0_29, %c0_30, %c0_31] : memref<2x8x128xf32, #tpu.memory_space<vmem>>, vector<2x8x128xf32>
    tpu.vector_store %arg2[%c0_29, %c0_30, %c0_31], %316 {strides = array<i32>} : memref<2x8x128xf32, #tpu.memory_space<vmem>>, vector<2x8x128xf32>,
    return
  }
}

</mosaic_0001>

<llo_original>
// kernel: lm_forward.1
$region0: #{lm_forward.1}
  #allocation0 [shape = 'u32[]', space=smem, size = 0x4, offset = 0x4, fixed_abs, tag = 'smem constant byte address 0x4 - core index']
  #allocation1 [shape = 'u32[72,128]{1,0:T(1,128)}', space=vmem, size = 0x9000, scoped, tag = 'internal scratch']
  %s0 = inlined_call_operand.hbm [shape: s32[2,8], index: 0, kind: input, shape index: {}]
  %s1 = inlined_call_operand.hbm [shape: f32[144,128], index: 1, kind: input, shape index: {}]
  %s2 = inlined_call_operand.hbm [shape: f32[2,8,128], index: 2, kind: output, shape index: {}]
  %s3 = sld [smem:[#allocation0]]
  $region26: #{lm_forward.1} parent=0
    _
  %s5 = ssub.s32 1, %s3
  %s6 = scalar_select 0, %s5, %s3
  $region1: #{lm_forward.1} parent=0
    #allocation2 [shape = 'u8[1024]{0}', space=vmem, size = 0x400, scoped, tag = 'input window, operand 0, single buffered']
    #allocation3 [shape = 's32[1]{0}', space=sflag, size = 0x4, scoped, tag = 'scoped memory for lm_forward.1']
    #allocation4 [shape = 's32[1]{0}', space=sflag, size = 0x4, scoped, tag = 'scoped memory for lm_forward.1']
    #allocation5 [shape = 'u8[73728]{0}', space=vmem, size = 0x12000, scoped, tag = 'input window, operand 1, single buffered']
    #allocation6 [shape = 's32[1]{0}', space=sflag, size = 0x4, scoped, tag = 'scoped memory for lm_forward.1']
    #allocation7 [shape = 'u8[8192]{0}', space=vmem, size = 0x2000, scoped, tag = 'output window, operand 0, single buffered']
    %7 = vsyncpa [#allocation3], 0
    %8 = vsyncpa [#allocation6], 0
    %9 = vsyncpa [#allocation4], 0
    // Predicated region
    $region2: #{lm_forward.1} parent=1 // pred_check
      _
    $region3: #{lm_forward.1} parent=1 // pred_check_branch
      %11 = sbr.rel (0) target = $region5
    $region4: #{lm_forward.1} parent=1 // pred_region
      %13 = vsyncadd [#allocation3], 0
      %s15 = sshll.u32 %s0, 4
      %s16 = int_to_ptr.hbm [resolvable:$true] %s15
      %s17 = sshll.u32 [#allocation2], 4
      %s18 = int_to_ptr.vmem [resolvable:$true] %s17
      %20 = dma.hbm_to_vmem [thread:$0]  %s16, 32, %s18, [#allocation3]
    $region5: #{lm_forward.1} parent=1 // pred_fallthru
      _
    // Predicated region
    $region6: #{lm_forward.1} parent=1 // pred_check
      _
    $region7: #{lm_forward.1} parent=1 // pred_check_branch
      %22 = sbr.rel (0) target = $region9
    $region8: #{lm_forward.1} parent=1 // pred_region
      %24 = vsyncadd [#allocation6], 0
      %s25 = sshll.u32 %s1, 4
      %s26 = int_to_ptr.hbm [resolvable:$true] %s25
      %s27 = sshll.u32 [#allocation5], 4
      %s28 = int_to_ptr.vmem [resolvable:$true] %s27
      %33 = dma.hbm_to_vmem [thread:$0]  %s26, 2304, %s28, [#allocation6], 128, 128, 8
    $region9: #{lm_forward.1} parent=1 // pred_fallthru
      _
    // Predicated region
    $region10: #{lm_forward.1} parent=1 // pred_check
      _
    $region11: #{lm_forward.1} parent=1 // pred_check_branch
      %35 = sbr.rel (0) target = $region13
    $region12: #{lm_forward.1} parent=1 // pred_region
      %37 = dma.done [#allocation3], 32
    $region13: #{lm_forward.1} parent=1 // pred_fallthru
      _
    // Predicated region
    $region14: #{lm_forward.1} parent=1 // pred_check
      _
    $region15: #{lm_forward.1} parent=1 // pred_check_branch
      %39 = sbr.rel (0) target = $region17
    $region16: #{lm_forward.1} parent=1 // pred_region
      %41 = dma.done [#allocation6], 2304
    $region17: #{lm_forward.1} parent=1 // pred_fallthru
      _
    %v42 = vld [vmem:[#allocation2] sm:$0x3]
    %v43 = vlaneseq
    %v44 = vand.u32 %v43, 127
    %v45 = vperm.slane %v42, 0
    %v46 = vlaneseq
    %v47 = vshrl.u32 %v46, 7
    %49 = vset.pattern.permute.xlu0 %v47
    %50 = vperm.xlu0 %49, %v45
    %v51 = vpop.permute.xlu0 %50
    %v52 = vperm.slane %v42, 1
    %v53 = vlaneseq
    %v54 = vshrl.u32 %v53, 7
    %56 = vset.pattern.permute.xlu0 %v54
    %57 = vperm.xlu0 %56, %v52
    %v58 = vpop.permute.xlu0 %57
    %vm59 = vcmp.eq.s32.totalorder %v44, %v51
    %vm60 = vcmp.eq.s32.totalorder %v44, %v58
    %v61 = vsel %vm59, 1, 0
    %v62 = vsel %vm60, 1, 0
    %v63 = vcvt.s32.f32 %v61
    %v64 = vcvt.s32.f32 %v62
    %v65 = vld [vmem:[#allocation5] sm:$0xff]
    %v66 = vld [vmem:[#allocation5 + $0x8] sm:$0xff]
    %v67 = vld [vmem:[#allocation5 + $0x10] sm:$0xff]
    %v68 = vld [vmem:[#allocation5 + $0x18] sm:$0xff]
    %v69 = vld [vmem:[#allocation5 + $0x20] sm:$0xff]
    %v70 = vld [vmem:[#allocation5 + $0x28] sm:$0xff]
    %v71 = vld [vmem:[#allocation5 + $0x30] sm:$0xff]
    %v72 = vld [vmem:[#allocation5 + $0x38] sm:$0xff]
    %vm73 = vcmask 523264
    %v75 = vsel %vm73, %v63, 0
    %v78 = vsel %vm73, %v64, 0
    %80 = vmatpush.msra.mxu0 0.0
    %81 = vmatpush.msra.mxu0 0.0
    %82 = vmatpush.msra.mxu0 0.0
    %83 = vmatpush.msra.mxu0 0.0
    %84 = vmatpush.msra.mxu0 0.0
    %85 = vmatpush.msra.mxu0 0.0
    %86 = vmatpush.msra.mxu0 0.0
    %87 = vmatpush.msra.mxu0 0.0
    %88 = vmatpush.msra.mxu0 %v72
    %89 = vmatpush.msra.mxu0 %v71
    %90 = vmatpush.msra.mxu0 %v70
    %91 = vmatpush.msra.mxu0 %v69
    %92 = vmatpush.msra.mxu0 %v68
    %93 = vmatpush.msra.mxu0 %v67
    %94 = vmatpush.msra.mxu0 %v66
    %95 = vmatpush.msra.mxu0 %v65
    %96 = vmatmul.f32.gmra.mxu0 %v75
    %v97 = vpop.f32.mrf.mxu0
    %v98 = vadd.f32 0.0, %v97
    %99 = vmatmul.f32.gmra.mxu0 %v78
    %v100 = vpop.f32.mrf.mxu0
    %v101 = vadd.f32 0.0, %v100
    %102 = vdwg.mxu0
    %v103 = vxor.u32 %v98, 2147483648
    %v104 = vxor.u32 %v101, 2147483648
    %v105 = vmul.f32 %v103, 1.442695
    %v106 = vpow.pop %v105
    %v107 = vmul.f32 %v104, 1.442695
    %v108 = vpow.pop %v107
    %v109 = vadd.f32 %v106, 1.0
    %v110 = vadd.f32 %v108, 1.0
    %v111 = vrcp.pop %v109
    %v112 = vmul.f32 %v109, %v111
    %v113 = vsub.f32 1.0, %v112
    %v114 = vmul.f32 %v111, %v113
    %v115 = vadd.f32 %v111, %v114
    %vm116 = vweird.f32 %v109
    %vm117 = vweird.f32 %v111
    %vm118 = vmor %vm116, %vm117
    %v119 = vsel %vm118, %v111, %v115
    %v120 = vand.u32 2147483647, %v109
    %vm121 = vcmp.eq.f32.partialorder %v120, 8.507059e+37
    %v122 = vand.u32 %v109, 2147483648
    %v123 = vor.u32 1.1754944e-38, %v122
    %v124 = vsel %vm121, %v123, %v119
    %v125 = vmul.f32 1.0, %v124
    %v126 = vrcp.pop %v110
    %v127 = vmul.f32 %v110, %v126
    %v128 = vsub.f32 1.0, %v127
    %v129 = vmul.f32 %v126, %v128
    %v130 = vadd.f32 %v126, %v129
    %vm131 = vweird.f32 %v110
    %vm132 = vweird.f32 %v126
    %vm133 = vmor %vm131, %vm132
    %v134 = vsel %vm133, %v126, %v130
    %v135 = vand.u32 2147483647, %v110
    %vm136 = vcmp.eq.f32.partialorder %v135, 8.507059e+37
    %v137 = vand.u32 %v110, 2147483648
    %v138 = vor.u32 1.1754944e-38, %v137
    %v139 = vsel %vm136, %v138, %v134
    %v140 = vmul.f32 1.0, %v139
    %v141 = vperm.slane %v98, 0
    %v142 = vlaneseq
    %v143 = vshrl.u32 %v142, 7
    %145 = vset.pattern.permute.xlu0 %v143
    %146 = vperm.xlu0 %145, %v141
    %v147 = vpop.permute.xlu0 %146
    %v148 = vlaneseq
    %v149 = vshrl.u32 %v148, 7
    %v150 = vadd.s32 %v149, 8
    %151 = vset.pattern.permute.xlu0 %v150
    %152 = vperm.xlu0 %151, %v141
    %v153 = vpop.permute.xlu0 %152
    %v154 = vlaneseq
    %v155 = vshrl.u32 %v154, 7
    %v156 = vadd.s32 %v155, 16
    %157 = vset.pattern.permute.xlu0 %v156
    %158 = vperm.xlu0 %157, %v141
    %v159 = vpop.permute.xlu0 %158
    %v160 = vlaneseq
    %v161 = vshrl.u32 %v160, 7
    %v162 = vadd.s32 %v161, 24
    %163 = vset.pattern.permute.xlu0 %v162
    %164 = vperm.xlu0 %163, %v141
    %v165 = vpop.permute.xlu0 %164
    %v166 = vperm.slane %v98, 1
    %v167 = vlaneseq
    %v168 = vshrl.u32 %v167, 7
    %170 = vset.pattern.permute.xlu0 %v168
    %171 = vperm.xlu0 %170, %v166
    %v172 = vpop.permute.xlu0 %171
    %v173 = vlaneseq
    %v174 = vshrl.u32 %v173, 7
    %v175 = vadd.s32 %v174, 8
    %176 = vset.pattern.permute.xlu0 %v175
    %177 = vperm.xlu0 %176, %v166
    %v178 = vpop.permute.xlu0 %177
    %v179 = vlaneseq
    %v180 = vshrl.u32 %v179, 7
    %v181 = vadd.s32 %v180, 16
    %182 = vset.pattern.permute.xlu0 %v181
    %183 = vperm.xlu0 %182, %v166
    %v184 = vpop.permute.xlu0 %183
    %v185 = vlaneseq
    %v186 = vshrl.u32 %v185, 7
    %v187 = vadd.s32 %v186, 24
    %188 = vset.pattern.permute.xlu0 %v187
    %189 = vperm.xlu0 %188, %v166
    %v190 = vpop.permute.xlu0 %189
    %v191 = vperm.slane %v98, 2
    %v192 = vlaneseq
    %v193 = vshrl.u32 %v192, 7
    %195 = vset.pattern.permute.xlu0 %v193
    %196 = vperm.xlu0 %195, %v191
    %v197 = vpop.permute.xlu0 %196
    %v198 = vlaneseq
    %v199 = vshrl.u32 %v198, 7
    %v200 = vadd.s32 %v199, 8
    %201 = vset.pattern.permute.xlu0 %v200
    %202 = vperm.xlu0 %201, %v191
    %v203 = vpop.permute.xlu0 %202
    %v204 = vlaneseq
    %v205 = vshrl.u32 %v204, 7
    %v206 = vadd.s32 %v205, 16
    %207 = vset.pattern.permute.xlu0 %v206
    %208 = vperm.xlu0 %207, %v191
    %v209 = vpop.permute.xlu0 %208
    %v210 = vlaneseq
    %v211 = vshrl.u32 %v210, 7
    %v212 = vadd.s32 %v211, 24
    %213 = vset.pattern.permute.xlu0 %v212
    %214 = vperm.xlu0 %213, %v191
    %v215 = vpop.permute.xlu0 %214
    %v216 = vperm.slane %v98, 3
    %v217 = vlaneseq
    %v218 = vshrl.u32 %v217, 7
    %220 = vset.pattern.permute.xlu0 %v218
    %221 = vperm.xlu0 %220, %v216
    %v222 = vpop.permute.xlu0 %221
    %v223 = vlaneseq
    %v224 = vshrl.u32 %v223, 7
    %v225 = vadd.s32 %v224, 8
    %226 = vset.pattern.permute.xlu0 %v225
    %227 = vperm.xlu0 %226, %v216
    %v228 = vpop.permute.xlu0 %227
    %v229 = vlaneseq
    %v230 = vshrl.u32 %v229, 7
    %v231 = vadd.s32 %v230, 16
    %232 = vset.pattern.permute.xlu0 %v231
    %233 = vperm.xlu0 %232, %v216
    %v234 = vpop.permute.xlu0 %233
    %v235 = vlaneseq
    %v236 = vshrl.u32 %v235, 7
    %v237 = vadd.s32 %v236, 24
    %238 = vset.pattern.permute.xlu0 %v237
    %239 = vperm.xlu0 %238, %v216
    %v240 = vpop.permute.xlu0 %239
    %v241 = vperm.slane %v98, 4
    %v242 = vlaneseq
    %v243 = vshrl.u32 %v242, 7
    %245 = vset.pattern.permute.xlu0 %v243
    %246 = vperm.xlu0 %245, %v241
    %v247 = vpop.permute.xlu0 %246
    %v248 = vlaneseq
    %v249 = vshrl.u32 %v248, 7
    %v250 = vadd.s32 %v249, 8
    %251 = vset.pattern.permute.xlu0 %v250
    %252 = vperm.xlu0 %251, %v241
    %v253 = vpop.permute.xlu0 %252
    %v254 = vlaneseq
    %v255 = vshrl.u32 %v254, 7
    %v256 = vadd.s32 %v255, 16
    %257 = vset.pattern.permute.xlu0 %v256
    %258 = vperm.xlu0 %257, %v241
    %v259 = vpop.permute.xlu0 %258
    %v260 = vlaneseq
    %v261 = vshrl.u32 %v260, 7
    %v262 = vadd.s32 %v261, 24
    %263 = vset.pattern.permute.xlu0 %v262
    %264 = vperm.xlu0 %263, %v241
    %v265 = vpop.permute.xlu0 %264
    %v266 = vperm.slane %v98, 5
    %v267 = vlaneseq
    %v268 = vshrl.u32 %v267, 7
    %270 = vset.pattern.permute.xlu0 %v268
    %271 = vperm.xlu0 %270, %v266
    %v272 = vpop.permute.xlu0 %271
    %v273 = vlaneseq
    %v274 = vshrl.u32 %v273, 7
    %v275 = vadd.s32 %v274, 8
    %276 = vset.pattern.permute.xlu0 %v275
    %277 = vperm.xlu0 %276, %v266
    %v278 = vpop.permute.xlu0 %277
    %v279 = vlaneseq
    %v280 = vshrl.u32 %v279, 7
    %v281 = vadd.s32 %v280, 16
    %282 = vset.pattern.permute.xlu0 %v281
    %283 = vperm.xlu0 %282, %v266
    %v284 = vpop.permute.xlu0 %283
    %v285 = vlaneseq
    %v286 = vshrl.u32 %v285, 7
    %v287 = vadd.s32 %v286, 24
    %288 = vset.pattern.permute.xlu0 %v287
    %289 = vperm.xlu0 %288, %v266
    %v290 = vpop.permute.xlu0 %289
    %v291 = vperm.slane %v98, 6
    %v292 = vlaneseq
    %v293 = vshrl.u32 %v292, 7
    %295 = vset.pattern.permute.xlu0 %v293
    %296 = vperm.xlu0 %295, %v291
    %v297 = vpop.permute.xlu0 %296
    %v298 = vlaneseq
    %v299 = vshrl.u32 %v298, 7
    %v300 = vadd.s32 %v299, 8
    %301 = vset.pattern.permute.xlu0 %v300
    %302 = vperm.xlu0 %301, %v291
    %v303 = vpop.permute.xlu0 %302
    %v304 = vlaneseq
    %v305 = vshrl.u32 %v304, 7
    %v306 = vadd.s32 %v305, 16
    %307 = vset.pattern.permute.xlu0 %v306
    %308 = vperm.xlu0 %307, %v291
    %v309 = vpop.permute.xlu0 %308
    %v310 = vlaneseq
    %v311 = vshrl.u32 %v310, 7
    %v312 = vadd.s32 %v311, 24
    %313 = vset.pattern.permute.xlu0 %v312
    %314 = vperm.xlu0 %313, %v291
    %v315 = vpop.permute.xlu0 %314
    %v316 = vperm.slane %v98, 7
    %v317 = vlaneseq
    %v318 = vshrl.u32 %v317, 7
    %320 = vset.pattern.permute.xlu0 %v318
    %321 = vperm.xlu0 %320, %v316
    %v322 = vpop.permute.xlu0 %321
    %v323 = vlaneseq
    %v324 = vshrl.u32 %v323, 7
    %v325 = vadd.s32 %v324, 8
    %326 = vset.pattern.permute.xlu0 %v325
    %327 = vperm.xlu0 %326, %v316
    %v328 = vpop.permute.xlu0 %327
    %v329 = vlaneseq
    %v330 = vshrl.u32 %v329, 7
    %v331 = vadd.s32 %v330, 16
    %332 = vset.pattern.permute.xlu0 %v331
    %333 = vperm.xlu0 %332, %v316
    %v334 = vpop.permute.xlu0 %333
    %v335 = vlaneseq
    %v336 = vshrl.u32 %v335, 7
    %v337 = vadd.s32 %v336, 24
    %338 = vset.pattern.permute.xlu0 %v337
    %339 = vperm.xlu0 %338, %v316
    %v340 = vpop.permute.xlu0 %339
    %v341 = vperm.slane %v101, 0
    %v342 = vlaneseq
    %v343 = vshrl.u32 %v342, 7
    %345 = vset.pattern.permute.xlu0 %v343
    %346 = vperm.xlu0 %345, %v341
    %v347 = vpop.permute.xlu0 %346
    %v348 = vlaneseq
    %v349 = vshrl.u32 %v348, 7
    %v350 = vadd.s32 %v349, 8
    %351 = vset.pattern.permute.xlu0 %v350
    %352 = vperm.xlu0 %351, %v341
    %v353 = vpop.permute.xlu0 %352
    %v354 = vlaneseq
    %v355 = vshrl.u32 %v354, 7
    %v356 = vadd.s32 %v355, 16
    %357 = vset.pattern.permute.xlu0 %v356
    %358 = vperm.xlu0 %357, %v341
    %v359 = vpop.permute.xlu0 %358
    %v360 = vlaneseq
    %v361 = vshrl.u32 %v360, 7
    %v362 = vadd.s32 %v361, 24
    %363 = vset.pattern.permute.xlu0 %v362
    %364 = vperm.xlu0 %363, %v341
    %v365 = vpop.permute.xlu0 %364
    %v366 = vperm.slane %v101, 1
    %v367 = vlaneseq
    %v368 = vshrl.u32 %v367, 7
    %370 = vset.pattern.permute.xlu0 %v368
    %371 = vperm.xlu0 %370, %v366
    %v372 = vpop.permute.xlu0 %371
    %v373 = vlaneseq
    %v374 = vshrl.u32 %v373, 7
    %v375 = vadd.s32 %v374, 8
    %376 = vset.pattern.permute.xlu0 %v375
    %377 = vperm.xlu0 %376, %v366
    %v378 = vpop.permute.xlu0 %377
    %v379 = vlaneseq
    %v380 = vshrl.u32 %v379, 7
    %v381 = vadd.s32 %v380, 16
    %382 = vset.pattern.permute.xlu0 %v381
    %383 = vperm.xlu0 %382, %v366
    %v384 = vpop.permute.xlu0 %383
    %v385 = vlaneseq
    %v386 = vshrl.u32 %v385, 7
    %v387 = vadd.s32 %v386, 24
    %388 = vset.pattern.permute.xlu0 %v387
    %389 = vperm.xlu0 %388, %v366
    %v390 = vpop.permute.xlu0 %389
    %v391 = vperm.slane %v101, 2
    %v392 = vlaneseq
    %v393 = vshrl.u32 %v392, 7
    %395 = vset.pattern.permute.xlu0 %v393
    %396 = vperm.xlu0 %395, %v391
    %v397 = vpop.permute.xlu0 %396
    %v398 = vlaneseq
    %v399 = vshrl.u32 %v398, 7
    %v400 = vadd.s32 %v399, 8
    %401 = vset.pattern.permute.xlu0 %v400
    %402 = vperm.xlu0 %401, %v391
    %v403 = vpop.permute.xlu0 %402
    %v404 = vlaneseq
    %v405 = vshrl.u32 %v404, 7
    %v406 = vadd.s32 %v405, 16
    %407 = vset.pattern.permute.xlu0 %v406
    %408 = vperm.xlu0 %407, %v391
    %v409 = vpop.permute.xlu0 %408
    %v410 = vlaneseq
    %v411 = vshrl.u32 %v410, 7
    %v412 = vadd.s32 %v411, 24
    %413 = vset.pattern.permute.xlu0 %v412
    %414 = vperm.xlu0 %413, %v391
    %v415 = vpop.permute.xlu0 %414
    %v416 = vperm.slane %v101, 3
    %v417 = vlaneseq
    %v418 = vshrl.u32 %v417, 7
    %420 = vset.pattern.permute.xlu0 %v418
    %421 = vperm.xlu0 %420, %v416
    %v422 = vpop.permute.xlu0 %421
    %v423 = vlaneseq
    %v424 = vshrl.u32 %v423, 7
    %v425 = vadd.s32 %v424, 8
    %426 = vset.pattern.permute.xlu0 %v425
    %427 = vperm.xlu0 %426, %v416
    %v428 = vpop.permute.xlu0 %427
    %v429 = vlaneseq
    %v430 = vshrl.u32 %v429, 7
    %v431 = vadd.s32 %v430, 16
    %432 = vset.pattern.permute.xlu0 %v431
    %433 = vperm.xlu0 %432, %v416
    %v434 = vpop.permute.xlu0 %433
    %v435 = vlaneseq
    %v436 = vshrl.u32 %v435, 7
    %v437 = vadd.s32 %v436, 24
    %438 = vset.pattern.permute.xlu0 %v437
    %439 = vperm.xlu0 %438, %v416
    %v440 = vpop.permute.xlu0 %439
    %v441 = vperm.slane %v101, 4
    %v442 = vlaneseq
    %v443 = vshrl.u32 %v442, 7
    %445 = vset.pattern.permute.xlu0 %v443
    %446 = vperm.xlu0 %445, %v441
    %v447 = vpop.permute.xlu0 %446
    %v448 = vlaneseq
    %v449 = vshrl.u32 %v448, 7
    %v450 = vadd.s32 %v449, 8
    %451 = vset.pattern.permute.xlu0 %v450
    %452 = vperm.xlu0 %451, %v441
    %v453 = vpop.permute.xlu0 %452
    %v454 = vlaneseq
    %v455 = vshrl.u32 %v454, 7
    %v456 = vadd.s32 %v455, 16
    %457 = vset.pattern.permute.xlu0 %v456
    %458 = vperm.xlu0 %457, %v441
    %v459 = vpop.permute.xlu0 %458
    %v460 = vlaneseq
    %v461 = vshrl.u32 %v460, 7
    %v462 = vadd.s32 %v461, 24
    %463 = vset.pattern.permute.xlu0 %v462
    %464 = vperm.xlu0 %463, %v441
    %v465 = vpop.permute.xlu0 %464
    %v466 = vperm.slane %v101, 5
    %v467 = vlaneseq
    %v468 = vshrl.u32 %v467, 7
    %470 = vset.pattern.permute.xlu0 %v468
    %471 = vperm.xlu0 %470, %v466
    %v472 = vpop.permute.xlu0 %471
    %v473 = vlaneseq
    %v474 = vshrl.u32 %v473, 7
    %v475 = vadd.s32 %v474, 8
    %476 = vset.pattern.permute.xlu0 %v475
    %477 = vperm.xlu0 %476, %v466
    %v478 = vpop.permute.xlu0 %477
    %v479 = vlaneseq
    %v480 = vshrl.u32 %v479, 7
    %v481 = vadd.s32 %v480, 16
    %482 = vset.pattern.permute.xlu0 %v481
    %483 = vperm.xlu0 %482, %v466
    %v484 = vpop.permute.xlu0 %483
    %v485 = vlaneseq
    %v486 = vshrl.u32 %v485, 7
    %v487 = vadd.s32 %v486, 24
    %488 = vset.pattern.permute.xlu0 %v487
    %489 = vperm.xlu0 %488, %v466
    %v490 = vpop.permute.xlu0 %489
    %v491 = vperm.slane %v101, 6
    %v492 = vlaneseq
    %v493 = vshrl.u32 %v492, 7
    %495 = vset.pattern.permute.xlu0 %v493
    %496 = vperm.xlu0 %495, %v491
    %v497 = vpop.permute.xlu0 %496
    %v498 = vlaneseq
    %v499 = vshrl.u32 %v498, 7
    %v500 = vadd.s32 %v499, 8
    %501 = vset.pattern.permute.xlu0 %v500
    %502 = vperm.xlu0 %501, %v491
    %v503 = vpop.permute.xlu0 %502
    %v504 = vlaneseq
    %v505 = vshrl.u32 %v504, 7
    %v506 = vadd.s32 %v505, 16
    %507 = vset.pattern.permute.xlu0 %v506
    %508 = vperm.xlu0 %507, %v491
    %v509 = vpop.permute.xlu0 %508
    %v510 = vlaneseq
    %v511 = vshrl.u32 %v510, 7
    %v512 = vadd.s32 %v511, 24
    %513 = vset.pattern.permute.xlu0 %v512
    %514 = vperm.xlu0 %513, %v491
    %v515 = vpop.permute.xlu0 %514
    %v516 = vperm.slane %v101, 7
    %v517 = vlaneseq
    %v518 = vshrl.u32 %v517, 7
    %520 = vset.pattern.permute.xlu0 %v518
    %521 = vperm.xlu0 %520, %v516
    %v522 = vpop.permute.xlu0 %521
    %v523 = vlaneseq
    %v524 = vshrl.u32 %v523, 7
    %v525 = vadd.s32 %v524, 8
    %526 = vset.pattern.permute.xlu0 %v525
    %527 = vperm.xlu0 %526, %v516
    %v528 = vpop.permute.xlu0 %527
    %v529 = vlaneseq
    %v530 = vshrl.u32 %v529, 7
    %v531 = vadd.s32 %v530, 16
    %532 = vset.pattern.permute.xlu0 %v531
    %533 = vperm.xlu0 %532, %v516
    %v534 = vpop.permute.xlu0 %533
    %v535 = vlaneseq
    %v536 = vshrl.u32 %v535, 7
    %v537 = vadd.s32 %v536, 24
    %538 = vset.pattern.permute.xlu0 %v537
    %539 = vperm.xlu0 %538, %v516
    %v540 = vpop.permute.xlu0 %539
    %vm541 = vcmask 261120
    %v542 = vsel %vm541, %v147, %v347
    %v543 = vsel %vm541, %v153, %v353
    %v544 = vsel %vm541, %v159, %v359
    %v545 = vsel %vm541, %v165, %v365
    %v546 = vsel %vm541, %v172, %v372
    %v547 = vsel %vm541, %v178, %v378
    %v548 = vsel %vm541, %v184, %v384
    %v549 = vsel %vm541, %v190, %v390
    %v550 = vsel %vm541, %v197, %v397
    %v551 = vsel %vm541, %v203, %v403
    %v552 = vsel %vm541, %v209, %v409
    %v553 = vsel %vm541, %v215, %v415
    %v554 = vsel %vm541, %v222, %v422
    %v555 = vsel %vm541, %v228, %v428
    %v556 = vsel %vm541, %v234, %v434
    %v557 = vsel %vm541, %v240, %v440
    %v558 = vsel %vm541, %v247, %v447
    %v559 = vsel %vm541, %v253, %v453
    %v560 = vsel %vm541, %v259, %v459
    %v561 = vsel %vm541, %v265, %v465
    %v562 = vsel %vm541, %v272, %v472
    %v563 = vsel %vm541, %v278, %v478
    %v564 = vsel %vm541, %v284, %v484
    %v565 = vsel %vm541, %v290, %v490
    %v566 = vsel %vm541, %v297, %v497
    %v567 = vsel %vm541, %v303, %v503
    %v568 = vsel %vm541, %v309, %v509
    %v569 = vsel %vm541, %v315, %v515
    %v570 = vsel %vm541, %v322, %v522
    %v571 = vsel %vm541, %v328, %v528
    %v572 = vsel %vm541, %v334, %v534
    %v573 = vsel %vm541, %v340, %v540
    %v574 = vperm.slane %v125, 0
    %v575 = vlaneseq
    %v576 = vshrl.u32 %v575, 7
    %v577 = vadd.s32 %v576, 64
    %578 = vset.pattern.permute.xlu0 %v577
    %579 = vperm.xlu0 %578, %v574
    %v580 = vpop.permute.xlu0 %579
    %v581 = vlaneseq
    %v582 = vshrl.u32 %v581, 7
    %v583 = vadd.s32 %v582, 72
    %584 = vset.pattern.permute.xlu0 %v583
    %585 = vperm.xlu0 %584, %v574
    %v586 = vpop.permute.xlu0 %585
    %v587 = vlaneseq
    %v588 = vshrl.u32 %v587, 7
    %v589 = vadd.s32 %v588, 80
    %590 = vset.pattern.permute.xlu0 %v589
    %591 = vperm.xlu0 %590, %v574
    %v592 = vpop.permute.xlu0 %591
    %v593 = vlaneseq
    %v594 = vshrl.u32 %v593, 7
    %v595 = vadd.s32 %v594, 88
    %596 = vset.pattern.permute.xlu0 %v595
    %597 = vperm.xlu0 %596, %v574
    %v598 = vpop.permute.xlu0 %597
    %v599 = vperm.slane %v125, 1
    %v600 = vlaneseq
    %v601 = vshrl.u32 %v600, 7
    %v602 = vadd.s32 %v601, 64
    %603 = vset.pattern.permute.xlu0 %v602
    %604 = vperm.xlu0 %603, %v599
    %v605 = vpop.permute.xlu0 %604
    %v606 = vlaneseq
    %v607 = vshrl.u32 %v606, 7
    %v608 = vadd.s32 %v607, 72
    %609 = vset.pattern.permute.xlu0 %v608
    %610 = vperm.xlu0 %609, %v599
    %v611 = vpop.permute.xlu0 %610
    %v612 = vlaneseq
    %v613 = vshrl.u32 %v612, 7
    %v614 = vadd.s32 %v613, 80
    %615 = vset.pattern.permute.xlu0 %v614
    %616 = vperm.xlu0 %615, %v599
    %v617 = vpop.permute.xlu0 %616
    %v618 = vlaneseq
    %v619 = vshrl.u32 %v618, 7
    %v620 = vadd.s32 %v619, 88
    %621 = vset.pattern.permute.xlu0 %v620
    %622 = vperm.xlu0 %621, %v599
    %v623 = vpop.permute.xlu0 %622
    %v624 = vperm.slane %v125, 2
    %v625 = vlaneseq
    %v626 = vshrl.u32 %v625, 7
    %v627 = vadd.s32 %v626, 64
    %628 = vset.pattern.permute.xlu0 %v627
    %629 = vperm.xlu0 %628, %v624
    %v630 = vpop.permute.xlu0 %629
    %v631 = vlaneseq
    %v632 = vshrl.u32 %v631, 7
    %v633 = vadd.s32 %v632, 72
    %634 = vset.pattern.permute.xlu0 %v633
    %635 = vperm.xlu0 %634, %v624
    %v636 = vpop.permute.xlu0 %635
    %v637 = vlaneseq
    %v638 = vshrl.u32 %v637, 7
    %v639 = vadd.s32 %v638, 80
    %640 = vset.pattern.permute.xlu0 %v639
    %641 = vperm.xlu0 %640, %v624
    %v642 = vpop.permute.xlu0 %641
    %v643 = vlaneseq
    %v644 = vshrl.u32 %v643, 7
    %v645 = vadd.s32 %v644, 88
    %646 = vset.pattern.permute.xlu0 %v645
    %647 = vperm.xlu0 %646, %v624
    %v648 = vpop.permute.xlu0 %647
    %v649 = vperm.slane %v125, 3
    %v650 = vlaneseq
    %v651 = vshrl.u32 %v650, 7
    %v652 = vadd.s32 %v651, 64
    %653 = vset.pattern.permute.xlu0 %v652
    %654 = vperm.xlu0 %653, %v649
    %v655 = vpop.permute.xlu0 %654
    %v656 = vlaneseq
    %v657 = vshrl.u32 %v656, 7
    %v658 = vadd.s32 %v657, 72
    %659 = vset.pattern.permute.xlu0 %v658
    %660 = vperm.xlu0 %659, %v649
    %v661 = vpop.permute.xlu0 %660
    %v662 = vlaneseq
    %v663 = vshrl.u32 %v662, 7
    %v664 = vadd.s32 %v663, 80
    %665 = vset.pattern.permute.xlu0 %v664
    %666 = vperm.xlu0 %665, %v649
    %v667 = vpop.permute.xlu0 %666
    %v668 = vlaneseq
    %v669 = vshrl.u32 %v668, 7
    %v670 = vadd.s32 %v669, 88
    %671 = vset.pattern.permute.xlu0 %v670
    %672 = vperm.xlu0 %671, %v649
    %v673 = vpop.permute.xlu0 %672
    %v674 = vperm.slane %v125, 4
    %v675 = vlaneseq
    %v676 = vshrl.u32 %v675, 7
    %v677 = vadd.s32 %v676, 64
    %678 = vset.pattern.permute.xlu0 %v677
    %679 = vperm.xlu0 %678, %v674
    %v680 = vpop.permute.xlu0 %679
    %v681 = vlaneseq
    %v682 = vshrl.u32 %v681, 7
    %v683 = vadd.s32 %v682, 72
    %684 = vset.pattern.permute.xlu0 %v683
    %685 = vperm.xlu0 %684, %v674
    %v686 = vpop.permute.xlu0 %685
    %v687 = vlaneseq
    %v688 = vshrl.u32 %v687, 7
    %v689 = vadd.s32 %v688, 80
    %690 = vset.pattern.permute.xlu0 %v689
    %691 = vperm.xlu0 %690, %v674
    %v692 = vpop.permute.xlu0 %691
    %v693 = vlaneseq
    %v694 = vshrl.u32 %v693, 7
    %v695 = vadd.s32 %v694, 88
    %696 = vset.pattern.permute.xlu0 %v695
    %697 = vperm.xlu0 %696, %v674
    %v698 = vpop.permute.xlu0 %697
    %v699 = vperm.slane %v125, 5
    %v700 = vlaneseq
    %v701 = vshrl.u32 %v700, 7
    %v702 = vadd.s32 %v701, 64
    %703 = vset.pattern.permute.xlu0 %v702
    %704 = vperm.xlu0 %703, %v699
    %v705 = vpop.permute.xlu0 %704
    %v706 = vlaneseq
    %v707 = vshrl.u32 %v706, 7
    %v708 = vadd.s32 %v707, 72
    %709 = vset.pattern.permute.xlu0 %v708
    %710 = vperm.xlu0 %709, %v699
    %v711 = vpop.permute.xlu0 %710
    %v712 = vlaneseq
    %v713 = vshrl.u32 %v712, 7
    %v714 = vadd.s32 %v713, 80
    %715 = vset.pattern.permute.xlu0 %v714
    %716 = vperm.xlu0 %715, %v699
    %v717 = vpop.permute.xlu0 %716
    %v718 = vlaneseq
    %v719 = vshrl.u32 %v718, 7
    %v720 = vadd.s32 %v719, 88
    %721 = vset.pattern.permute.xlu0 %v720
    %722 = vperm.xlu0 %721, %v699
    %v723 = vpop.permute.xlu0 %722
    %v724 = vperm.slane %v125, 6
    %v725 = vlaneseq
    %v726 = vshrl.u32 %v725, 7
    %v727 = vadd.s32 %v726, 64
    %728 = vset.pattern.permute.xlu0 %v727
    %729 = vperm.xlu0 %728, %v724
    %v730 = vpop.permute.xlu0 %729
    %v731 = vlaneseq
    %v732 = vshrl.u32 %v731, 7
    %v733 = vadd.s32 %v732, 72
    %734 = vset.pattern.permute.xlu0 %v733
    %735 = vperm.xlu0 %734, %v724
    %v736 = vpop.permute.xlu0 %735
    %v737 = vlaneseq
    %v738 = vshrl.u32 %v737, 7
    %v739 = vadd.s32 %v738, 80
    %740 = vset.pattern.permute.xlu0 %v739
    %741 = vperm.xlu0 %740, %v724
    %v742 = vpop.permute.xlu0 %741
    %v743 = vlaneseq
    %v744 = vshrl.u32 %v743, 7
    %v745 = vadd.s32 %v744, 88
    %746 = vset.pattern.permute.xlu0 %v745
    %747 = vperm.xlu0 %746, %v724
    %v748 = vpop.permute.xlu0 %747
    %v749 = vperm.slane %v125, 7
    %v750 = vlaneseq
    %v751 = vshrl.u32 %v750, 7
    %v752 = vadd.s32 %v751, 64
    %753 = vset.pattern.permute.xlu0 %v752
    %754 = vperm.xlu0 %753, %v749
    %v755 = vpop.permute.xlu0 %754
    %v756 = vlaneseq
    %v757 = vshrl.u32 %v756, 7
    %v758 = vadd.s32 %v757, 72
    %759 = vset.pattern.permute.xlu0 %v758
    %760 = vperm.xlu0 %759, %v749
    %v761 = vpop.permute.xlu0 %760
    %v762 = vlaneseq
    %v763 = vshrl.u32 %v762, 7
    %v764 = vadd.s32 %v763, 80
    %765 = vset.pattern.permute.xlu0 %v764
    %766 = vperm.xlu0 %765, %v749
    %v767 = vpop.permute.xlu0 %766
    %v768 = vlaneseq
    %v769 = vshrl.u32 %v768, 7
    %v770 = vadd.s32 %v769, 88
    %771 = vset.pattern.permute.xlu0 %v770
    %772 = vperm.xlu0 %771, %v749
    %v773 = vpop.permute.xlu0 %772
    %v774 = vperm.slane %v140, 0
    %v775 = vlaneseq
    %v776 = vshrl.u32 %v775, 7
    %v777 = vadd.s32 %v776, 64
    %778 = vset.pattern.permute.xlu0 %v777
    %779 = vperm.xlu0 %778, %v774
    %v780 = vpop.permute.xlu0 %779
    %v781 = vlaneseq
    %v782 = vshrl.u32 %v781, 7
    %v783 = vadd.s32 %v782, 72
    %784 = vset.pattern.permute.xlu0 %v783
    %785 = vperm.xlu0 %784, %v774
    %v786 = vpop.permute.xlu0 %785
    %v787 = vlaneseq
    %v788 = vshrl.u32 %v787, 7
    %v789 = vadd.s32 %v788, 80
    %790 = vset.pattern.permute.xlu0 %v789
    %791 = vperm.xlu0 %790, %v774
    %v792 = vpop.permute.xlu0 %791
    %v793 = vlaneseq
    %v794 = vshrl.u32 %v793, 7
    %v795 = vadd.s32 %v794, 88
    %796 = vset.pattern.permute.xlu0 %v795
    %797 = vperm.xlu0 %796, %v774
    %v798 = vpop.permute.xlu0 %797
    %v799 = vperm.slane %v140, 1
    %v800 = vlaneseq
    %v801 = vshrl.u32 %v800, 7
    %v802 = vadd.s32 %v801, 64
    %803 = vset.pattern.permute.xlu0 %v802
    %804 = vperm.xlu0 %803, %v799
    %v805 = vpop.permute.xlu0 %804
    %v806 = vlaneseq
    %v807 = vshrl.u32 %v806, 7
    %v808 = vadd.s32 %v807, 72
    %809 = vset.pattern.permute.xlu0 %v808
    %810 = vperm.xlu0 %809, %v799
    %v811 = vpop.permute.xlu0 %810
    %v812 = vlaneseq
    %v813 = vshrl.u32 %v812, 7
    %v814 = vadd.s32 %v813, 80
    %815 = vset.pattern.permute.xlu0 %v814
    %816 = vperm.xlu0 %815, %v799
    %v817 = vpop.permute.xlu0 %816
    %v818 = vlaneseq
    %v819 = vshrl.u32 %v818, 7
    %v820 = vadd.s32 %v819, 88
    %821 = vset.pattern.permute.xlu0 %v820
    %822 = vperm.xlu0 %821, %v799
    %v823 = vpop.permute.xlu0 %822
    %v824 = vperm.slane %v140, 2
    %v825 = vlaneseq
    %v826 = vshrl.u32 %v825, 7
    %v827 = vadd.s32 %v826, 64
    %828 = vset.pattern.permute.xlu0 %v827
    %829 = vperm.xlu0 %828, %v824
    %v830 = vpop.permute.xlu0 %829
    %v831 = vlaneseq
    %v832 = vshrl.u32 %v831, 7
    %v833 = vadd.s32 %v832, 72
    %834 = vset.pattern.permute.xlu0 %v833
    %835 = vperm.xlu0 %834, %v824
    %v836 = vpop.permute.xlu0 %835
    %v837 = vlaneseq
    %v838 = vshrl.u32 %v837, 7
    %v839 = vadd.s32 %v838, 80
    %840 = vset.pattern.permute.xlu0 %v839
    %841 = vperm.xlu0 %840, %v824
    %v842 = vpop.permute.xlu0 %841
    %v843 = vlaneseq
    %v844 = vshrl.u32 %v843, 7
    %v845 = vadd.s32 %v844, 88
    %846 = vset.pattern.permute.xlu0 %v845
    %847 = vperm.xlu0 %846, %v824
    %v848 = vpop.permute.xlu0 %847
    %v849 = vperm.slane %v140, 3
    %v850 = vlaneseq
    %v851 = vshrl.u32 %v850, 7
    %v852 = vadd.s32 %v851, 64
    %853 = vset.pattern.permute.xlu0 %v852
    %854 = vperm.xlu0 %853, %v849
    %v855 = vpop.permute.xlu0 %854
    %v856 = vlaneseq
    %v857 = vshrl.u32 %v856, 7
    %v858 = vadd.s32 %v857, 72
    %859 = vset.pattern.permute.xlu0 %v858
    %860 = vperm.xlu0 %859, %v849
    %v861 = vpop.permute.xlu0 %860
    %v862 = vlaneseq
    %v863 = vshrl.u32 %v862, 7
    %v864 = vadd.s32 %v863, 80
    %865 = vset.pattern.permute.xlu0 %v864
    %866 = vperm.xlu0 %865, %v849
    %v867 = vpop.permute.xlu0 %866
    %v868 = vlaneseq
    %v869 = vshrl.u32 %v868, 7
    %v870 = vadd.s32 %v869, 88
    %871 = vset.pattern.permute.xlu0 %v870
    %872 = vperm.xlu0 %871, %v849
    %v873 = vpop.permute.xlu0 %872
    %v874 = vperm.slane %v140, 4
    %v875 = vlaneseq
    %v876 = vshrl.u32 %v875, 7
    %v877 = vadd.s32 %v876, 64
    %878 = vset.pattern.permute.xlu0 %v877
    %879 = vperm.xlu0 %878, %v874
    %v880 = vpop.permute.xlu0 %879
    %v881 = vlaneseq
    %v882 = vshrl.u32 %v881, 7
    %v883 = vadd.s32 %v882, 72
    %884 = vset.pattern.permute.xlu0 %v883
    %885 = vperm.xlu0 %884, %v874
    %v886 = vpop.permute.xlu0 %885
    %v887 = vlaneseq
    %v888 = vshrl.u32 %v887, 7
    %v889 = vadd.s32 %v888, 80
    %890 = vset.pattern.permute.xlu0 %v889
    %891 = vperm.xlu0 %890, %v874
    %v892 = vpop.permute.xlu0 %891
    %v893 = vlaneseq
    %v894 = vshrl.u32 %v893, 7
    %v895 = vadd.s32 %v894, 88
    %896 = vset.pattern.permute.xlu0 %v895
    %897 = vperm.xlu0 %896, %v874
    %v898 = vpop.permute.xlu0 %897
    %v899 = vperm.slane %v140, 5
    %v900 = vlaneseq
    %v901 = vshrl.u32 %v900, 7
    %v902 = vadd.s32 %v901, 64
    %903 = vset.pattern.permute.xlu0 %v902
    %904 = vperm.xlu0 %903, %v899
    %v905 = vpop.permute.xlu0 %904
    %v906 = vlaneseq
    %v907 = vshrl.u32 %v906, 7
    %v908 = vadd.s32 %v907, 72
    %909 = vset.pattern.permute.xlu0 %v908
    %910 = vperm.xlu0 %909, %v899
    %v911 = vpop.permute.xlu0 %910
    %v912 = vlaneseq
    %v913 = vshrl.u32 %v912, 7
    %v914 = vadd.s32 %v913, 80
    %915 = vset.pattern.permute.xlu0 %v914
    %916 = vperm.xlu0 %915, %v899
    %v917 = vpop.permute.xlu0 %916
    %v918 = vlaneseq
    %v919 = vshrl.u32 %v918, 7
    %v920 = vadd.s32 %v919, 88
    %921 = vset.pattern.permute.xlu0 %v920
    %922 = vperm.xlu0 %921, %v899
    %v923 = vpop.permute.xlu0 %922
    %v924 = vperm.slane %v140, 6
    %v925 = vlaneseq
    %v926 = vshrl.u32 %v925, 7
    %v927 = vadd.s32 %v926, 64
    %928 = vset.pattern.permute.xlu0 %v927
    %929 = vperm.xlu0 %928, %v924
    %v930 = vpop.permute.xlu0 %929
    %v931 = vlaneseq
    %v932 = vshrl.u32 %v931, 7
    %v933 = vadd.s32 %v932, 72
    %934 = vset.pattern.permute.xlu0 %v933
    %935 = vperm.xlu0 %934, %v924
    %v936 = vpop.permute.xlu0 %935
    %v937 = vlaneseq
    %v938 = vshrl.u32 %v937, 7
    %v939 = vadd.s32 %v938, 80
    %940 = vset.pattern.permute.xlu0 %v939
    %941 = vperm.xlu0 %940, %v924
    %v942 = vpop.permute.xlu0 %941
    %v943 = vlaneseq
    %v944 = vshrl.u32 %v943, 7
    %v945 = vadd.s32 %v944, 88
    %946 = vset.pattern.permute.xlu0 %v945
    %947 = vperm.xlu0 %946, %v924
    %v948 = vpop.permute.xlu0 %947
    %v949 = vperm.slane %v140, 7
    %v950 = vlaneseq
    %v951 = vshrl.u32 %v950, 7
    %v952 = vadd.s32 %v951, 64
    %953 = vset.pattern.permute.xlu0 %v952
    %954 = vperm.xlu0 %953, %v949
    %v955 = vpop.permute.xlu0 %954
    %v956 = vlaneseq
    %v957 = vshrl.u32 %v956, 7
    %v958 = vadd.s32 %v957, 72
    %959 = vset.pattern.permute.xlu0 %v958
    %960 = vperm.xlu0 %959, %v949
    %v961 = vpop.permute.xlu0 %960
    %v962 = vlaneseq
    %v963 = vshrl.u32 %v962, 7
    %v964 = vadd.s32 %v963, 80
    %965 = vset.pattern.permute.xlu0 %v964
    %966 = vperm.xlu0 %965, %v949
    %v967 = vpop.permute.xlu0 %966
    %v968 = vlaneseq
    %v969 = vshrl.u32 %v968, 7
    %v970 = vadd.s32 %v969, 88
    %971 = vset.pattern.permute.xlu0 %v970
    %972 = vperm.xlu0 %971, %v949
    %v973 = vpop.permute.xlu0 %972
    %v974 = vsel %vm541, %v580, %v780
    %v975 = vsel %vm541, %v586, %v786
    %v976 = vsel %vm541, %v592, %v792
    %v977 = vsel %vm541, %v598, %v798
    %v978 = vsel %vm541, %v605, %v805
    %v979 = vsel %vm541, %v611, %v811
    %v980 = vsel %vm541, %v617, %v817
    %v981 = vsel %vm541, %v623, %v823
    %v982 = vsel %vm541, %v630, %v830
    %v983 = vsel %vm541, %v636, %v836
    %v984 = vsel %vm541, %v642, %v842
    %v985 = vsel %vm541, %v648, %v848
    %v986 = vsel %vm541, %v655, %v855
    %v987 = vsel %vm541, %v661, %v861
    %v988 = vsel %vm541, %v667, %v867
    %v989 = vsel %vm541, %v673, %v873
    %v990 = vsel %vm541, %v680, %v880
    %v991 = vsel %vm541, %v686, %v886
    %v992 = vsel %vm541, %v692, %v892
    %v993 = vsel %vm541, %v698, %v898
    %v994 = vsel %vm541, %v705, %v905
    %v995 = vsel %vm541, %v711, %v911
    %v996 = vsel %vm541, %v717, %v917
    %v997 = vsel %vm541, %v723, %v923
    %v998 = vsel %vm541, %v730, %v930
    %v999 = vsel %vm541, %v736, %v936
    %v1000 = vsel %vm541, %v742, %v942
    %v1001 = vsel %vm541, %v748, %v948
    %v1002 = vsel %vm541, %v755, %v955
    %v1003 = vsel %vm541, %v761, %v961
    %v1004 = vsel %vm541, %v767, %v967
    %v1005 = vsel %vm541, %v773, %v973
    %v1006 = vlaneseq
    %v1007 = vshrl.u32 %v1006, 7
    %v1008 = vadd.s32 %v1007, 32
    %1009 = vset.pattern.permute.xlu0 %v1008
    %1010 = vperm.xlu0 %1009, %v574
    %v1011 = vpop.permute.xlu0 %1010
    %v1012 = vlaneseq
    %v1013 = vshrl.u32 %v1012, 7
    %v1014 = vadd.s32 %v1013, 40
    %1015 = vset.pattern.permute.xlu0 %v1014
    %1016 = vperm.xlu0 %1015, %v574
    %v1017 = vpop.permute.xlu0 %1016
    %v1018 = vlaneseq
    %v1019 = vshrl.u32 %v1018, 7
    %v1020 = vadd.s32 %v1019, 48
    %1021 = vset.pattern.permute.xlu0 %v1020
    %1022 = vperm.xlu0 %1021, %v574
    %v1023 = vpop.permute.xlu0 %1022
    %v1024 = vlaneseq
    %v1025 = vshrl.u32 %v1024, 7
    %v1026 = vadd.s32 %v1025, 56
    %1027 = vset.pattern.permute.xlu0 %v1026
    %1028 = vperm.xlu0 %1027, %v574
    %v1029 = vpop.permute.xlu0 %1028
    %v1030 = vlaneseq
    %v1031 = vshrl.u32 %v1030, 7
    %v1032 = vadd.s32 %v1031, 32
    %1033 = vset.pattern.permute.xlu0 %v1032
    %1034 = vperm.xlu0 %1033, %v599
    %v1035 = vpop.permute.xlu0 %1034
    %v1036 = vlaneseq
    %v1037 = vshrl.u32 %v1036, 7
    %v1038 = vadd.s32 %v1037, 40
    %1039 = vset.pattern.permute.xlu0 %v1038
    %1040 = vperm.xlu0 %1039, %v599
    %v1041 = vpop.permute.xlu0 %1040
    %v1042 = vlaneseq
    %v1043 = vshrl.u32 %v1042, 7
    %v1044 = vadd.s32 %v1043, 48
    %1045 = vset.pattern.permute.xlu0 %v1044
    %1046 = vperm.xlu0 %1045, %v599
    %v1047 = vpop.permute.xlu0 %1046
    %v1048 = vlaneseq
    %v1049 = vshrl.u32 %v1048, 7
    %v1050 = vadd.s32 %v1049, 56
    %1051 = vset.pattern.permute.xlu0 %v1050
    %1052 = vperm.xlu0 %1051, %v599
    %v1053 = vpop.permute.xlu0 %1052
    %v1054 = vlaneseq
    %v1055 = vshrl.u32 %v1054, 7
    %v1056 = vadd.s32 %v1055, 32
    %1057 = vset.pattern.permute.xlu0 %v1056
    %1058 = vperm.xlu0 %1057, %v624
    %v1059 = vpop.permute.xlu0 %1058
    %v1060 = vlaneseq
    %v1061 = vshrl.u32 %v1060, 7
    %v1062 = vadd.s32 %v1061, 40
    %1063 = vset.pattern.permute.xlu0 %v1062
    %1064 = vperm.xlu0 %1063, %v624
    %v1065 = vpop.permute.xlu0 %1064
    %v1066 = vlaneseq
    %v1067 = vshrl.u32 %v1066, 7
    %v1068 = vadd.s32 %v1067, 48
    %1069 = vset.pattern.permute.xlu0 %v1068
    %1070 = vperm.xlu0 %1069, %v624
    %v1071 = vpop.permute.xlu0 %1070
    %v1072 = vlaneseq
    %v1073 = vshrl.u32 %v1072, 7
    %v1074 = vadd.s32 %v1073, 56
    %1075 = vset.pattern.permute.xlu0 %v1074
    %1076 = vperm.xlu0 %1075, %v624
    %v1077 = vpop.permute.xlu0 %1076
    %v1078 = vlaneseq
    %v1079 = vshrl.u32 %v1078, 7
    %v1080 = vadd.s32 %v1079, 32
    %1081 = vset.pattern.permute.xlu0 %v1080
    %1082 = vperm.xlu0 %1081, %v649
    %v1083 = vpop.permute.xlu0 %1082
    %v1084 = vlaneseq
    %v1085 = vshrl.u32 %v1084, 7
    %v1086 = vadd.s32 %v1085, 40
    %1087 = vset.pattern.permute.xlu0 %v1086
    %1088 = vperm.xlu0 %1087, %v649
    %v1089 = vpop.permute.xlu0 %1088
    %v1090 = vlaneseq
    %v1091 = vshrl.u32 %v1090, 7
    %v1092 = vadd.s32 %v1091, 48
    %1093 = vset.pattern.permute.xlu0 %v1092
    %1094 = vperm.xlu0 %1093, %v649
    %v1095 = vpop.permute.xlu0 %1094
    %v1096 = vlaneseq
    %v1097 = vshrl.u32 %v1096, 7
    %v1098 = vadd.s32 %v1097, 56
    %1099 = vset.pattern.permute.xlu0 %v1098
    %1100 = vperm.xlu0 %1099, %v649
    %v1101 = vpop.permute.xlu0 %1100
    %v1102 = vlaneseq
    %v1103 = vshrl.u32 %v1102, 7
    %v1104 = vadd.s32 %v1103, 32
    %1105 = vset.pattern.permute.xlu0 %v1104
    %1106 = vperm.xlu0 %1105, %v674
    %v1107 = vpop.permute.xlu0 %1106
    %v1108 = vlaneseq
    %v1109 = vshrl.u32 %v1108, 7
    %v1110 = vadd.s32 %v1109, 40
    %1111 = vset.pattern.permute.xlu0 %v1110
    %1112 = vperm.xlu0 %1111, %v674
    %v1113 = vpop.permute.xlu0 %1112
    %v1114 = vlaneseq
    %v1115 = vshrl.u32 %v1114, 7
    %v1116 = vadd.s32 %v1115, 48
    %1117 = vset.pattern.permute.xlu0 %v1116
    %1118 = vperm.xlu0 %1117, %v674
    %v1119 = vpop.permute.xlu0 %1118
    %v1120 = vlaneseq
    %v1121 = vshrl.u32 %v1120, 7
    %v1122 = vadd.s32 %v1121, 56
    %1123 = vset.pattern.permute.xlu0 %v1122
    %1124 = vperm.xlu0 %1123, %v674
    %v1125 = vpop.permute.xlu0 %1124
    %v1126 = vlaneseq
    %v1127 = vshrl.u32 %v1126, 7
    %v1128 = vadd.s32 %v1127, 32
    %1129 = vset.pattern.permute.xlu0 %v1128
    %1130 = vperm.xlu0 %1129, %v699
    %v1131 = vpop.permute.xlu0 %1130
    %v1132 = vlaneseq
    %v1133 = vshrl.u32 %v1132, 7
    %v1134 = vadd.s32 %v1133, 40
    %1135 = vset.pattern.permute.xlu0 %v1134
    %1136 = vperm.xlu0 %1135, %v699
    %v1137 = vpop.permute.xlu0 %1136
    %v1138 = vlaneseq
    %v1139 = vshrl.u32 %v1138, 7
    %v1140 = vadd.s32 %v1139, 48
    %1141 = vset.pattern.permute.xlu0 %v1140
    %1142 = vperm.xlu0 %1141, %v699
    %v1143 = vpop.permute.xlu0 %1142
    %v1144 = vlaneseq
    %v1145 = vshrl.u32 %v1144, 7
    %v1146 = vadd.s32 %v1145, 56
    %1147 = vset.pattern.permute.xlu0 %v1146
    %1148 = vperm.xlu0 %1147, %v699
    %v1149 = vpop.permute.xlu0 %1148
    %v1150 = vlaneseq
    %v1151 = vshrl.u32 %v1150, 7
    %v1152 = vadd.s32 %v1151, 32
    %1153 = vset.pattern.permute.xlu0 %v1152
    %1154 = vperm.xlu0 %1153, %v724
    %v1155 = vpop.permute.xlu0 %1154
    %v1156 = vlaneseq
    %v1157 = vshrl.u32 %v1156, 7
    %v1158 = vadd.s32 %v1157, 40
    %1159 = vset.pattern.permute.xlu0 %v1158
    %1160 = vperm.xlu0 %1159, %v724
    %v1161 = vpop.permute.xlu0 %1160
    %v1162 = vlaneseq
    %v1163 = vshrl.u32 %v1162, 7
    %v1164 = vadd.s32 %v1163, 48
    %1165 = vset.pattern.permute.xlu0 %v1164
    %1166 = vperm.xlu0 %1165, %v724
    %v1167 = vpop.permute.xlu0 %1166
    %v1168 = vlaneseq
    %v1169 = vshrl.u32 %v1168, 7
    %v1170 = vadd.s32 %v1169, 56
    %1171 = vset.pattern.permute.xlu0 %v1170
    %1172 = vperm.xlu0 %1171, %v724
    %v1173 = vpop.permute.xlu0 %1172
    %v1174 = vlaneseq
    %v1175 = vshrl.u32 %v1174, 7
    %v1176 = vadd.s32 %v1175, 32
    %1177 = vset.pattern.permute.xlu0 %v1176
    %1178 = vperm.xlu0 %1177, %v749
    %v1179 = vpop.permute.xlu0 %1178
    %v1180 = vlaneseq
    %v1181 = vshrl.u32 %v1180, 7
    %v1182 = vadd.s32 %v1181, 40
    %1183 = vset.pattern.permute.xlu0 %v1182
    %1184 = vperm.xlu0 %1183, %v749
    %v1185 = vpop.permute.xlu0 %1184
    %v1186 = vlaneseq
    %v1187 = vshrl.u32 %v1186, 7
    %v1188 = vadd.s32 %v1187, 48
    %1189 = vset.pattern.permute.xlu0 %v1188
    %1190 = vperm.xlu0 %1189, %v749
    %v1191 = vpop.permute.xlu0 %1190
    %v1192 = vlaneseq
    %v1193 = vshrl.u32 %v1192, 7
    %v1194 = vadd.s32 %v1193, 56
    %1195 = vset.pattern.permute.xlu0 %v1194
    %1196 = vperm.xlu0 %1195, %v749
    %v1197 = vpop.permute.xlu0 %1196
    %v1198 = vlaneseq
    %v1199 = vshrl.u32 %v1198, 7
    %v1200 = vadd.s32 %v1199, 32
    %1201 = vset.pattern.permute.xlu0 %v1200
    %1202 = vperm.xlu0 %1201, %v774
    %v1203 = vpop.permute.xlu0 %1202
    %v1204 = vlaneseq
    %v1205 = vshrl.u32 %v1204, 7
    %v1206 = vadd.s32 %v1205, 40
    %1207 = vset.pattern.permute.xlu0 %v1206
    %1208 = vperm.xlu0 %1207, %v774
    %v1209 = vpop.permute.xlu0 %1208
    %v1210 = vlaneseq
    %v1211 = vshrl.u32 %v1210, 7
    %v1212 = vadd.s32 %v1211, 48
    %1213 = vset.pattern.permute.xlu0 %v1212
    %1214 = vperm.xlu0 %1213, %v774
    %v1215 = vpop.permute.xlu0 %1214
    %v1216 = vlaneseq
    %v1217 = vshrl.u32 %v1216, 7
    %v1218 = vadd.s32 %v1217, 56
    %1219 = vset.pattern.permute.xlu0 %v1218
    %1220 = vperm.xlu0 %1219, %v774
    %v1221 = vpop.permute.xlu0 %1220
    %v1222 = vlaneseq
    %v1223 = vshrl.u32 %v1222, 7
    %v1224 = vadd.s32 %v1223, 32
    %1225 = vset.pattern.permute.xlu0 %v1224
    %1226 = vperm.xlu0 %1225, %v799
    %v1227 = vpop.permute.xlu0 %1226
    %v1228 = vlaneseq
    %v1229 = vshrl.u32 %v1228, 7
    %v1230 = vadd.s32 %v1229, 40
    %1231 = vset.pattern.permute.xlu0 %v1230
    %1232 = vperm.xlu0 %1231, %v799
    %v1233 = vpop.permute.xlu0 %1232
    %v1234 = vlaneseq
    %v1235 = vshrl.u32 %v1234, 7
    %v1236 = vadd.s32 %v1235, 48
    %1237 = vset.pattern.permute.xlu0 %v1236
    %1238 = vperm.xlu0 %1237, %v799
    %v1239 = vpop.permute.xlu0 %1238
    %v1240 = vlaneseq
    %v1241 = vshrl.u32 %v1240, 7
    %v1242 = vadd.s32 %v1241, 56
    %1243 = vset.pattern.permute.xlu0 %v1242
    %1244 = vperm.xlu0 %1243, %v799
    %v1245 = vpop.permute.xlu0 %1244
    %v1246 = vlaneseq
    %v1247 = vshrl.u32 %v1246, 7
    %v1248 = vadd.s32 %v1247, 32
    %1249 = vset.pattern.permute.xlu0 %v1248
    %1250 = vperm.xlu0 %1249, %v824
    %v1251 = vpop.permute.xlu0 %1250
    %v1252 = vlaneseq
    %v1253 = vshrl.u32 %v1252, 7
    %v1254 = vadd.s32 %v1253, 40
    %1255 = vset.pattern.permute.xlu0 %v1254
    %1256 = vperm.xlu0 %1255, %v824
    %v1257 = vpop.permute.xlu0 %1256
    %v1258 = vlaneseq
    %v1259 = vshrl.u32 %v1258, 7
    %v1260 = vadd.s32 %v1259, 48
    %1261 = vset.pattern.permute.xlu0 %v1260
    %1262 = vperm.xlu0 %1261, %v824
    %v1263 = vpop.permute.xlu0 %1262
    %v1264 = vlaneseq
    %v1265 = vshrl.u32 %v1264, 7
    %v1266 = vadd.s32 %v1265, 56
    %1267 = vset.pattern.permute.xlu0 %v1266
    %1268 = vperm.xlu0 %1267, %v824
    %v1269 = vpop.permute.xlu0 %1268
    %v1270 = vlaneseq
    %v1271 = vshrl.u32 %v1270, 7
    %v1272 = vadd.s32 %v1271, 32
    %1273 = vset.pattern.permute.xlu0 %v1272
    %1274 = vperm.xlu0 %1273, %v849
    %v1275 = vpop.permute.xlu0 %1274
    %v1276 = vlaneseq
    %v1277 = vshrl.u32 %v1276, 7
    %v1278 = vadd.s32 %v1277, 40
    %1279 = vset.pattern.permute.xlu0 %v1278
    %1280 = vperm.xlu0 %1279, %v849
    %v1281 = vpop.permute.xlu0 %1280
    %v1282 = vlaneseq
    %v1283 = vshrl.u32 %v1282, 7
    %v1284 = vadd.s32 %v1283, 48
    %1285 = vset.pattern.permute.xlu0 %v1284
    %1286 = vperm.xlu0 %1285, %v849
    %v1287 = vpop.permute.xlu0 %1286
    %v1288 = vlaneseq
    %v1289 = vshrl.u32 %v1288, 7
    %v1290 = vadd.s32 %v1289, 56
    %1291 = vset.pattern.permute.xlu0 %v1290
    %1292 = vperm.xlu0 %1291, %v849
    %v1293 = vpop.permute.xlu0 %1292
    %v1294 = vlaneseq
    %v1295 = vshrl.u32 %v1294, 7
    %v1296 = vadd.s32 %v1295, 32
    %1297 = vset.pattern.permute.xlu0 %v1296
    %1298 = vperm.xlu0 %1297, %v874
    %v1299 = vpop.permute.xlu0 %1298
    %v1300 = vlaneseq
    %v1301 = vshrl.u32 %v1300, 7
    %v1302 = vadd.s32 %v1301, 40
    %1303 = vset.pattern.permute.xlu0 %v1302
    %1304 = vperm.xlu0 %1303, %v874
    %v1305 = vpop.permute.xlu0 %1304
    %v1306 = vlaneseq
    %v1307 = vshrl.u32 %v1306, 7
    %v1308 = vadd.s32 %v1307, 48
    %1309 = vset.pattern.permute.xlu0 %v1308
    %1310 = vperm.xlu0 %1309, %v874
    %v1311 = vpop.permute.xlu0 %1310
    %v1312 = vlaneseq
    %v1313 = vshrl.u32 %v1312, 7
    %v1314 = vadd.s32 %v1313, 56
    %1315 = vset.pattern.permute.xlu0 %v1314
    %1316 = vperm.xlu0 %1315, %v874
    %v1317 = vpop.permute.xlu0 %1316
    %v1318 = vlaneseq
    %v1319 = vshrl.u32 %v1318, 7
    %v1320 = vadd.s32 %v1319, 32
    %1321 = vset.pattern.permute.xlu0 %v1320
    %1322 = vperm.xlu0 %1321, %v899
    %v1323 = vpop.permute.xlu0 %1322
    %v1324 = vlaneseq
    %v1325 = vshrl.u32 %v1324, 7
    %v1326 = vadd.s32 %v1325, 40
    %1327 = vset.pattern.permute.xlu0 %v1326
    %1328 = vperm.xlu0 %1327, %v899
    %v1329 = vpop.permute.xlu0 %1328
    %v1330 = vlaneseq
    %v1331 = vshrl.u32 %v1330, 7
    %v1332 = vadd.s32 %v1331, 48
    %1333 = vset.pattern.permute.xlu0 %v1332
    %1334 = vperm.xlu0 %1333, %v899
    %v1335 = vpop.permute.xlu0 %1334
    %v1336 = vlaneseq
    %v1337 = vshrl.u32 %v1336, 7
    %v1338 = vadd.s32 %v1337, 56
    %1339 = vset.pattern.permute.xlu0 %v1338
    %1340 = vperm.xlu0 %1339, %v899
    %v1341 = vpop.permute.xlu0 %1340
    %v1342 = vlaneseq
    %v1343 = vshrl.u32 %v1342, 7
    %v1344 = vadd.s32 %v1343, 32
    %1345 = vset.pattern.permute.xlu0 %v1344
    %1346 = vperm.xlu0 %1345, %v924
    %v1347 = vpop.permute.xlu0 %1346
    %v1348 = vlaneseq
    %v1349 = vshrl.u32 %v1348, 7
    %v1350 = vadd.s32 %v1349, 40
    %1351 = vset.pattern.permute.xlu0 %v1350
    %1352 = vperm.xlu0 %1351, %v924
    %v1353 = vpop.permute.xlu0 %1352
    %v1354 = vlaneseq
    %v1355 = vshrl.u32 %v1354, 7
    %v1356 = vadd.s32 %v1355, 48
    %1357 = vset.pattern.permute.xlu0 %v1356
    %1358 = vperm.xlu0 %1357, %v924
    %v1359 = vpop.permute.xlu0 %1358
    %v1360 = vlaneseq
    %v1361 = vshrl.u32 %v1360, 7
    %v1362 = vadd.s32 %v1361, 56
    %1363 = vset.pattern.permute.xlu0 %v1362
    %1364 = vperm.xlu0 %1363, %v924
    %v1365 = vpop.permute.xlu0 %1364
    %v1366 = vlaneseq
    %v1367 = vshrl.u32 %v1366, 7
    %v1368 = vadd.s32 %v1367, 32
    %1369 = vset.pattern.permute.xlu0 %v1368
    %1370 = vperm.xlu0 %1369, %v949
    %v1371 = vpop.permute.xlu0 %1370
    %v1372 = vlaneseq
    %v1373 = vshrl.u32 %v1372, 7
    %v1374 = vadd.s32 %v1373, 40
    %1375 = vset.pattern.permute.xlu0 %v1374
    %1376 = vperm.xlu0 %1375, %v949
    %v1377 = vpop.permute.xlu0 %1376
    %v1378 = vlaneseq
    %v1379 = vshrl.u32 %v1378, 7
    %v1380 = vadd.s32 %v1379, 48
    %1381 = vset.pattern.permute.xlu0 %v1380
    %1382 = vperm.xlu0 %1381, %v949
    %v1383 = vpop.permute.xlu0 %1382
    %v1384 = vlaneseq
    %v1385 = vshrl.u32 %v1384, 7
    %v1386 = vadd.s32 %v1385, 56
    %1387 = vset.pattern.permute.xlu0 %v1386
    %1388 = vperm.xlu0 %1387, %v949
    %v1389 = vpop.permute.xlu0 %1388
    %v1390 = vsel %vm541, %v1011, %v1203
    %v1391 = vsel %vm541, %v1017, %v1209
    %v1392 = vsel %vm541, %v1023, %v1215
    %v1393 = vsel %vm541, %v1029, %v1221
    %v1394 = vsel %vm541, %v1035, %v1227
    %v1395 = vsel %vm541, %v1041, %v1233
    %v1396 = vsel %vm541, %v1047, %v1239
    %v1397 = vsel %vm541, %v1053, %v1245
    %v1398 = vsel %vm541, %v1059, %v1251
    %v1399 = vsel %vm541, %v1065, %v1257
    %v1400 = vsel %vm541, %v1071, %v1263
    %v1401 = vsel %vm541, %v1077, %v1269
    %v1402 = vsel %vm541, %v1083, %v1275
    %v1403 = vsel %vm541, %v1089, %v1281
    %v1404 = vsel %vm541, %v1095, %v1287
    %v1405 = vsel %vm541, %v1101, %v1293
    %v1406 = vsel %vm541, %v1107, %v1299
    %v1407 = vsel %vm541, %v1113, %v1305
    %v1408 = vsel %vm541, %v1119, %v1311
    %v1409 = vsel %vm541, %v1125, %v1317
    %v1410 = vsel %vm541, %v1131, %v1323
    %v1411 = vsel %vm541, %v1137, %v1329
    %v1412 = vsel %vm541, %v1143, %v1335
    %v1413 = vsel %vm541, %v1149, %v1341
    %v1414 = vsel %vm541, %v1155, %v1347
    %v1415 = vsel %vm541, %v1161, %v1353
    %v1416 = vsel %vm541, %v1167, %v1359
    %v1417 = vsel %vm541, %v1173, %v1365
    %v1418 = vsel %vm541, %v1179, %v1371
    %v1419 = vsel %vm541, %v1185, %v1377
    %v1420 = vsel %vm541, %v1191, %v1383
    %v1421 = vsel %vm541, %v1197, %v1389
    %1423 = vrot.lane.b32.xlu0 %v98, 32
    %v1424 = vpop.permute.xlu0 %1423
    %1427 = vrot.lane.b32.xlu0 %v101, 64
    %v1428 = vpop.permute.xlu0 %1427
    %v1430 = vsel %vm541, %v1424, %v1428
    %v1432 = vrot.slane %v1430, 1
    %v1433 = vrot.slane %v1430, 2
    %v1434 = vrot.slane %v1430, 3
    %v1435 = vrot.slane %v1430, 4
    %v1436 = vrot.slane %v1430, 5
    %v1437 = vrot.slane %v1430, 6
    %v1438 = vrot.slane %v1430, 7
    %v1439 = vperm.slane %v1430, 0
    %v1440 = vperm.slane %v1432, 0
    %v1441 = vperm.slane %v1433, 0
    %v1442 = vperm.slane %v1434, 0
    %v1443 = vperm.slane %v1435, 0
    %v1444 = vperm.slane %v1436, 0
    %v1445 = vperm.slane %v1437, 0
    %v1446 = vperm.slane %v1438, 0
    %v1455 = vmul.f32 %v1390, %v1439
    %v1456 = vmul.f32 %v1391, %v1439
    %v1457 = vmul.f32 %v1392, %v1439
    %v1458 = vmul.f32 %v1393, %v1439
    %v1459 = vmul.f32 %v1394, %v1440
    %v1460 = vmul.f32 %v1395, %v1440
    %v1461 = vmul.f32 %v1396, %v1440
    %v1462 = vmul.f32 %v1397, %v1440
    %v1463 = vmul.f32 %v1398, %v1441
    %v1464 = vmul.f32 %v1399, %v1441
    %v1465 = vmul.f32 %v1400, %v1441
    %v1466 = vmul.f32 %v1401, %v1441
    %v1467 = vmul.f32 %v1402, %v1442
    %v1468 = vmul.f32 %v1403, %v1442
    %v1469 = vmul.f32 %v1404, %v1442
    %v1470 = vmul.f32 %v1405, %v1442
    %v1471 = vmul.f32 %v1406, %v1443
    %v1472 = vmul.f32 %v1407, %v1443
    %v1473 = vmul.f32 %v1408, %v1443
    %v1474 = vmul.f32 %v1409, %v1443
    %v1475 = vmul.f32 %v1410, %v1444
    %v1476 = vmul.f32 %v1411, %v1444
    %v1477 = vmul.f32 %v1412, %v1444
    %v1478 = vmul.f32 %v1413, %v1444
    %v1479 = vmul.f32 %v1414, %v1445
    %v1480 = vmul.f32 %v1415, %v1445
    %v1481 = vmul.f32 %v1416, %v1445
    %v1482 = vmul.f32 %v1417, %v1445
    %v1483 = vmul.f32 %v1418, %v1446
    %v1484 = vmul.f32 %v1419, %v1446
    %v1485 = vmul.f32 %v1420, %v1446
    %v1486 = vmul.f32 %v1421, %v1446
    %v1487 = vmul.f32 %v974, 0.0
    %v1488 = vmul.f32 %v975, 0.0
    %v1489 = vmul.f32 %v976, 0.0
    %v1490 = vmul.f32 %v977, 0.0
    %v1491 = vadd.f32 %v1487, %v1455
    %v1492 = vadd.f32 %v1488, %v1456
    %v1493 = vadd.f32 %v1489, %v1457
    %v1494 = vadd.f32 %v1490, %v1458
    %v1495 = vmul.f32 %v542, %v1491
    %v1496 = vmul.f32 %v543, %v1492
    %v1497 = vmul.f32 %v544, %v1493
    %v1498 = vmul.f32 %v545, %v1494
    %v1499 = vsel %vm73, %v1495, 0.0
    %v1500 = vsel %vm73, %v1496, 0.0
    %v1501 = vadd.f32 %v1499, %v1500
    %v1502 = vsel %vm73, %v1497, 0.0
    %v1503 = vadd.f32 %v1501, %v1502
    %v1504 = vsel %vm73, %v1498, 0.0
    %v1505 = vadd.f32 %v1503, %v1504
    %v1506 = vrot.slane %v1505, 4
    %v1507 = vadd.f32 %v1505, %v1506
    %v1508 = vrot.slane %v1507, 2
    %v1509 = vadd.f32 %v1507, %v1508
    %v1510 = vrot.slane %v1509, 1
    %v1511 = vadd.f32 %v1509, %v1510
    %v1512 = vmul.f32 %v1491, %v978
    %v1513 = vmul.f32 %v1492, %v979
    %v1514 = vmul.f32 %v1493, %v980
    %v1515 = vmul.f32 %v1494, %v981
    %v1516 = vadd.f32 %v1512, %v1459
    %v1517 = vadd.f32 %v1513, %v1460
    %v1518 = vadd.f32 %v1514, %v1461
    %v1519 = vadd.f32 %v1515, %v1462
    %v1520 = vmul.f32 %v546, %v1516
    %v1521 = vmul.f32 %v547, %v1517
    %v1522 = vmul.f32 %v548, %v1518
    %v1523 = vmul.f32 %v549, %v1519
    %v1524 = vsel %vm73, %v1520, 0.0
    %v1525 = vsel %vm73, %v1521, 0.0
    %v1526 = vadd.f32 %v1524, %v1525
    %v1527 = vsel %vm73, %v1522, 0.0
    %v1528 = vadd.f32 %v1526, %v1527
    %v1529 = vsel %vm73, %v1523, 0.0
    %v1530 = vadd.f32 %v1528, %v1529
    %v1531 = vrot.slane %v1530, 4
    %v1532 = vadd.f32 %v1530, %v1531
    %v1533 = vrot.slane %v1532, 2
    %v1534 = vadd.f32 %v1532, %v1533
    %v1535 = vrot.slane %v1534, 1
    %v1536 = vadd.f32 %v1534, %v1535
    %v1537 = vmul.f32 %v1516, %v982
    %v1538 = vmul.f32 %v1517, %v983
    %v1539 = vmul.f32 %v1518, %v984
    %v1540 = vmul.f32 %v1519, %v985
    %v1541 = vadd.f32 %v1537, %v1463
    %v1542 = vadd.f32 %v1538, %v1464
    %v1543 = vadd.f32 %v1539, %v1465
    %v1544 = vadd.f32 %v1540, %v1466
    %v1545 = vmul.f32 %v550, %v1541
    %v1546 = vmul.f32 %v551, %v1542
    %v1547 = vmul.f32 %v552, %v1543
    %v1548 = vmul.f32 %v553, %v1544
    %v1549 = vsel %vm73, %v1545, 0.0
    %v1550 = vsel %vm73, %v1546, 0.0
    %v1551 = vadd.f32 %v1549, %v1550
    %v1552 = vsel %vm73, %v1547, 0.0
    %v1553 = vadd.f32 %v1551, %v1552
    %v1554 = vsel %vm73, %v1548, 0.0
    %v1555 = vadd.f32 %v1553, %v1554
    %v1556 = vrot.slane %v1555, 4
    %v1557 = vadd.f32 %v1555, %v1556
    %v1558 = vrot.slane %v1557, 2
    %v1559 = vadd.f32 %v1557, %v1558
    %v1560 = vrot.slane %v1559, 1
    %v1561 = vadd.f32 %v1559, %v1560
    %v1562 = vmul.f32 %v1541, %v986
    %v1563 = vmul.f32 %v1542, %v987
    %v1564 = vmul.f32 %v1543, %v988
    %v1565 = vmul.f32 %v1544, %v989
    %v1566 = vadd.f32 %v1562, %v1467
    %v1567 = vadd.f32 %v1563, %v1468
    %v1568 = vadd.f32 %v1564, %v1469
    %v1569 = vadd.f32 %v1565, %v1470
    %v1570 = vmul.f32 %v554, %v1566
    %v1571 = vmul.f32 %v555, %v1567
    %v1572 = vmul.f32 %v556, %v1568
    %v1573 = vmul.f32 %v557, %v1569
    %v1574 = vsel %vm73, %v1570, 0.0
    %v1575 = vsel %vm73, %v1571, 0.0
    %v1576 = vadd.f32 %v1574, %v1575
    %v1577 = vsel %vm73, %v1572, 0.0
    %v1578 = vadd.f32 %v1576, %v1577
    %v1579 = vsel %vm73, %v1573, 0.0
    %v1580 = vadd.f32 %v1578, %v1579
    %v1581 = vrot.slane %v1580, 4
    %v1582 = vadd.f32 %v1580, %v1581
    %v1583 = vrot.slane %v1582, 2
    %v1584 = vadd.f32 %v1582, %v1583
    %v1585 = vrot.slane %v1584, 1
    %v1586 = vadd.f32 %v1584, %v1585
    %v1587 = vmul.f32 %v1566, %v990
    %v1588 = vmul.f32 %v1567, %v991
    %v1589 = vmul.f32 %v1568, %v992
    %v1590 = vmul.f32 %v1569, %v993
    %v1591 = vadd.f32 %v1587, %v1471
    %v1592 = vadd.f32 %v1588, %v1472
    %v1593 = vadd.f32 %v1589, %v1473
    %v1594 = vadd.f32 %v1590, %v1474
    %v1595 = vmul.f32 %v558, %v1591
    %v1596 = vmul.f32 %v559, %v1592
    %v1597 = vmul.f32 %v560, %v1593
    %v1598 = vmul.f32 %v561, %v1594
    %v1599 = vsel %vm73, %v1595, 0.0
    %v1600 = vsel %vm73, %v1596, 0.0
    %v1601 = vadd.f32 %v1599, %v1600
    %v1602 = vsel %vm73, %v1597, 0.0
    %v1603 = vadd.f32 %v1601, %v1602
    %v1604 = vsel %vm73, %v1598, 0.0
    %v1605 = vadd.f32 %v1603, %v1604
    %v1606 = vrot.slane %v1605, 4
    %v1607 = vadd.f32 %v1605, %v1606
    %v1608 = vrot.slane %v1607, 2
    %v1609 = vadd.f32 %v1607, %v1608
    %v1610 = vrot.slane %v1609, 1
    %v1611 = vadd.f32 %v1609, %v1610
    %v1612 = vmul.f32 %v1591, %v994
    %v1613 = vmul.f32 %v1592, %v995
    %v1614 = vmul.f32 %v1593, %v996
    %v1615 = vmul.f32 %v1594, %v997
    %v1616 = vadd.f32 %v1612, %v1475
    %v1617 = vadd.f32 %v1613, %v1476
    %v1618 = vadd.f32 %v1614, %v1477
    %v1619 = vadd.f32 %v1615, %v1478
    %v1620 = vmul.f32 %v562, %v1616
    %v1621 = vmul.f32 %v563, %v1617
    %v1622 = vmul.f32 %v564, %v1618
    %v1623 = vmul.f32 %v565, %v1619
    %v1624 = vsel %vm73, %v1620, 0.0
    %v1625 = vsel %vm73, %v1621, 0.0
    %v1626 = vadd.f32 %v1624, %v1625
    %v1627 = vsel %vm73, %v1622, 0.0
    %v1628 = vadd.f32 %v1626, %v1627
    %v1629 = vsel %vm73, %v1623, 0.0
    %v1630 = vadd.f32 %v1628, %v1629
    %v1631 = vrot.slane %v1630, 4
    %v1632 = vadd.f32 %v1630, %v1631
    %v1633 = vrot.slane %v1632, 2
    %v1634 = vadd.f32 %v1632, %v1633
    %v1635 = vrot.slane %v1634, 1
    %v1636 = vadd.f32 %v1634, %v1635
    %v1637 = vmul.f32 %v1616, %v998
    %v1638 = vmul.f32 %v1617, %v999
    %v1639 = vmul.f32 %v1618, %v1000
    %v1640 = vmul.f32 %v1619, %v1001
    %v1641 = vadd.f32 %v1637, %v1479
    %v1642 = vadd.f32 %v1638, %v1480
    %v1643 = vadd.f32 %v1639, %v1481
    %v1644 = vadd.f32 %v1640, %v1482
    %v1645 = vmul.f32 %v566, %v1641
    %v1646 = vmul.f32 %v567, %v1642
    %v1647 = vmul.f32 %v568, %v1643
    %v1648 = vmul.f32 %v569, %v1644
    %v1649 = vsel %vm73, %v1645, 0.0
    %v1650 = vsel %vm73, %v1646, 0.0
    %v1651 = vadd.f32 %v1649, %v1650
    %v1652 = vsel %vm73, %v1647, 0.0
    %v1653 = vadd.f32 %v1651, %v1652
    %v1654 = vsel %vm73, %v1648, 0.0
    %v1655 = vadd.f32 %v1653, %v1654
    %v1656 = vrot.slane %v1655, 4
    %v1657 = vadd.f32 %v1655, %v1656
    %v1658 = vrot.slane %v1657, 2
    %v1659 = vadd.f32 %v1657, %v1658
    %v1660 = vrot.slane %v1659, 1
    %v1661 = vadd.f32 %v1659, %v1660
    %v1662 = vmul.f32 %v1641, %v1002
    %v1663 = vmul.f32 %v1642, %v1003
    %v1664 = vmul.f32 %v1643, %v1004
    %v1665 = vmul.f32 %v1644, %v1005
    %v1666 = vadd.f32 %v1662, %v1483
    %v1667 = vadd.f32 %v1663, %v1484
    %v1668 = vadd.f32 %v1664, %v1485
    %v1669 = vadd.f32 %v1665, %v1486
    %v1670 = vmul.f32 %v570, %v1666
    %v1671 = vmul.f32 %v571, %v1667
    %v1672 = vmul.f32 %v572, %v1668
    %v1673 = vmul.f32 %v573, %v1669
    %v1674 = vsel %vm73, %v1670, 0.0
    %v1675 = vsel %vm73, %v1671, 0.0
    %v1676 = vadd.f32 %v1674, %v1675
    %v1677 = vsel %vm73, %v1672, 0.0
    %v1678 = vadd.f32 %v1676, %v1677
    %v1679 = vsel %vm73, %v1673, 0.0
    %v1680 = vadd.f32 %v1678, %v1679
    %v1681 = vrot.slane %v1680, 4
    %v1682 = vadd.f32 %v1680, %v1681
    %v1683 = vrot.slane %v1682, 2
    %v1684 = vadd.f32 %v1682, %v1683
    %v1685 = vrot.slane %v1684, 1
    %v1686 = vadd.f32 %v1684, %v1685
    %vm1687 = vcmask 1040384
    %v1688 = vsel %vm1687, %v1511, %v1536
    %vm1689 = vcmask 1041408
    %v1690 = vsel %vm1689, %v1688, %v1561
    %vm1691 = vcmask 1042432
    %v1692 = vsel %vm1691, %v1690, %v1586
    %vm1693 = vcmask 1043456
    %v1694 = vsel %vm1693, %v1692, %v1611
    %vm1695 = vcmask 1044480
    %v1696 = vsel %vm1695, %v1694, %v1636
    %vm1697 = vcmask 1045504
    %v1698 = vsel %vm1697, %v1696, %v1661
    %vm1699 = vcmask 1046528
    %v1700 = vsel %vm1699, %v1698, %v1686
    %1702 = vrot.lane.b32.xlu0 %v1700, 96
    %v1703 = vpop.permute.xlu0 %1702
    %v1704 = vld [vmem:[#allocation5 + $0x40] sm:$0xff]
    %v1705 = vld [vmem:[#allocation5 + $0x48] sm:$0xff]
    %v1706 = vld [vmem:[#allocation5 + $0x50] sm:$0xff]
    %v1707 = vld [vmem:[#allocation5 + $0x58] sm:$0xff]
    %v1708 = vld [vmem:[#allocation5 + $0x60] sm:$0x1]
    %v1709 = vperm.slane %v1708, 0
    %v1710 = vsel %vm541, %v1700, 0
    %v1712 = vsel %vm541, %v1703, 0
    %1714 = vmatpush.msra.mxu0 0.0
    %1715 = vmatpush.msra.mxu0 0.0
    %1716 = vmatpush.msra.mxu0 0.0
    %1717 = vmatpush.msra.mxu0 0.0
    %1718 = vmatpush.msra.mxu0 0.0
    %1719 = vmatpush.msra.mxu0 0.0
    %1720 = vmatpush.msra.mxu0 0.0
    %1721 = vmatpush.msra.mxu0 0.0
    %1722 = vmatpush.msra.mxu0 0.0
    %1723 = vmatpush.msra.mxu0 0.0
    %1724 = vmatpush.msra.mxu0 0.0
    %1725 = vmatpush.msra.mxu0 0.0
    %1726 = vmatpush.msra.mxu0 %v1707
    %1727 = vmatpush.msra.mxu0 %v1706
    %1728 = vmatpush.msra.mxu0 %v1705
    %1729 = vmatpush.msra.mxu0 %v1704
    %1730 = vmatmul.f32.gmra.mxu0 %v1710
    %v1731 = vpop.f32.mrf.mxu0
    %v1732 = vadd.f32 %v1709, %v1731
    %1733 = vmatmul.f32.gmra.mxu0 %v1712
    %v1734 = vpop.f32.mrf.mxu0
    %v1735 = vadd.f32 %v1709, %v1734
    %1736 = vdwg.mxu0
    %v1737 = vxor.u32 %v1732, 2147483648
    %v1738 = vxor.u32 %v1735, 2147483648
    %v1739 = vmul.f32 %v1737, 1.442695
    %v1740 = vpow.pop %v1739
    %v1741 = vmul.f32 %v1738, 1.442695
    %v1742 = vpow.pop %v1741
    %v1743 = vadd.f32 %v1740, 1.0
    %v1744 = vadd.f32 %v1742, 1.0
    %v1745 = vrcp.pop %v1743
    %v1746 = vmul.f32 %v1743, %v1745
    %v1747 = vsub.f32 1.0, %v1746
    %v1748 = vmul.f32 %v1745, %v1747
    %v1749 = vadd.f32 %v1745, %v1748
    %vm1750 = vweird.f32 %v1743
    %vm1751 = vweird.f32 %v1745
    %vm1752 = vmor %vm1750, %vm1751
    %v1753 = vsel %vm1752, %v1745, %v1749
    %v1754 = vand.u32 2147483647, %v1743
    %vm1755 = vcmp.eq.f32.partialorder %v1754, 8.507059e+37
    %v1756 = vand.u32 %v1743, 2147483648
    %v1757 = vor.u32 1.1754944e-38, %v1756
    %v1758 = vsel %vm1755, %v1757, %v1753
    %v1759 = vmul.f32 1.0, %v1758
    %v1760 = vrcp.pop %v1744
    %v1761 = vmul.f32 %v1744, %v1760
    %v1762 = vsub.f32 1.0, %v1761
    %v1763 = vmul.f32 %v1760, %v1762
    %v1764 = vadd.f32 %v1760, %v1763
    %vm1765 = vweird.f32 %v1744
    %vm1766 = vweird.f32 %v1760
    %vm1767 = vmor %vm1765, %vm1766
    %v1768 = vsel %vm1767, %v1760, %v1764
    %v1769 = vand.u32 2147483647, %v1744
    %vm1770 = vcmp.eq.f32.partialorder %v1769, 8.507059e+37
    %v1771 = vand.u32 %v1744, 2147483648
    %v1772 = vor.u32 1.1754944e-38, %v1771
    %v1773 = vsel %vm1770, %v1772, %v1768
    %v1774 = vmul.f32 1.0, %v1773
    %v1775 = vperm.slane %v1732, 0
    %v1776 = vlaneseq
    %v1777 = vshrl.u32 %v1776, 7
    %1779 = vset.pattern.permute.xlu0 %v1777
    %1780 = vperm.xlu0 %1779, %v1775
    %v1781 = vpop.permute.xlu0 %1780
    %v1782 = vlaneseq
    %v1783 = vshrl.u32 %v1782, 7
    %v1784 = vadd.s32 %v1783, 8
    %1785 = vset.pattern.permute.xlu0 %v1784
    %1786 = vperm.xlu0 %1785, %v1775
    %v1787 = vpop.permute.xlu0 %1786
    %v1788 = vlaneseq
    %v1789 = vshrl.u32 %v1788, 7
    %v1790 = vadd.s32 %v1789, 16
    %1791 = vset.pattern.permute.xlu0 %v1790
    %1792 = vperm.xlu0 %1791, %v1775
    %v1793 = vpop.permute.xlu0 %1792
    %v1794 = vlaneseq
    %v1795 = vshrl.u32 %v1794, 7
    %v1796 = vadd.s32 %v1795, 24
    %1797 = vset.pattern.permute.xlu0 %v1796
    %1798 = vperm.xlu0 %1797, %v1775
    %v1799 = vpop.permute.xlu0 %1798
    %v1800 = vperm.slane %v1732, 1
    %v1801 = vlaneseq
    %v1802 = vshrl.u32 %v1801, 7
    %1804 = vset.pattern.permute.xlu0 %v1802
    %1805 = vperm.xlu0 %1804, %v1800
    %v1806 = vpop.permute.xlu0 %1805
    %v1807 = vlaneseq
    %v1808 = vshrl.u32 %v1807, 7
    %v1809 = vadd.s32 %v1808, 8
    %1810 = vset.pattern.permute.xlu0 %v1809
    %1811 = vperm.xlu0 %1810, %v1800
    %v1812 = vpop.permute.xlu0 %1811
    %v1813 = vlaneseq
    %v1814 = vshrl.u32 %v1813, 7
    %v1815 = vadd.s32 %v1814, 16
    %1816 = vset.pattern.permute.xlu0 %v1815
    %1817 = vperm.xlu0 %1816, %v1800
    %v1818 = vpop.permute.xlu0 %1817
    %v1819 = vlaneseq
    %v1820 = vshrl.u32 %v1819, 7
    %v1821 = vadd.s32 %v1820, 24
    %1822 = vset.pattern.permute.xlu0 %v1821
    %1823 = vperm.xlu0 %1822, %v1800
    %v1824 = vpop.permute.xlu0 %1823
    %v1825 = vperm.slane %v1732, 2
    %v1826 = vlaneseq
    %v1827 = vshrl.u32 %v1826, 7
    %1829 = vset.pattern.permute.xlu0 %v1827
    %1830 = vperm.xlu0 %1829, %v1825
    %v1831 = vpop.permute.xlu0 %1830
    %v1832 = vlaneseq
    %v1833 = vshrl.u32 %v1832, 7
    %v1834 = vadd.s32 %v1833, 8
    %1835 = vset.pattern.permute.xlu0 %v1834
    %1836 = vperm.xlu0 %1835, %v1825
    %v1837 = vpop.permute.xlu0 %1836
    %v1838 = vlaneseq
    %v1839 = vshrl.u32 %v1838, 7
    %v1840 = vadd.s32 %v1839, 16
    %1841 = vset.pattern.permute.xlu0 %v1840
    %1842 = vperm.xlu0 %1841, %v1825
    %v1843 = vpop.permute.xlu0 %1842
    %v1844 = vlaneseq
    %v1845 = vshrl.u32 %v1844, 7
    %v1846 = vadd.s32 %v1845, 24
    %1847 = vset.pattern.permute.xlu0 %v1846
    %1848 = vperm.xlu0 %1847, %v1825
    %v1849 = vpop.permute.xlu0 %1848
    %v1850 = vperm.slane %v1732, 3
    %v1851 = vlaneseq
    %v1852 = vshrl.u32 %v1851, 7
    %1854 = vset.pattern.permute.xlu0 %v1852
    %1855 = vperm.xlu0 %1854, %v1850
    %v1856 = vpop.permute.xlu0 %1855
    %v1857 = vlaneseq
    %v1858 = vshrl.u32 %v1857, 7
    %v1859 = vadd.s32 %v1858, 8
    %1860 = vset.pattern.permute.xlu0 %v1859
    %1861 = vperm.xlu0 %1860, %v1850
    %v1862 = vpop.permute.xlu0 %1861
    %v1863 = vlaneseq
    %v1864 = vshrl.u32 %v1863, 7
    %v1865 = vadd.s32 %v1864, 16
    %1866 = vset.pattern.permute.xlu0 %v1865
    %1867 = vperm.xlu0 %1866, %v1850
    %v1868 = vpop.permute.xlu0 %1867
    %v1869 = vlaneseq
    %v1870 = vshrl.u32 %v1869, 7
    %v1871 = vadd.s32 %v1870, 24
    %1872 = vset.pattern.permute.xlu0 %v1871
    %1873 = vperm.xlu0 %1872, %v1850
    %v1874 = vpop.permute.xlu0 %1873
    %v1875 = vperm.slane %v1732, 4
    %v1876 = vlaneseq
    %v1877 = vshrl.u32 %v1876, 7
    %1879 = vset.pattern.permute.xlu0 %v1877
    %1880 = vperm.xlu0 %1879, %v1875
    %v1881 = vpop.permute.xlu0 %1880
    %v1882 = vlaneseq
    %v1883 = vshrl.u32 %v1882, 7
    %v1884 = vadd.s32 %v1883, 8
    %1885 = vset.pattern.permute.xlu0 %v1884
    %1886 = vperm.xlu0 %1885, %v1875
    %v1887 = vpop.permute.xlu0 %1886
    %v1888 = vlaneseq
    %v1889 = vshrl.u32 %v1888, 7
    %v1890 = vadd.s32 %v1889, 16
    %1891 = vset.pattern.permute.xlu0 %v1890
    %1892 = vperm.xlu0 %1891, %v1875
    %v1893 = vpop.permute.xlu0 %1892
    %v1894 = vlaneseq
    %v1895 = vshrl.u32 %v1894, 7
    %v1896 = vadd.s32 %v1895, 24
    %1897 = vset.pattern.permute.xlu0 %v1896
    %1898 = vperm.xlu0 %1897, %v1875
    %v1899 = vpop.permute.xlu0 %1898
    %v1900 = vperm.slane %v1732, 5
    %v1901 = vlaneseq
    %v1902 = vshrl.u32 %v1901, 7
    %1904 = vset.pattern.permute.xlu0 %v1902
    %1905 = vperm.xlu0 %1904, %v1900
    %v1906 = vpop.permute.xlu0 %1905
    %v1907 = vlaneseq
    %v1908 = vshrl.u32 %v1907, 7
    %v1909 = vadd.s32 %v1908, 8
    %1910 = vset.pattern.permute.xlu0 %v1909
    %1911 = vperm.xlu0 %1910, %v1900
    %v1912 = vpop.permute.xlu0 %1911
    %v1913 = vlaneseq
    %v1914 = vshrl.u32 %v1913, 7
    %v1915 = vadd.s32 %v1914, 16
    %1916 = vset.pattern.permute.xlu0 %v1915
    %1917 = vperm.xlu0 %1916, %v1900
    %v1918 = vpop.permute.xlu0 %1917
    %v1919 = vlaneseq
    %v1920 = vshrl.u32 %v1919, 7
    %v1921 = vadd.s32 %v1920, 24
    %1922 = vset.pattern.permute.xlu0 %v1921
    %1923 = vperm.xlu0 %1922, %v1900
    %v1924 = vpop.permute.xlu0 %1923
    %v1925 = vperm.slane %v1732, 6
    %v1926 = vlaneseq
    %v1927 = vshrl.u32 %v1926, 7
    %1929 = vset.pattern.permute.xlu0 %v1927
    %1930 = vperm.xlu0 %1929, %v1925
    %v1931 = vpop.permute.xlu0 %1930
    %v1932 = vlaneseq
    %v1933 = vshrl.u32 %v1932, 7
    %v1934 = vadd.s32 %v1933, 8
    %1935 = vset.pattern.permute.xlu0 %v1934
    %1936 = vperm.xlu0 %1935, %v1925
    %v1937 = vpop.permute.xlu0 %1936
    %v1938 = vlaneseq
    %v1939 = vshrl.u32 %v1938, 7
    %v1940 = vadd.s32 %v1939, 16
    %1941 = vset.pattern.permute.xlu0 %v1940
    %1942 = vperm.xlu0 %1941, %v1925
    %v1943 = vpop.permute.xlu0 %1942
    %v1944 = vlaneseq
    %v1945 = vshrl.u32 %v1944, 7
    %v1946 = vadd.s32 %v1945, 24
    %1947 = vset.pattern.permute.xlu0 %v1946
    %1948 = vperm.xlu0 %1947, %v1925
    %v1949 = vpop.permute.xlu0 %1948
    %v1950 = vperm.slane %v1732, 7
    %v1951 = vlaneseq
    %v1952 = vshrl.u32 %v1951, 7
    %1954 = vset.pattern.permute.xlu0 %v1952
    %1955 = vperm.xlu0 %1954, %v1950
    %v1956 = vpop.permute.xlu0 %1955
    %v1957 = vlaneseq
    %v1958 = vshrl.u32 %v1957, 7
    %v1959 = vadd.s32 %v1958, 8
    %1960 = vset.pattern.permute.xlu0 %v1959
    %1961 = vperm.xlu0 %1960, %v1950
    %v1962 = vpop.permute.xlu0 %1961
    %v1963 = vlaneseq
    %v1964 = vshrl.u32 %v1963, 7
    %v1965 = vadd.s32 %v1964, 16
    %1966 = vset.pattern.permute.xlu0 %v1965
    %1967 = vperm.xlu0 %1966, %v1950
    %v1968 = vpop.permute.xlu0 %1967
    %v1969 = vlaneseq
    %v1970 = vshrl.u32 %v1969, 7
    %v1971 = vadd.s32 %v1970, 24
    %1972 = vset.pattern.permute.xlu0 %v1971
    %1973 = vperm.xlu0 %1972, %v1950
    %v1974 = vpop.permute.xlu0 %1973
    %v1975 = vperm.slane %v1735, 0
    %v1976 = vlaneseq
    %v1977 = vshrl.u32 %v1976, 7
    %1979 = vset.pattern.permute.xlu0 %v1977
    %1980 = vperm.xlu0 %1979, %v1975
    %v1981 = vpop.permute.xlu0 %1980
    %v1982 = vlaneseq
    %v1983 = vshrl.u32 %v1982, 7
    %v1984 = vadd.s32 %v1983, 8
    %1985 = vset.pattern.permute.xlu0 %v1984
    %1986 = vperm.xlu0 %1985, %v1975
    %v1987 = vpop.permute.xlu0 %1986
    %v1988 = vlaneseq
    %v1989 = vshrl.u32 %v1988, 7
    %v1990 = vadd.s32 %v1989, 16
    %1991 = vset.pattern.permute.xlu0 %v1990
    %1992 = vperm.xlu0 %1991, %v1975
    %v1993 = vpop.permute.xlu0 %1992
    %v1994 = vlaneseq
    %v1995 = vshrl.u32 %v1994, 7
    %v1996 = vadd.s32 %v1995, 24
    %1997 = vset.pattern.permute.xlu0 %v1996
    %1998 = vperm.xlu0 %1997, %v1975
    %v1999 = vpop.permute.xlu0 %1998
    %v2000 = vperm.slane %v1735, 1
    %v2001 = vlaneseq
    %v2002 = vshrl.u32 %v2001, 7
    %2004 = vset.pattern.permute.xlu0 %v2002
    %2005 = vperm.xlu0 %2004, %v2000
    %v2006 = vpop.permute.xlu0 %2005
    %v2007 = vlaneseq
    %v2008 = vshrl.u32 %v2007, 7
    %v2009 = vadd.s32 %v2008, 8
    %2010 = vset.pattern.permute.xlu0 %v2009
    %2011 = vperm.xlu0 %2010, %v2000
    %v2012 = vpop.permute.xlu0 %2011
    %v2013 = vlaneseq
    %v2014 = vshrl.u32 %v2013, 7
    %v2015 = vadd.s32 %v2014, 16
    %2016 = vset.pattern.permute.xlu0 %v2015
    %2017 = vperm.xlu0 %2016, %v2000
    %v2018 = vpop.permute.xlu0 %2017
    %v2019 = vlaneseq
    %v2020 = vshrl.u32 %v2019, 7
    %v2021 = vadd.s32 %v2020, 24
    %2022 = vset.pattern.permute.xlu0 %v2021
    %2023 = vperm.xlu0 %2022, %v2000
    %v2024 = vpop.permute.xlu0 %2023
    %v2025 = vperm.slane %v1735, 2
    %v2026 = vlaneseq
    %v2027 = vshrl.u32 %v2026, 7
    %2029 = vset.pattern.permute.xlu0 %v2027
    %2030 = vperm.xlu0 %2029, %v2025
    %v2031 = vpop.permute.xlu0 %2030
    %v2032 = vlaneseq
    %v2033 = vshrl.u32 %v2032, 7
    %v2034 = vadd.s32 %v2033, 8
    %2035 = vset.pattern.permute.xlu0 %v2034
    %2036 = vperm.xlu0 %2035, %v2025
    %v2037 = vpop.permute.xlu0 %2036
    %v2038 = vlaneseq
    %v2039 = vshrl.u32 %v2038, 7
    %v2040 = vadd.s32 %v2039, 16
    %2041 = vset.pattern.permute.xlu0 %v2040
    %2042 = vperm.xlu0 %2041, %v2025
    %v2043 = vpop.permute.xlu0 %2042
    %v2044 = vlaneseq
    %v2045 = vshrl.u32 %v2044, 7
    %v2046 = vadd.s32 %v2045, 24
    %2047 = vset.pattern.permute.xlu0 %v2046
    %2048 = vperm.xlu0 %2047, %v2025
    %v2049 = vpop.permute.xlu0 %2048
    %v2050 = vperm.slane %v1735, 3
    %v2051 = vlaneseq
    %v2052 = vshrl.u32 %v2051, 7
    %2054 = vset.pattern.permute.xlu0 %v2052
    %2055 = vperm.xlu0 %2054, %v2050
    %v2056 = vpop.permute.xlu0 %2055
    %v2057 = vlaneseq
    %v2058 = vshrl.u32 %v2057, 7
    %v2059 = vadd.s32 %v2058, 8
    %2060 = vset.pattern.permute.xlu0 %v2059
    %2061 = vperm.xlu0 %2060, %v2050
    %v2062 = vpop.permute.xlu0 %2061
    %v2063 = vlaneseq
    %v2064 = vshrl.u32 %v2063, 7
    %v2065 = vadd.s32 %v2064, 16
    %2066 = vset.pattern.permute.xlu0 %v2065
    %2067 = vperm.xlu0 %2066, %v2050
    %v2068 = vpop.permute.xlu0 %2067
    %v2069 = vlaneseq
    %v2070 = vshrl.u32 %v2069, 7
    %v2071 = vadd.s32 %v2070, 24
    %2072 = vset.pattern.permute.xlu0 %v2071
    %2073 = vperm.xlu0 %2072, %v2050
    %v2074 = vpop.permute.xlu0 %2073
    %v2075 = vperm.slane %v1735, 4
    %v2076 = vlaneseq
    %v2077 = vshrl.u32 %v2076, 7
    %2079 = vset.pattern.permute.xlu0 %v2077
    %2080 = vperm.xlu0 %2079, %v2075
    %v2081 = vpop.permute.xlu0 %2080
    %v2082 = vlaneseq
    %v2083 = vshrl.u32 %v2082, 7
    %v2084 = vadd.s32 %v2083, 8
    %2085 = vset.pattern.permute.xlu0 %v2084
    %2086 = vperm.xlu0 %2085, %v2075
    %v2087 = vpop.permute.xlu0 %2086
    %v2088 = vlaneseq
    %v2089 = vshrl.u32 %v2088, 7
    %v2090 = vadd.s32 %v2089, 16
    %2091 = vset.pattern.permute.xlu0 %v2090
    %2092 = vperm.xlu0 %2091, %v2075
    %v2093 = vpop.permute.xlu0 %2092
    %v2094 = vlaneseq
    %v2095 = vshrl.u32 %v2094, 7
    %v2096 = vadd.s32 %v2095, 24
    %2097 = vset.pattern.permute.xlu0 %v2096
    %2098 = vperm.xlu0 %2097, %v2075
    %v2099 = vpop.permute.xlu0 %2098
    %v2100 = vperm.slane %v1735, 5
    %v2101 = vlaneseq
    %v2102 = vshrl.u32 %v2101, 7
    %2104 = vset.pattern.permute.xlu0 %v2102
    %2105 = vperm.xlu0 %2104, %v2100
    %v2106 = vpop.permute.xlu0 %2105
    %v2107 = vlaneseq
    %v2108 = vshrl.u32 %v2107, 7
    %v2109 = vadd.s32 %v2108, 8
    %2110 = vset.pattern.permute.xlu0 %v2109
    %2111 = vperm.xlu0 %2110, %v2100
    %v2112 = vpop.permute.xlu0 %2111
    %v2113 = vlaneseq
    %v2114 = vshrl.u32 %v2113, 7
    %v2115 = vadd.s32 %v2114, 16
    %2116 = vset.pattern.permute.xlu0 %v2115
    %2117 = vperm.xlu0 %2116, %v2100
    %v2118 = vpop.permute.xlu0 %2117
    %v2119 = vlaneseq
    %v2120 = vshrl.u32 %v2119, 7
    %v2121 = vadd.s32 %v2120, 24
    %2122 = vset.pattern.permute.xlu0 %v2121
    %2123 = vperm.xlu0 %2122, %v2100
    %v2124 = vpop.permute.xlu0 %2123
    %v2125 = vperm.slane %v1735, 6
    %v2126 = vlaneseq
    %v2127 = vshrl.u32 %v2126, 7
    %2129 = vset.pattern.permute.xlu0 %v2127
    %2130 = vperm.xlu0 %2129, %v2125
    %v2131 = vpop.permute.xlu0 %2130
    %v2132 = vlaneseq
    %v2133 = vshrl.u32 %v2132, 7
    %v2134 = vadd.s32 %v2133, 8
    %2135 = vset.pattern.permute.xlu0 %v2134
    %2136 = vperm.xlu0 %2135, %v2125
    %v2137 = vpop.permute.xlu0 %2136
    %v2138 = vlaneseq
    %v2139 = vshrl.u32 %v2138, 7
    %v2140 = vadd.s32 %v2139, 16
    %2141 = vset.pattern.permute.xlu0 %v2140
    %2142 = vperm.xlu0 %2141, %v2125
    %v2143 = vpop.permute.xlu0 %2142
    %v2144 = vlaneseq
    %v2145 = vshrl.u32 %v2144, 7
    %v2146 = vadd.s32 %v2145, 24
    %2147 = vset.pattern.permute.xlu0 %v2146
    %2148 = vperm.xlu0 %2147, %v2125
    %v2149 = vpop.permute.xlu0 %2148
    %v2150 = vperm.slane %v1735, 7
    %v2151 = vlaneseq
    %v2152 = vshrl.u32 %v2151, 7
    %2154 = vset.pattern.permute.xlu0 %v2152
    %2155 = vperm.xlu0 %2154, %v2150
    %v2156 = vpop.permute.xlu0 %2155
    %v2157 = vlaneseq
    %v2158 = vshrl.u32 %v2157, 7
    %v2159 = vadd.s32 %v2158, 8
    %2160 = vset.pattern.permute.xlu0 %v2159
    %2161 = vperm.xlu0 %2160, %v2150
    %v2162 = vpop.permute.xlu0 %2161
    %v2163 = vlaneseq
    %v2164 = vshrl.u32 %v2163, 7
    %v2165 = vadd.s32 %v2164, 16
    %2166 = vset.pattern.permute.xlu0 %v2165
    %2167 = vperm.xlu0 %2166, %v2150
    %v2168 = vpop.permute.xlu0 %2167
    %v2169 = vlaneseq
    %v2170 = vshrl.u32 %v2169, 7
    %v2171 = vadd.s32 %v2170, 24
    %2172 = vset.pattern.permute.xlu0 %v2171
    %2173 = vperm.xlu0 %2172, %v2150
    %v2174 = vpop.permute.xlu0 %2173
    %v2175 = vsel %vm541, %v1781, %v1981
    %v2176 = vsel %vm541, %v1787, %v1987
    %v2177 = vsel %vm541, %v1793, %v1993
    %v2178 = vsel %vm541, %v1799, %v1999
    %v2179 = vsel %vm541, %v1806, %v2006
    %v2180 = vsel %vm541, %v1812, %v2012
    %v2181 = vsel %vm541, %v1818, %v2018
    %v2182 = vsel %vm541, %v1824, %v2024
    %v2183 = vsel %vm541, %v1831, %v2031
    %v2184 = vsel %vm541, %v1837, %v2037
    %v2185 = vsel %vm541, %v1843, %v2043
    %v2186 = vsel %vm541, %v1849, %v2049
    %v2187 = vsel %vm541, %v1856, %v2056
    %v2188 = vsel %vm541, %v1862, %v2062
    %v2189 = vsel %vm541, %v1868, %v2068
    %v2190 = vsel %vm541, %v1874, %v2074
    %v2191 = vsel %vm541, %v1881, %v2081
    %v2192 = vsel %vm541, %v1887, %v2087
    %v2193 = vsel %vm541, %v1893, %v2093
    %v2194 = vsel %vm541, %v1899, %v2099
    %v2195 = vsel %vm541, %v1906, %v2106
    %v2196 = vsel %vm541, %v1912, %v2112
    %v2197 = vsel %vm541, %v1918, %v2118
    %v2198 = vsel %vm541, %v1924, %v2124
    %v2199 = vsel %vm541, %v1931, %v2131
    %v2200 = vsel %vm541, %v1937, %v2137
    %v2201 = vsel %vm541, %v1943, %v2143
    %v2202 = vsel %vm541, %v1949, %v2149
    %v2203 = vsel %vm541, %v1956, %v2156
    %v2204 = vsel %vm541, %v1962, %v2162
    %v2205 = vsel %vm541, %v1968, %v2168
    %v2206 = vsel %vm541, %v1974, %v2174
    %v2207 = vperm.slane %v1759, 0
    %v2208 = vlaneseq
    %v2209 = vshrl.u32 %v2208, 7
    %v2210 = vadd.s32 %v2209, 64
    %2211 = vset.pattern.permute.xlu0 %v2210
    %2212 = vperm.xlu0 %2211, %v2207
    %v2213 = vpop.permute.xlu0 %2212
    %v2214 = vlaneseq
    %v2215 = vshrl.u32 %v2214, 7
    %v2216 = vadd.s32 %v2215, 72
    %2217 = vset.pattern.permute.xlu0 %v2216
    %2218 = vperm.xlu0 %2217, %v2207
    %v2219 = vpop.permute.xlu0 %2218
    %v2220 = vlaneseq
    %v2221 = vshrl.u32 %v2220, 7
    %v2222 = vadd.s32 %v2221, 80
    %2223 = vset.pattern.permute.xlu0 %v2222
    %2224 = vperm.xlu0 %2223, %v2207
    %v2225 = vpop.permute.xlu0 %2224
    %v2226 = vlaneseq
    %v2227 = vshrl.u32 %v2226, 7
    %v2228 = vadd.s32 %v2227, 88
    %2229 = vset.pattern.permute.xlu0 %v2228
    %2230 = vperm.xlu0 %2229, %v2207
    %v2231 = vpop.permute.xlu0 %2230
    %v2232 = vperm.slane %v1759, 1
    %v2233 = vlaneseq
    %v2234 = vshrl.u32 %v2233, 7
    %v2235 = vadd.s32 %v2234, 64
    %2236 = vset.pattern.permute.xlu0 %v2235
    %2237 = vperm.xlu0 %2236, %v2232
    %v2238 = vpop.permute.xlu0 %2237
    %v2239 = vlaneseq
    %v2240 = vshrl.u32 %v2239, 7
    %v2241 = vadd.s32 %v2240, 72
    %2242 = vset.pattern.permute.xlu0 %v2241
    %2243 = vperm.xlu0 %2242, %v2232
    %v2244 = vpop.permute.xlu0 %2243
    %v2245 = vlaneseq
    %v2246 = vshrl.u32 %v2245, 7
    %v2247 = vadd.s32 %v2246, 80
    %2248 = vset.pattern.permute.xlu0 %v2247
    %2249 = vperm.xlu0 %2248, %v2232
    %v2250 = vpop.permute.xlu0 %2249
    %v2251 = vlaneseq
    %v2252 = vshrl.u32 %v2251, 7
    %v2253 = vadd.s32 %v2252, 88
    %2254 = vset.pattern.permute.xlu0 %v2253
    %2255 = vperm.xlu0 %2254, %v2232
    %v2256 = vpop.permute.xlu0 %2255
    %v2257 = vperm.slane %v1759, 2
    %v2258 = vlaneseq
    %v2259 = vshrl.u32 %v2258, 7
    %v2260 = vadd.s32 %v2259, 64
    %2261 = vset.pattern.permute.xlu0 %v2260
    %2262 = vperm.xlu0 %2261, %v2257
    %v2263 = vpop.permute.xlu0 %2262
    %v2264 = vlaneseq
    %v2265 = vshrl.u32 %v2264, 7
    %v2266 = vadd.s32 %v2265, 72
    %2267 = vset.pattern.permute.xlu0 %v2266
    %2268 = vperm.xlu0 %2267, %v2257
    %v2269 = vpop.permute.xlu0 %2268
    %v2270 = vlaneseq
    %v2271 = vshrl.u32 %v2270, 7
    %v2272 = vadd.s32 %v2271, 80
    %2273 = vset.pattern.permute.xlu0 %v2272
    %2274 = vperm.xlu0 %2273, %v2257
    %v2275 = vpop.permute.xlu0 %2274
    %v2276 = vlaneseq
    %v2277 = vshrl.u32 %v2276, 7
    %v2278 = vadd.s32 %v2277, 88
    %2279 = vset.pattern.permute.xlu0 %v2278
    %2280 = vperm.xlu0 %2279, %v2257
    %v2281 = vpop.permute.xlu0 %2280
    %v2282 = vperm.slane %v1759, 3
    %v2283 = vlaneseq
    %v2284 = vshrl.u32 %v2283, 7
    %v2285 = vadd.s32 %v2284, 64
    %2286 = vset.pattern.permute.xlu0 %v2285
    %2287 = vperm.xlu0 %2286, %v2282
    %v2288 = vpop.permute.xlu0 %2287
    %v2289 = vlaneseq
    %v2290 = vshrl.u32 %v2289, 7
    %v2291 = vadd.s32 %v2290, 72
    %2292 = vset.pattern.permute.xlu0 %v2291
    %2293 = vperm.xlu0 %2292, %v2282
    %v2294 = vpop.permute.xlu0 %2293
    %v2295 = vlaneseq
    %v2296 = vshrl.u32 %v2295, 7
    %v2297 = vadd.s32 %v2296, 80
    %2298 = vset.pattern.permute.xlu0 %v2297
    %2299 = vperm.xlu0 %2298, %v2282
    %v2300 = vpop.permute.xlu0 %2299
    %v2301 = vlaneseq
    %v2302 = vshrl.u32 %v2301, 7
    %v2303 = vadd.s32 %v2302, 88
    %2304 = vset.pattern.permute.xlu0 %v2303
    %2305 = vperm.xlu0 %2304, %v2282
    %v2306 = vpop.permute.xlu0 %2305
    %v2307 = vperm.slane %v1759, 4
    %v2308 = vlaneseq
    %v2309 = vshrl.u32 %v2308, 7
    %v2310 = vadd.s32 %v2309, 64
    %2311 = vset.pattern.permute.xlu0 %v2310
    %2312 = vperm.xlu0 %2311, %v2307
    %v2313 = vpop.permute.xlu0 %2312
    %v2314 = vlaneseq
    %v2315 = vshrl.u32 %v2314, 7
    %v2316 = vadd.s32 %v2315, 72
    %2317 = vset.pattern.permute.xlu0 %v2316
    %2318 = vperm.xlu0 %2317, %v2307
    %v2319 = vpop.permute.xlu0 %2318
    %v2320 = vlaneseq
    %v2321 = vshrl.u32 %v2320, 7
    %v2322 = vadd.s32 %v2321, 80
    %2323 = vset.pattern.permute.xlu0 %v2322
    %2324 = vperm.xlu0 %2323, %v2307
    %v2325 = vpop.permute.xlu0 %2324
    %v2326 = vlaneseq
    %v2327 = vshrl.u32 %v2326, 7
    %v2328 = vadd.s32 %v2327, 88
    %2329 = vset.pattern.permute.xlu0 %v2328
    %2330 = vperm.xlu0 %2329, %v2307
    %v2331 = vpop.permute.xlu0 %2330
    %v2332 = vperm.slane %v1759, 5
    %v2333 = vlaneseq
    %v2334 = vshrl.u32 %v2333, 7
    %v2335 = vadd.s32 %v2334, 64
    %2336 = vset.pattern.permute.xlu0 %v2335
    %2337 = vperm.xlu0 %2336, %v2332
    %v2338 = vpop.permute.xlu0 %2337
    %v2339 = vlaneseq
    %v2340 = vshrl.u32 %v2339, 7
    %v2341 = vadd.s32 %v2340, 72
    %2342 = vset.pattern.permute.xlu0 %v2341
    %2343 = vperm.xlu0 %2342, %v2332
    %v2344 = vpop.permute.xlu0 %2343
    %v2345 = vlaneseq
    %v2346 = vshrl.u32 %v2345, 7
    %v2347 = vadd.s32 %v2346, 80
    %2348 = vset.pattern.permute.xlu0 %v2347
    %2349 = vperm.xlu0 %2348, %v2332
    %v2350 = vpop.permute.xlu0 %2349
    %v2351 = vlaneseq
    %v2352 = vshrl.u32 %v2351, 7
    %v2353 = vadd.s32 %v2352, 88
    %2354 = vset.pattern.permute.xlu0 %v2353
    %2355 = vperm.xlu0 %2354, %v2332
    %v2356 = vpop.permute.xlu0 %2355
    %v2357 = vperm.slane %v1759, 6
    %v2358 = vlaneseq
    %v2359 = vshrl.u32 %v2358, 7
    %v2360 = vadd.s32 %v2359, 64
    %2361 = vset.pattern.permute.xlu0 %v2360
    %2362 = vperm.xlu0 %2361, %v2357
    %v2363 = vpop.permute.xlu0 %2362
    %v2364 = vlaneseq
    %v2365 = vshrl.u32 %v2364, 7
    %v2366 = vadd.s32 %v2365, 72
    %2367 = vset.pattern.permute.xlu0 %v2366
    %2368 = vperm.xlu0 %2367, %v2357
    %v2369 = vpop.permute.xlu0 %2368
    %v2370 = vlaneseq
    %v2371 = vshrl.u32 %v2370, 7
    %v2372 = vadd.s32 %v2371, 80
    %2373 = vset.pattern.permute.xlu0 %v2372
    %2374 = vperm.xlu0 %2373, %v2357
    %v2375 = vpop.permute.xlu0 %2374
    %v2376 = vlaneseq
    %v2377 = vshrl.u32 %v2376, 7
    %v2378 = vadd.s32 %v2377, 88
    %2379 = vset.pattern.permute.xlu0 %v2378
    %2380 = vperm.xlu0 %2379, %v2357
    %v2381 = vpop.permute.xlu0 %2380
    %v2382 = vperm.slane %v1759, 7
    %v2383 = vlaneseq
    %v2384 = vshrl.u32 %v2383, 7
    %v2385 = vadd.s32 %v2384, 64
    %2386 = vset.pattern.permute.xlu0 %v2385
    %2387 = vperm.xlu0 %2386, %v2382
    %v2388 = vpop.permute.xlu0 %2387
    %v2389 = vlaneseq
    %v2390 = vshrl.u32 %v2389, 7
    %v2391 = vadd.s32 %v2390, 72
    %2392 = vset.pattern.permute.xlu0 %v2391
    %2393 = vperm.xlu0 %2392, %v2382
    %v2394 = vpop.permute.xlu0 %2393
    %v2395 = vlaneseq
    %v2396 = vshrl.u32 %v2395, 7
    %v2397 = vadd.s32 %v2396, 80
    %2398 = vset.pattern.permute.xlu0 %v2397
    %2399 = vperm.xlu0 %2398, %v2382
    %v2400 = vpop.permute.xlu0 %2399
    %v2401 = vlaneseq
    %v2402 = vshrl.u32 %v2401, 7
    %v2403 = vadd.s32 %v2402, 88
    %2404 = vset.pattern.permute.xlu0 %v2403
    %2405 = vperm.xlu0 %2404, %v2382
    %v2406 = vpop.permute.xlu0 %2405
    %v2407 = vperm.slane %v1774, 0
    %v2408 = vlaneseq
    %v2409 = vshrl.u32 %v2408, 7
    %v2410 = vadd.s32 %v2409, 64
    %2411 = vset.pattern.permute.xlu0 %v2410
    %2412 = vperm.xlu0 %2411, %v2407
    %v2413 = vpop.permute.xlu0 %2412
    %v2414 = vlaneseq
    %v2415 = vshrl.u32 %v2414, 7
    %v2416 = vadd.s32 %v2415, 72
    %2417 = vset.pattern.permute.xlu0 %v2416
    %2418 = vperm.xlu0 %2417, %v2407
    %v2419 = vpop.permute.xlu0 %2418
    %v2420 = vlaneseq
    %v2421 = vshrl.u32 %v2420, 7
    %v2422 = vadd.s32 %v2421, 80
    %2423 = vset.pattern.permute.xlu0 %v2422
    %2424 = vperm.xlu0 %2423, %v2407
    %v2425 = vpop.permute.xlu0 %2424
    %v2426 = vlaneseq
    %v2427 = vshrl.u32 %v2426, 7
    %v2428 = vadd.s32 %v2427, 88
    %2429 = vset.pattern.permute.xlu0 %v2428
    %2430 = vperm.xlu0 %2429, %v2407
    %v2431 = vpop.permute.xlu0 %2430
    %v2432 = vperm.slane %v1774, 1
    %v2433 = vlaneseq
    %v2434 = vshrl.u32 %v2433, 7
    %v2435 = vadd.s32 %v2434, 64
    %2436 = vset.pattern.permute.xlu0 %v2435
    %2437 = vperm.xlu0 %2436, %v2432
    %v2438 = vpop.permute.xlu0 %2437
    %v2439 = vlaneseq
    %v2440 = vshrl.u32 %v2439, 7
    %v2441 = vadd.s32 %v2440, 72
    %2442 = vset.pattern.permute.xlu0 %v2441
    %2443 = vperm.xlu0 %2442, %v2432
    %v2444 = vpop.permute.xlu0 %2443
    %v2445 = vlaneseq
    %v2446 = vshrl.u32 %v2445, 7
    %v2447 = vadd.s32 %v2446, 80
    %2448 = vset.pattern.permute.xlu0 %v2447
    %2449 = vperm.xlu0 %2448, %v2432
    %v2450 = vpop.permute.xlu0 %2449
    %v2451 = vlaneseq
    %v2452 = vshrl.u32 %v2451, 7
    %v2453 = vadd.s32 %v2452, 88
    %2454 = vset.pattern.permute.xlu0 %v2453
    %2455 = vperm.xlu0 %2454, %v2432
    %v2456 = vpop.permute.xlu0 %2455
    %v2457 = vperm.slane %v1774, 2
    %v2458 = vlaneseq
    %v2459 = vshrl.u32 %v2458, 7
    %v2460 = vadd.s32 %v2459, 64
    %2461 = vset.pattern.permute.xlu0 %v2460
    %2462 = vperm.xlu0 %2461, %v2457
    %v2463 = vpop.permute.xlu0 %2462
    %v2464 = vlaneseq
    %v2465 = vshrl.u32 %v2464, 7
    %v2466 = vadd.s32 %v2465, 72
    %2467 = vset.pattern.permute.xlu0 %v2466
    %2468 = vperm.xlu0 %2467, %v2457
    %v2469 = vpop.permute.xlu0 %2468
    %v2470 = vlaneseq
    %v2471 = vshrl.u32 %v2470, 7
    %v2472 = vadd.s32 %v2471, 80
    %2473 = vset.pattern.permute.xlu0 %v2472
    %2474 = vperm.xlu0 %2473, %v2457
    %v2475 = vpop.permute.xlu0 %2474
    %v2476 = vlaneseq
    %v2477 = vshrl.u32 %v2476, 7
    %v2478 = vadd.s32 %v2477, 88
    %2479 = vset.pattern.permute.xlu0 %v2478
    %2480 = vperm.xlu0 %2479, %v2457
    %v2481 = vpop.permute.xlu0 %2480
    %v2482 = vperm.slane %v1774, 3
    %v2483 = vlaneseq
    %v2484 = vshrl.u32 %v2483, 7
    %v2485 = vadd.s32 %v2484, 64
    %2486 = vset.pattern.permute.xlu0 %v2485
    %2487 = vperm.xlu0 %2486, %v2482
    %v2488 = vpop.permute.xlu0 %2487
    %v2489 = vlaneseq
    %v2490 = vshrl.u32 %v2489, 7
    %v2491 = vadd.s32 %v2490, 72
    %2492 = vset.pattern.permute.xlu0 %v2491
    %2493 = vperm.xlu0 %2492, %v2482
    %v2494 = vpop.permute.xlu0 %2493
    %v2495 = vlaneseq
    %v2496 = vshrl.u32 %v2495, 7
    %v2497 = vadd.s32 %v2496, 80
    %2498 = vset.pattern.permute.xlu0 %v2497
    %2499 = vperm.xlu0 %2498, %v2482
    %v2500 = vpop.permute.xlu0 %2499
    %v2501 = vlaneseq
    %v2502 = vshrl.u32 %v2501, 7
    %v2503 = vadd.s32 %v2502, 88
    %2504 = vset.pattern.permute.xlu0 %v2503
    %2505 = vperm.xlu0 %2504, %v2482
    %v2506 = vpop.permute.xlu0 %2505
    %v2507 = vperm.slane %v1774, 4
    %v2508 = vlaneseq
    %v2509 = vshrl.u32 %v2508, 7
    %v2510 = vadd.s32 %v2509, 64
    %2511 = vset.pattern.permute.xlu0 %v2510
    %2512 = vperm.xlu0 %2511, %v2507
    %v2513 = vpop.permute.xlu0 %2512
    %v2514 = vlaneseq
    %v2515 = vshrl.u32 %v2514, 7
    %v2516 = vadd.s32 %v2515, 72
    %2517 = vset.pattern.permute.xlu0 %v2516
    %2518 = vperm.xlu0 %2517, %v2507
    %v2519 = vpop.permute.xlu0 %2518
    %v2520 = vlaneseq
    %v2521 = vshrl.u32 %v2520, 7
    %v2522 = vadd.s32 %v2521, 80
    %2523 = vset.pattern.permute.xlu0 %v2522
    %2524 = vperm.xlu0 %2523, %v2507
    %v2525 = vpop.permute.xlu0 %2524
    %v2526 = vlaneseq
    %v2527 = vshrl.u32 %v2526, 7
    %v2528 = vadd.s32 %v2527, 88
    %2529 = vset.pattern.permute.xlu0 %v2528
    %2530 = vperm.xlu0 %2529, %v2507
    %v2531 = vpop.permute.xlu0 %2530
    %v2532 = vperm.slane %v1774, 5
    %v2533 = vlaneseq
    %v2534 = vshrl.u32 %v2533, 7
    %v2535 = vadd.s32 %v2534, 64
    %2536 = vset.pattern.permute.xlu0 %v2535
    %2537 = vperm.xlu0 %2536, %v2532
    %v2538 = vpop.permute.xlu0 %2537
    %v2539 = vlaneseq
    %v2540 = vshrl.u32 %v2539, 7
    %v2541 = vadd.s32 %v2540, 72
    %2542 = vset.pattern.permute.xlu0 %v2541
    %2543 = vperm.xlu0 %2542, %v2532
    %v2544 = vpop.permute.xlu0 %2543
    %v2545 = vlaneseq
    %v2546 = vshrl.u32 %v2545, 7
    %v2547 = vadd.s32 %v2546, 80
    %2548 = vset.pattern.permute.xlu0 %v2547
    %2549 = vperm.xlu0 %2548, %v2532
    %v2550 = vpop.permute.xlu0 %2549
    %v2551 = vlaneseq
    %v2552 = vshrl.u32 %v2551, 7
    %v2553 = vadd.s32 %v2552, 88
    %2554 = vset.pattern.permute.xlu0 %v2553
    %2555 = vperm.xlu0 %2554, %v2532
    %v2556 = vpop.permute.xlu0 %2555
    %v2557 = vperm.slane %v1774, 6
    %v2558 = vlaneseq
    %v2559 = vshrl.u32 %v2558, 7
    %v2560 = vadd.s32 %v2559, 64
    %2561 = vset.pattern.permute.xlu0 %v2560
    %2562 = vperm.xlu0 %2561, %v2557
    %v2563 = vpop.permute.xlu0 %2562
    %v2564 = vlaneseq
    %v2565 = vshrl.u32 %v2564, 7
    %v2566 = vadd.s32 %v2565, 72
    %2567 = vset.pattern.permute.xlu0 %v2566
    %2568 = vperm.xlu0 %2567, %v2557
    %v2569 = vpop.permute.xlu0 %2568
    %v2570 = vlaneseq
    %v2571 = vshrl.u32 %v2570, 7
    %v2572 = vadd.s32 %v2571, 80
    %2573 = vset.pattern.permute.xlu0 %v2572
    %2574 = vperm.xlu0 %2573, %v2557
    %v2575 = vpop.permute.xlu0 %2574
    %v2576 = vlaneseq
    %v2577 = vshrl.u32 %v2576, 7
    %v2578 = vadd.s32 %v2577, 88
    %2579 = vset.pattern.permute.xlu0 %v2578
    %2580 = vperm.xlu0 %2579, %v2557
    %v2581 = vpop.permute.xlu0 %2580
    %v2582 = vperm.slane %v1774, 7
    %v2583 = vlaneseq
    %v2584 = vshrl.u32 %v2583, 7
    %v2585 = vadd.s32 %v2584, 64
    %2586 = vset.pattern.permute.xlu0 %v2585
    %2587 = vperm.xlu0 %2586, %v2582
    %v2588 = vpop.permute.xlu0 %2587
    %v2589 = vlaneseq
    %v2590 = vshrl.u32 %v2589, 7
    %v2591 = vadd.s32 %v2590, 72
    %2592 = vset.pattern.permute.xlu0 %v2591
    %2593 = vperm.xlu0 %2592, %v2582
    %v2594 = vpop.permute.xlu0 %2593
    %v2595 = vlaneseq
    %v2596 = vshrl.u32 %v2595, 7
    %v2597 = vadd.s32 %v2596, 80
    %2598 = vset.pattern.permute.xlu0 %v2597
    %2599 = vperm.xlu0 %2598, %v2582
    %v2600 = vpop.permute.xlu0 %2599
    %v2601 = vlaneseq
    %v2602 = vshrl.u32 %v2601, 7
    %v2603 = vadd.s32 %v2602, 88
    %2604 = vset.pattern.permute.xlu0 %v2603
    %2605 = vperm.xlu0 %2604, %v2582
    %v2606 = vpop.permute.xlu0 %2605
    %v2607 = vsel %vm541, %v2213, %v2413
    %v2608 = vsel %vm541, %v2219, %v2419
    %v2609 = vsel %vm541, %v2225, %v2425
    %v2610 = vsel %vm541, %v2231, %v2431
    %v2611 = vsel %vm541, %v2238, %v2438
    %v2612 = vsel %vm541, %v2244, %v2444
    %v2613 = vsel %vm541, %v2250, %v2450
    %v2614 = vsel %vm541, %v2256, %v2456
    %v2615 = vsel %vm541, %v2263, %v2463
    %v2616 = vsel %vm541, %v2269, %v2469
    %v2617 = vsel %vm541, %v2275, %v2475
    %v2618 = vsel %vm541, %v2281, %v2481
    %v2619 = vsel %vm541, %v2288, %v2488
    %v2620 = vsel %vm541, %v2294, %v2494
    %v2621 = vsel %vm541, %v2300, %v2500
    %v2622 = vsel %vm541, %v2306, %v2506
    %v2623 = vsel %vm541, %v2313, %v2513
    %v2624 = vsel %vm541, %v2319, %v2519
    %v2625 = vsel %vm541, %v2325, %v2525
    %v2626 = vsel %vm541, %v2331, %v2531
    %v2627 = vsel %vm541, %v2338, %v2538
    %v2628 = vsel %vm541, %v2344, %v2544
    %v2629 = vsel %vm541, %v2350, %v2550
    %v2630 = vsel %vm541, %v2356, %v2556
    %v2631 = vsel %vm541, %v2363, %v2563
    %v2632 = vsel %vm541, %v2369, %v2569
    %v2633 = vsel %vm541, %v2375, %v2575
    %v2634 = vsel %vm541, %v2381, %v2581
    %v2635 = vsel %vm541, %v2388, %v2588
    %v2636 = vsel %vm541, %v2394, %v2594
    %v2637 = vsel %vm541, %v2400, %v2600
    %v2638 = vsel %vm541, %v2406, %v2606
    %v2639 = vlaneseq
    %v2640 = vshrl.u32 %v2639, 7
    %v2641 = vadd.s32 %v2640, 32
    %2642 = vset.pattern.permute.xlu0 %v2641
    %2643 = vperm.xlu0 %2642, %v2207
    %v2644 = vpop.permute.xlu0 %2643
    %v2645 = vlaneseq
    %v2646 = vshrl.u32 %v2645, 7
    %v2647 = vadd.s32 %v2646, 40
    %2648 = vset.pattern.permute.xlu0 %v2647
    %2649 = vperm.xlu0 %2648, %v2207
    %v2650 = vpop.permute.xlu0 %2649
    %v2651 = vlaneseq
    %v2652 = vshrl.u32 %v2651, 7
    %v2653 = vadd.s32 %v2652, 48
    %2654 = vset.pattern.permute.xlu0 %v2653
    %2655 = vperm.xlu0 %2654, %v2207
    %v2656 = vpop.permute.xlu0 %2655
    %v2657 = vlaneseq
    %v2658 = vshrl.u32 %v2657, 7
    %v2659 = vadd.s32 %v2658, 56
    %2660 = vset.pattern.permute.xlu0 %v2659
    %2661 = vperm.xlu0 %2660, %v2207
    %v2662 = vpop.permute.xlu0 %2661
    %v2663 = vlaneseq
    %v2664 = vshrl.u32 %v2663, 7
    %v2665 = vadd.s32 %v2664, 32
    %2666 = vset.pattern.permute.xlu0 %v2665
    %2667 = vperm.xlu0 %2666, %v2232
    %v2668 = vpop.permute.xlu0 %2667
    %v2669 = vlaneseq
    %v2670 = vshrl.u32 %v2669, 7
    %v2671 = vadd.s32 %v2670, 40
    %2672 = vset.pattern.permute.xlu0 %v2671
    %2673 = vperm.xlu0 %2672, %v2232
    %v2674 = vpop.permute.xlu0 %2673
    %v2675 = vlaneseq
    %v2676 = vshrl.u32 %v2675, 7
    %v2677 = vadd.s32 %v2676, 48
    %2678 = vset.pattern.permute.xlu0 %v2677
    %2679 = vperm.xlu0 %2678, %v2232
    %v2680 = vpop.permute.xlu0 %2679
    %v2681 = vlaneseq
    %v2682 = vshrl.u32 %v2681, 7
    %v2683 = vadd.s32 %v2682, 56
    %2684 = vset.pattern.permute.xlu0 %v2683
    %2685 = vperm.xlu0 %2684, %v2232
    %v2686 = vpop.permute.xlu0 %2685
    %v2687 = vlaneseq
    %v2688 = vshrl.u32 %v2687, 7
    %v2689 = vadd.s32 %v2688, 32
    %2690 = vset.pattern.permute.xlu0 %v2689
    %2691 = vperm.xlu0 %2690, %v2257
    %v2692 = vpop.permute.xlu0 %2691
    %v2693 = vlaneseq
    %v2694 = vshrl.u32 %v2693, 7
    %v2695 = vadd.s32 %v2694, 40
    %2696 = vset.pattern.permute.xlu0 %v2695
    %2697 = vperm.xlu0 %2696, %v2257
    %v2698 = vpop.permute.xlu0 %2697
    %v2699 = vlaneseq
    %v2700 = vshrl.u32 %v2699, 7
    %v2701 = vadd.s32 %v2700, 48
    %2702 = vset.pattern.permute.xlu0 %v2701
    %2703 = vperm.xlu0 %2702, %v2257
    %v2704 = vpop.permute.xlu0 %2703
    %v2705 = vlaneseq
    %v2706 = vshrl.u32 %v2705, 7
    %v2707 = vadd.s32 %v2706, 56
    %2708 = vset.pattern.permute.xlu0 %v2707
    %2709 = vperm.xlu0 %2708, %v2257
    %v2710 = vpop.permute.xlu0 %2709
    %v2711 = vlaneseq
    %v2712 = vshrl.u32 %v2711, 7
    %v2713 = vadd.s32 %v2712, 32
    %2714 = vset.pattern.permute.xlu0 %v2713
    %2715 = vperm.xlu0 %2714, %v2282
    %v2716 = vpop.permute.xlu0 %2715
    %v2717 = vlaneseq
    %v2718 = vshrl.u32 %v2717, 7
    %v2719 = vadd.s32 %v2718, 40
    %2720 = vset.pattern.permute.xlu0 %v2719
    %2721 = vperm.xlu0 %2720, %v2282
    %v2722 = vpop.permute.xlu0 %2721
    %v2723 = vlaneseq
    %v2724 = vshrl.u32 %v2723, 7
    %v2725 = vadd.s32 %v2724, 48
    %2726 = vset.pattern.permute.xlu0 %v2725
    %2727 = vperm.xlu0 %2726, %v2282
    %v2728 = vpop.permute.xlu0 %2727
    %v2729 = vlaneseq
    %v2730 = vshrl.u32 %v2729, 7
    %v2731 = vadd.s32 %v2730, 56
    %2732 = vset.pattern.permute.xlu0 %v2731
    %2733 = vperm.xlu0 %2732, %v2282
    %v2734 = vpop.permute.xlu0 %2733
    %v2735 = vlaneseq
    %v2736 = vshrl.u32 %v2735, 7
    %v2737 = vadd.s32 %v2736, 32
    %2738 = vset.pattern.permute.xlu0 %v2737
    %2739 = vperm.xlu0 %2738, %v2307
    %v2740 = vpop.permute.xlu0 %2739
    %v2741 = vlaneseq
    %v2742 = vshrl.u32 %v2741, 7
    %v2743 = vadd.s32 %v2742, 40
    %2744 = vset.pattern.permute.xlu0 %v2743
    %2745 = vperm.xlu0 %2744, %v2307
    %v2746 = vpop.permute.xlu0 %2745
    %v2747 = vlaneseq
    %v2748 = vshrl.u32 %v2747, 7
    %v2749 = vadd.s32 %v2748, 48
    %2750 = vset.pattern.permute.xlu0 %v2749
    %2751 = vperm.xlu0 %2750, %v2307
    %v2752 = vpop.permute.xlu0 %2751
    %v2753 = vlaneseq
    %v2754 = vshrl.u32 %v2753, 7
    %v2755 = vadd.s32 %v2754, 56
    %2756 = vset.pattern.permute.xlu0 %v2755
    %2757 = vperm.xlu0 %2756, %v2307
    %v2758 = vpop.permute.xlu0 %2757
    %v2759 = vlaneseq
    %v2760 = vshrl.u32 %v2759, 7
    %v2761 = vadd.s32 %v2760, 32
    %2762 = vset.pattern.permute.xlu0 %v2761
    %2763 = vperm.xlu0 %2762, %v2332
    %v2764 = vpop.permute.xlu0 %2763
    %v2765 = vlaneseq
    %v2766 = vshrl.u32 %v2765, 7
    %v2767 = vadd.s32 %v2766, 40
    %2768 = vset.pattern.permute.xlu0 %v2767
    %2769 = vperm.xlu0 %2768, %v2332
    %v2770 = vpop.permute.xlu0 %2769
    %v2771 = vlaneseq
    %v2772 = vshrl.u32 %v2771, 7
    %v2773 = vadd.s32 %v2772, 48
    %2774 = vset.pattern.permute.xlu0 %v2773
    %2775 = vperm.xlu0 %2774, %v2332
    %v2776 = vpop.permute.xlu0 %2775
    %v2777 = vlaneseq
    %v2778 = vshrl.u32 %v2777, 7
    %v2779 = vadd.s32 %v2778, 56
    %2780 = vset.pattern.permute.xlu0 %v2779
    %2781 = vperm.xlu0 %2780, %v2332
    %v2782 = vpop.permute.xlu0 %2781
    %v2783 = vlaneseq
    %v2784 = vshrl.u32 %v2783, 7
    %v2785 = vadd.s32 %v2784, 32
    %2786 = vset.pattern.permute.xlu0 %v2785
    %2787 = vperm.xlu0 %2786, %v2357
    %v2788 = vpop.permute.xlu0 %2787
    %v2789 = vlaneseq
    %v2790 = vshrl.u32 %v2789, 7
    %v2791 = vadd.s32 %v2790, 40
    %2792 = vset.pattern.permute.xlu0 %v2791
    %2793 = vperm.xlu0 %2792, %v2357
    %v2794 = vpop.permute.xlu0 %2793
    %v2795 = vlaneseq
    %v2796 = vshrl.u32 %v2795, 7
    %v2797 = vadd.s32 %v2796, 48
    %2798 = vset.pattern.permute.xlu0 %v2797
    %2799 = vperm.xlu0 %2798, %v2357
    %v2800 = vpop.permute.xlu0 %2799
    %v2801 = vlaneseq
    %v2802 = vshrl.u32 %v2801, 7
    %v2803 = vadd.s32 %v2802, 56
    %2804 = vset.pattern.permute.xlu0 %v2803
    %2805 = vperm.xlu0 %2804, %v2357
    %v2806 = vpop.permute.xlu0 %2805
    %v2807 = vlaneseq
    %v2808 = vshrl.u32 %v2807, 7
    %v2809 = vadd.s32 %v2808, 32
    %2810 = vset.pattern.permute.xlu0 %v2809
    %2811 = vperm.xlu0 %2810, %v2382
    %v2812 = vpop.permute.xlu0 %2811
    %v2813 = vlaneseq
    %v2814 = vshrl.u32 %v2813, 7
    %v2815 = vadd.s32 %v2814, 40
    %2816 = vset.pattern.permute.xlu0 %v2815
    %2817 = vperm.xlu0 %2816, %v2382
    %v2818 = vpop.permute.xlu0 %2817
    %v2819 = vlaneseq
    %v2820 = vshrl.u32 %v2819, 7
    %v2821 = vadd.s32 %v2820, 48
    %2822 = vset.pattern.permute.xlu0 %v2821
    %2823 = vperm.xlu0 %2822, %v2382
    %v2824 = vpop.permute.xlu0 %2823
    %v2825 = vlaneseq
    %v2826 = vshrl.u32 %v2825, 7
    %v2827 = vadd.s32 %v2826, 56
    %2828 = vset.pattern.permute.xlu0 %v2827
    %2829 = vperm.xlu0 %2828, %v2382
    %v2830 = vpop.permute.xlu0 %2829
    %v2831 = vlaneseq
    %v2832 = vshrl.u32 %v2831, 7
    %v2833 = vadd.s32 %v2832, 32
    %2834 = vset.pattern.permute.xlu0 %v2833
    %2835 = vperm.xlu0 %2834, %v2407
    %v2836 = vpop.permute.xlu0 %2835
    %v2837 = vlaneseq
    %v2838 = vshrl.u32 %v2837, 7
    %v2839 = vadd.s32 %v2838, 40
    %2840 = vset.pattern.permute.xlu0 %v2839
    %2841 = vperm.xlu0 %2840, %v2407
    %v2842 = vpop.permute.xlu0 %2841
    %v2843 = vlaneseq
    %v2844 = vshrl.u32 %v2843, 7
    %v2845 = vadd.s32 %v2844, 48
    %2846 = vset.pattern.permute.xlu0 %v2845
    %2847 = vperm.xlu0 %2846, %v2407
    %v2848 = vpop.permute.xlu0 %2847
    %v2849 = vlaneseq
    %v2850 = vshrl.u32 %v2849, 7
    %v2851 = vadd.s32 %v2850, 56
    %2852 = vset.pattern.permute.xlu0 %v2851
    %2853 = vperm.xlu0 %2852, %v2407
    %v2854 = vpop.permute.xlu0 %2853
    %v2855 = vlaneseq
    %v2856 = vshrl.u32 %v2855, 7
    %v2857 = vadd.s32 %v2856, 32
    %2858 = vset.pattern.permute.xlu0 %v2857
    %2859 = vperm.xlu0 %2858, %v2432
    %v2860 = vpop.permute.xlu0 %2859
    %v2861 = vlaneseq
    %v2862 = vshrl.u32 %v2861, 7
    %v2863 = vadd.s32 %v2862, 40
    %2864 = vset.pattern.permute.xlu0 %v2863
    %2865 = vperm.xlu0 %2864, %v2432
    %v2866 = vpop.permute.xlu0 %2865
    %v2867 = vlaneseq
    %v2868 = vshrl.u32 %v2867, 7
    %v2869 = vadd.s32 %v2868, 48
    %2870 = vset.pattern.permute.xlu0 %v2869
    %2871 = vperm.xlu0 %2870, %v2432
    %v2872 = vpop.permute.xlu0 %2871
    %v2873 = vlaneseq
    %v2874 = vshrl.u32 %v2873, 7
    %v2875 = vadd.s32 %v2874, 56
    %2876 = vset.pattern.permute.xlu0 %v2875
    %2877 = vperm.xlu0 %2876, %v2432
    %v2878 = vpop.permute.xlu0 %2877
    %v2879 = vlaneseq
    %v2880 = vshrl.u32 %v2879, 7
    %v2881 = vadd.s32 %v2880, 32
    %2882 = vset.pattern.permute.xlu0 %v2881
    %2883 = vperm.xlu0 %2882, %v2457
    %v2884 = vpop.permute.xlu0 %2883
    %v2885 = vlaneseq
    %v2886 = vshrl.u32 %v2885, 7
    %v2887 = vadd.s32 %v2886, 40
    %2888 = vset.pattern.permute.xlu0 %v2887
    %2889 = vperm.xlu0 %2888, %v2457
    %v2890 = vpop.permute.xlu0 %2889
    %v2891 = vlaneseq
    %v2892 = vshrl.u32 %v2891, 7
    %v2893 = vadd.s32 %v2892, 48
    %2894 = vset.pattern.permute.xlu0 %v2893
    %2895 = vperm.xlu0 %2894, %v2457
    %v2896 = vpop.permute.xlu0 %2895
    %v2897 = vlaneseq
    %v2898 = vshrl.u32 %v2897, 7
    %v2899 = vadd.s32 %v2898, 56
    %2900 = vset.pattern.permute.xlu0 %v2899
    %2901 = vperm.xlu0 %2900, %v2457
    %v2902 = vpop.permute.xlu0 %2901
    %v2903 = vlaneseq
    %v2904 = vshrl.u32 %v2903, 7
    %v2905 = vadd.s32 %v2904, 32
    %2906 = vset.pattern.permute.xlu0 %v2905
    %2907 = vperm.xlu0 %2906, %v2482
    %v2908 = vpop.permute.xlu0 %2907
    %v2909 = vlaneseq
    %v2910 = vshrl.u32 %v2909, 7
    %v2911 = vadd.s32 %v2910, 40
    %2912 = vset.pattern.permute.xlu0 %v2911
    %2913 = vperm.xlu0 %2912, %v2482
    %v2914 = vpop.permute.xlu0 %2913
    %v2915 = vlaneseq
    %v2916 = vshrl.u32 %v2915, 7
    %v2917 = vadd.s32 %v2916, 48
    %2918 = vset.pattern.permute.xlu0 %v2917
    %2919 = vperm.xlu0 %2918, %v2482
    %v2920 = vpop.permute.xlu0 %2919
    %v2921 = vlaneseq
    %v2922 = vshrl.u32 %v2921, 7
    %v2923 = vadd.s32 %v2922, 56
    %2924 = vset.pattern.permute.xlu0 %v2923
    %2925 = vperm.xlu0 %2924, %v2482
    %v2926 = vpop.permute.xlu0 %2925
    %v2927 = vlaneseq
    %v2928 = vshrl.u32 %v2927, 7
    %v2929 = vadd.s32 %v2928, 32
    %2930 = vset.pattern.permute.xlu0 %v2929
    %2931 = vperm.xlu0 %2930, %v2507
    %v2932 = vpop.permute.xlu0 %2931
    %v2933 = vlaneseq
    %v2934 = vshrl.u32 %v2933, 7
    %v2935 = vadd.s32 %v2934, 40
    %2936 = vset.pattern.permute.xlu0 %v2935
    %2937 = vperm.xlu0 %2936, %v2507
    %v2938 = vpop.permute.xlu0 %2937
    %v2939 = vlaneseq
    %v2940 = vshrl.u32 %v2939, 7
    %v2941 = vadd.s32 %v2940, 48
    %2942 = vset.pattern.permute.xlu0 %v2941
    %2943 = vperm.xlu0 %2942, %v2507
    %v2944 = vpop.permute.xlu0 %2943
    %v2945 = vlaneseq
    %v2946 = vshrl.u32 %v2945, 7
    %v2947 = vadd.s32 %v2946, 56
    %2948 = vset.pattern.permute.xlu0 %v2947
    %2949 = vperm.xlu0 %2948, %v2507
    %v2950 = vpop.permute.xlu0 %2949
    %v2951 = vlaneseq
    %v2952 = vshrl.u32 %v2951, 7
    %v2953 = vadd.s32 %v2952, 32
    %2954 = vset.pattern.permute.xlu0 %v2953
    %2955 = vperm.xlu0 %2954, %v2532
    %v2956 = vpop.permute.xlu0 %2955
    %v2957 = vlaneseq
    %v2958 = vshrl.u32 %v2957, 7
    %v2959 = vadd.s32 %v2958, 40
    %2960 = vset.pattern.permute.xlu0 %v2959
    %2961 = vperm.xlu0 %2960, %v2532
    %v2962 = vpop.permute.xlu0 %2961
    %v2963 = vlaneseq
    %v2964 = vshrl.u32 %v2963, 7
    %v2965 = vadd.s32 %v2964, 48
    %2966 = vset.pattern.permute.xlu0 %v2965
    %2967 = vperm.xlu0 %2966, %v2532
    %v2968 = vpop.permute.xlu0 %2967
    %v2969 = vlaneseq
    %v2970 = vshrl.u32 %v2969, 7
    %v2971 = vadd.s32 %v2970, 56
    %2972 = vset.pattern.permute.xlu0 %v2971
    %2973 = vperm.xlu0 %2972, %v2532
    %v2974 = vpop.permute.xlu0 %2973
    %v2975 = vlaneseq
    %v2976 = vshrl.u32 %v2975, 7
    %v2977 = vadd.s32 %v2976, 32
    %2978 = vset.pattern.permute.xlu0 %v2977
    %2979 = vperm.xlu0 %2978, %v2557
    %v2980 = vpop.permute.xlu0 %2979
    %v2981 = vlaneseq
    %v2982 = vshrl.u32 %v2981, 7
    %v2983 = vadd.s32 %v2982, 40
    %2984 = vset.pattern.permute.xlu0 %v2983
    %2985 = vperm.xlu0 %2984, %v2557
    %v2986 = vpop.permute.xlu0 %2985
    %v2987 = vlaneseq
    %v2988 = vshrl.u32 %v2987, 7
    %v2989 = vadd.s32 %v2988, 48
    %2990 = vset.pattern.permute.xlu0 %v2989
    %2991 = vperm.xlu0 %2990, %v2557
    %v2992 = vpop.permute.xlu0 %2991
    %v2993 = vlaneseq
    %v2994 = vshrl.u32 %v2993, 7
    %v2995 = vadd.s32 %v2994, 56
    %2996 = vset.pattern.permute.xlu0 %v2995
    %2997 = vperm.xlu0 %2996, %v2557
    %v2998 = vpop.permute.xlu0 %2997
    %v2999 = vlaneseq
    %v3000 = vshrl.u32 %v2999, 7
    %v3001 = vadd.s32 %v3000, 32
    %3002 = vset.pattern.permute.xlu0 %v3001
    %3003 = vperm.xlu0 %3002, %v2582
    %v3004 = vpop.permute.xlu0 %3003
    %v3005 = vlaneseq
    %v3006 = vshrl.u32 %v3005, 7
    %v3007 = vadd.s32 %v3006, 40
    %3008 = vset.pattern.permute.xlu0 %v3007
    %3009 = vperm.xlu0 %3008, %v2582
    %v3010 = vpop.permute.xlu0 %3009
    %v3011 = vlaneseq
    %v3012 = vshrl.u32 %v3011, 7
    %v3013 = vadd.s32 %v3012, 48
    %3014 = vset.pattern.permute.xlu0 %v3013
    %3015 = vperm.xlu0 %3014, %v2582
    %v3016 = vpop.permute.xlu0 %3015
    %v3017 = vlaneseq
    %v3018 = vshrl.u32 %v3017, 7
    %v3019 = vadd.s32 %v3018, 56
    %3020 = vset.pattern.permute.xlu0 %v3019
    %3021 = vperm.xlu0 %3020, %v2582
    %v3022 = vpop.permute.xlu0 %3021
    %v3023 = vsel %vm541, %v2644, %v2836
    %v3024 = vsel %vm541, %v2650, %v2842
    %v3025 = vsel %vm541, %v2656, %v2848
    %v3026 = vsel %vm541, %v2662, %v2854
    %v3027 = vsel %vm541, %v2668, %v2860
    %v3028 = vsel %vm541, %v2674, %v2866
    %v3029 = vsel %vm541, %v2680, %v2872
    %v3030 = vsel %vm541, %v2686, %v2878
    %v3031 = vsel %vm541, %v2692, %v2884
    %v3032 = vsel %vm541, %v2698, %v2890
    %v3033 = vsel %vm541, %v2704, %v2896
    %v3034 = vsel %vm541, %v2710, %v2902
    %v3035 = vsel %vm541, %v2716, %v2908
    %v3036 = vsel %vm541, %v2722, %v2914
    %v3037 = vsel %vm541, %v2728, %v2920
    %v3038 = vsel %vm541, %v2734, %v2926
    %v3039 = vsel %vm541, %v2740, %v2932
    %v3040 = vsel %vm541, %v2746, %v2938
    %v3041 = vsel %vm541, %v2752, %v2944
    %v3042 = vsel %vm541, %v2758, %v2950
    %v3043 = vsel %vm541, %v2764, %v2956
    %v3044 = vsel %vm541, %v2770, %v2962
    %v3045 = vsel %vm541, %v2776, %v2968
    %v3046 = vsel %vm541, %v2782, %v2974
    %v3047 = vsel %vm541, %v2788, %v2980
    %v3048 = vsel %vm541, %v2794, %v2986
    %v3049 = vsel %vm541, %v2800, %v2992
    %v3050 = vsel %vm541, %v2806, %v2998
    %v3051 = vsel %vm541, %v2812, %v3004
    %v3052 = vsel %vm541, %v2818, %v3010
    %v3053 = vsel %vm541, %v2824, %v3016
    %v3054 = vsel %vm541, %v2830, %v3022
    %3056 = vrot.lane.b32.xlu0 %v1732, 32
    %v3057 = vpop.permute.xlu0 %3056
    %3060 = vrot.lane.b32.xlu0 %v1735, 64
    %v3061 = vpop.permute.xlu0 %3060
    %v3063 = vsel %vm541, %v3057, %v3061
    %v3065 = vrot.slane %v3063, 1
    %v3066 = vrot.slane %v3063, 2
    %v3067 = vrot.slane %v3063, 3
    %v3068 = vrot.slane %v3063, 4
    %v3069 = vrot.slane %v3063, 5
    %v3070 = vrot.slane %v3063, 6
    %v3071 = vrot.slane %v3063, 7
    %v3072 = vperm.slane %v3063, 0
    %v3073 = vperm.slane %v3065, 0
    %v3074 = vperm.slane %v3066, 0
    %v3075 = vperm.slane %v3067, 0
    %v3076 = vperm.slane %v3068, 0
    %v3077 = vperm.slane %v3069, 0
    %v3078 = vperm.slane %v3070, 0
    %v3079 = vperm.slane %v3071, 0
    %v3088 = vmul.f32 %v3023, %v3072
    %v3089 = vmul.f32 %v3024, %v3072
    %v3090 = vmul.f32 %v3025, %v3072
    %v3091 = vmul.f32 %v3026, %v3072
    %v3092 = vmul.f32 %v3027, %v3073
    %v3093 = vmul.f32 %v3028, %v3073
    %v3094 = vmul.f32 %v3029, %v3073
    %v3095 = vmul.f32 %v3030, %v3073
    %v3096 = vmul.f32 %v3031, %v3074
    %v3097 = vmul.f32 %v3032, %v3074
    %v3098 = vmul.f32 %v3033, %v3074
    %v3099 = vmul.f32 %v3034, %v3074
    %v3100 = vmul.f32 %v3035, %v3075
    %v3101 = vmul.f32 %v3036, %v3075
    %v3102 = vmul.f32 %v3037, %v3075
    %v3103 = vmul.f32 %v3038, %v3075
    %v3104 = vmul.f32 %v3039, %v3076
    %v3105 = vmul.f32 %v3040, %v3076
    %v3106 = vmul.f32 %v3041, %v3076
    %v3107 = vmul.f32 %v3042, %v3076
    %v3108 = vmul.f32 %v3043, %v3077
    %v3109 = vmul.f32 %v3044, %v3077
    %v3110 = vmul.f32 %v3045, %v3077
    %v3111 = vmul.f32 %v3046, %v3077
    %v3112 = vmul.f32 %v3047, %v3078
    %v3113 = vmul.f32 %v3048, %v3078
    %v3114 = vmul.f32 %v3049, %v3078
    %v3115 = vmul.f32 %v3050, %v3078
    %v3116 = vmul.f32 %v3051, %v3079
    %v3117 = vmul.f32 %v3052, %v3079
    %v3118 = vmul.f32 %v3053, %v3079
    %v3119 = vmul.f32 %v3054, %v3079
    %v3120 = vmul.f32 %v2607, 0.0
    %v3121 = vmul.f32 %v2608, 0.0
    %v3122 = vmul.f32 %v2609, 0.0
    %v3123 = vmul.f32 %v2610, 0.0
    %v3124 = vadd.f32 %v3120, %v3088
    %v3125 = vadd.f32 %v3121, %v3089
    %v3126 = vadd.f32 %v3122, %v3090
    %v3127 = vadd.f32 %v3123, %v3091
    %v3128 = vmul.f32 %v2175, %v3124
    %v3129 = vmul.f32 %v2176, %v3125
    %v3130 = vmul.f32 %v2177, %v3126
    %v3131 = vmul.f32 %v2178, %v3127
    %v3132 = vsel %vm73, %v3128, 0.0
    %v3133 = vsel %vm73, %v3129, 0.0
    %v3134 = vadd.f32 %v3132, %v3133
    %v3135 = vsel %vm73, %v3130, 0.0
    %v3136 = vadd.f32 %v3134, %v3135
    %v3137 = vsel %vm73, %v3131, 0.0
    %v3138 = vadd.f32 %v3136, %v3137
    %v3139 = vrot.slane %v3138, 4
    %v3140 = vadd.f32 %v3138, %v3139
    %v3141 = vrot.slane %v3140, 2
    %v3142 = vadd.f32 %v3140, %v3141
    %v3143 = vrot.slane %v3142, 1
    %v3144 = vadd.f32 %v3142, %v3143
    %v3145 = vmul.f32 %v3124, %v2611
    %v3146 = vmul.f32 %v3125, %v2612
    %v3147 = vmul.f32 %v3126, %v2613
    %v3148 = vmul.f32 %v3127, %v2614
    %v3149 = vadd.f32 %v3145, %v3092
    %v3150 = vadd.f32 %v3146, %v3093
    %v3151 = vadd.f32 %v3147, %v3094
    %v3152 = vadd.f32 %v3148, %v3095
    %v3153 = vmul.f32 %v2179, %v3149
    %v3154 = vmul.f32 %v2180, %v3150
    %v3155 = vmul.f32 %v2181, %v3151
    %v3156 = vmul.f32 %v2182, %v3152
    %v3157 = vsel %vm73, %v3153, 0.0
    %v3158 = vsel %vm73, %v3154, 0.0
    %v3159 = vadd.f32 %v3157, %v3158
    %v3160 = vsel %vm73, %v3155, 0.0
    %v3161 = vadd.f32 %v3159, %v3160
    %v3162 = vsel %vm73, %v3156, 0.0
    %v3163 = vadd.f32 %v3161, %v3162
    %v3164 = vrot.slane %v3163, 4
    %v3165 = vadd.f32 %v3163, %v3164
    %v3166 = vrot.slane %v3165, 2
    %v3167 = vadd.f32 %v3165, %v3166
    %v3168 = vrot.slane %v3167, 1
    %v3169 = vadd.f32 %v3167, %v3168
    %v3170 = vmul.f32 %v3149, %v2615
    %v3171 = vmul.f32 %v3150, %v2616
    %v3172 = vmul.f32 %v3151, %v2617
    %v3173 = vmul.f32 %v3152, %v2618
    %v3174 = vadd.f32 %v3170, %v3096
    %v3175 = vadd.f32 %v3171, %v3097
    %v3176 = vadd.f32 %v3172, %v3098
    %v3177 = vadd.f32 %v3173, %v3099
    %v3178 = vmul.f32 %v2183, %v3174
    %v3179 = vmul.f32 %v2184, %v3175
    %v3180 = vmul.f32 %v2185, %v3176
    %v3181 = vmul.f32 %v2186, %v3177
    %v3182 = vsel %vm73, %v3178, 0.0
    %v3183 = vsel %vm73, %v3179, 0.0
    %v3184 = vadd.f32 %v3182, %v3183
    %v3185 = vsel %vm73, %v3180, 0.0
    %v3186 = vadd.f32 %v3184, %v3185
    %v3187 = vsel %vm73, %v3181, 0.0
    %v3188 = vadd.f32 %v3186, %v3187
    %v3189 = vrot.slane %v3188, 4
    %v3190 = vadd.f32 %v3188, %v3189
    %v3191 = vrot.slane %v3190, 2
    %v3192 = vadd.f32 %v3190, %v3191
    %v3193 = vrot.slane %v3192, 1
    %v3194 = vadd.f32 %v3192, %v3193
    %v3195 = vmul.f32 %v3174, %v2619
    %v3196 = vmul.f32 %v3175, %v2620
    %v3197 = vmul.f32 %v3176, %v2621
    %v3198 = vmul.f32 %v3177, %v2622
    %v3199 = vadd.f32 %v3195, %v3100
    %v3200 = vadd.f32 %v3196, %v3101
    %v3201 = vadd.f32 %v3197, %v3102
    %v3202 = vadd.f32 %v3198, %v3103
    %v3203 = vmul.f32 %v2187, %v3199
    %v3204 = vmul.f32 %v2188, %v3200
    %v3205 = vmul.f32 %v2189, %v3201
    %v3206 = vmul.f32 %v2190, %v3202
    %v3207 = vsel %vm73, %v3203, 0.0
    %v3208 = vsel %vm73, %v3204, 0.0
    %v3209 = vadd.f32 %v3207, %v3208
    %v3210 = vsel %vm73, %v3205, 0.0
    %v3211 = vadd.f32 %v3209, %v3210
    %v3212 = vsel %vm73, %v3206, 0.0
    %v3213 = vadd.f32 %v3211, %v3212
    %v3214 = vrot.slane %v3213, 4
    %v3215 = vadd.f32 %v3213, %v3214
    %v3216 = vrot.slane %v3215, 2
    %v3217 = vadd.f32 %v3215, %v3216
    %v3218 = vrot.slane %v3217, 1
    %v3219 = vadd.f32 %v3217, %v3218
    %v3220 = vmul.f32 %v3199, %v2623
    %v3221 = vmul.f32 %v3200, %v2624
    %v3222 = vmul.f32 %v3201, %v2625
    %v3223 = vmul.f32 %v3202, %v2626
    %v3224 = vadd.f32 %v3220, %v3104
    %v3225 = vadd.f32 %v3221, %v3105
    %v3226 = vadd.f32 %v3222, %v3106
    %v3227 = vadd.f32 %v3223, %v3107
    %v3228 = vmul.f32 %v2191, %v3224
    %v3229 = vmul.f32 %v2192, %v3225
    %v3230 = vmul.f32 %v2193, %v3226
    %v3231 = vmul.f32 %v2194, %v3227
    %v3232 = vsel %vm73, %v3228, 0.0
    %v3233 = vsel %vm73, %v3229, 0.0
    %v3234 = vadd.f32 %v3232, %v3233
    %v3235 = vsel %vm73, %v3230, 0.0
    %v3236 = vadd.f32 %v3234, %v3235
    %v3237 = vsel %vm73, %v3231, 0.0
    %v3238 = vadd.f32 %v3236, %v3237
    %v3239 = vrot.slane %v3238, 4
    %v3240 = vadd.f32 %v3238, %v3239
    %v3241 = vrot.slane %v3240, 2
    %v3242 = vadd.f32 %v3240, %v3241
    %v3243 = vrot.slane %v3242, 1
    %v3244 = vadd.f32 %v3242, %v3243
    %v3245 = vmul.f32 %v3224, %v2627
    %v3246 = vmul.f32 %v3225, %v2628
    %v3247 = vmul.f32 %v3226, %v2629
    %v3248 = vmul.f32 %v3227, %v2630
    %v3249 = vadd.f32 %v3245, %v3108
    %v3250 = vadd.f32 %v3246, %v3109
    %v3251 = vadd.f32 %v3247, %v3110
    %v3252 = vadd.f32 %v3248, %v3111
    %v3253 = vmul.f32 %v2195, %v3249
    %v3254 = vmul.f32 %v2196, %v3250
    %v3255 = vmul.f32 %v2197, %v3251
    %v3256 = vmul.f32 %v2198, %v3252
    %v3257 = vsel %vm73, %v3253, 0.0
    %v3258 = vsel %vm73, %v3254, 0.0
    %v3259 = vadd.f32 %v3257, %v3258
    %v3260 = vsel %vm73, %v3255, 0.0
    %v3261 = vadd.f32 %v3259, %v3260
    %v3262 = vsel %vm73, %v3256, 0.0
    %v3263 = vadd.f32 %v3261, %v3262
    %v3264 = vrot.slane %v3263, 4
    %v3265 = vadd.f32 %v3263, %v3264
    %v3266 = vrot.slane %v3265, 2
    %v3267 = vadd.f32 %v3265, %v3266
    %v3268 = vrot.slane %v3267, 1
    %v3269 = vadd.f32 %v3267, %v3268
    %v3270 = vmul.f32 %v3249, %v2631
    %v3271 = vmul.f32 %v3250, %v2632
    %v3272 = vmul.f32 %v3251, %v2633
    %v3273 = vmul.f32 %v3252, %v2634
    %v3274 = vadd.f32 %v3270, %v3112
    %v3275 = vadd.f32 %v3271, %v3113
    %v3276 = vadd.f32 %v3272, %v3114
    %v3277 = vadd.f32 %v3273, %v3115
    %v3278 = vmul.f32 %v2199, %v3274
    %v3279 = vmul.f32 %v2200, %v3275
    %v3280 = vmul.f32 %v2201, %v3276
    %v3281 = vmul.f32 %v2202, %v3277
    %v3282 = vsel %vm73, %v3278, 0.0
    %v3283 = vsel %vm73, %v3279, 0.0
    %v3284 = vadd.f32 %v3282, %v3283
    %v3285 = vsel %vm73, %v3280, 0.0
    %v3286 = vadd.f32 %v3284, %v3285
    %v3287 = vsel %vm73, %v3281, 0.0
    %v3288 = vadd.f32 %v3286, %v3287
    %v3289 = vrot.slane %v3288, 4
    %v3290 = vadd.f32 %v3288, %v3289
    %v3291 = vrot.slane %v3290, 2
    %v3292 = vadd.f32 %v3290, %v3291
    %v3293 = vrot.slane %v3292, 1
    %v3294 = vadd.f32 %v3292, %v3293
    %v3295 = vmul.f32 %v3274, %v2635
    %v3296 = vmul.f32 %v3275, %v2636
    %v3297 = vmul.f32 %v3276, %v2637
    %v3298 = vmul.f32 %v3277, %v2638
    %v3299 = vadd.f32 %v3295, %v3116
    %v3300 = vadd.f32 %v3296, %v3117
    %v3301 = vadd.f32 %v3297, %v3118
    %v3302 = vadd.f32 %v3298, %v3119
    %v3303 = vmul.f32 %v2203, %v3299
    %v3304 = vmul.f32 %v2204, %v3300
    %v3305 = vmul.f32 %v2205, %v3301
    %v3306 = vmul.f32 %v2206, %v3302
    %v3307 = vsel %vm73, %v3303, 0.0
    %v3308 = vsel %vm73, %v3304, 0.0
    %v3309 = vadd.f32 %v3307, %v3308
    %v3310 = vsel %vm73, %v3305, 0.0
    %v3311 = vadd.f32 %v3309, %v3310
    %v3312 = vsel %vm73, %v3306, 0.0
    %v3313 = vadd.f32 %v3311, %v3312
    %v3314 = vrot.slane %v3313, 4
    %v3315 = vadd.f32 %v3313, %v3314
    %v3316 = vrot.slane %v3315, 2
    %v3317 = vadd.f32 %v3315, %v3316
    %v3318 = vrot.slane %v3317, 1
    %v3319 = vadd.f32 %v3317, %v3318
    %v3320 = vsel %vm1687, %v3144, %v3169
    %v3321 = vsel %vm1689, %v3320, %v3194
    %v3322 = vsel %vm1691, %v3321, %v3219
    %v3323 = vsel %vm1693, %v3322, %v3244
    %v3324 = vsel %vm1695, %v3323, %v3269
    %v3325 = vsel %vm1697, %v3324, %v3294
    %v3326 = vsel %vm1699, %v3325, %v3319
    %3328 = vrot.lane.b32.xlu0 %v3326, 96
    %v3329 = vpop.permute.xlu0 %3328
    %v3330 = vld [vmem:[#allocation5 + $0x68] sm:$0xff]
    %v3331 = vld [vmem:[#allocation5 + $0x70] sm:$0xff]
    %v3332 = vld [vmem:[#allocation5 + $0x78] sm:$0xff]
    %v3333 = vld [vmem:[#allocation5 + $0x80] sm:$0xff]
    %v3334 = vld [vmem:[#allocation5 + $0x88] sm:$0x1]
    %v3335 = vperm.slane %v3334, 0
    %v3336 = vsel %vm541, %v3326, 0
    %v3338 = vsel %vm541, %v3329, 0
    %3340 = vmatpush.msra.mxu0 0.0
    %3341 = vmatpush.msra.mxu0 0.0
    %3342 = vmatpush.msra.mxu0 0.0
    %3343 = vmatpush.msra.mxu0 0.0
    %3344 = vmatpush.msra.mxu0 0.0
    %3345 = vmatpush.msra.mxu0 0.0
    %3346 = vmatpush.msra.mxu0 0.0
    %3347 = vmatpush.msra.mxu0 0.0
    %3348 = vmatpush.msra.mxu0 0.0
    %3349 = vmatpush.msra.mxu0 0.0
    %3350 = vmatpush.msra.mxu0 0.0
    %3351 = vmatpush.msra.mxu0 0.0
    %3352 = vmatpush.msra.mxu0 %v3333
    %3353 = vmatpush.msra.mxu0 %v3332
    %3354 = vmatpush.msra.mxu0 %v3331
    %3355 = vmatpush.msra.mxu0 %v3330
    %3356 = vmatmul.f32.gmra.mxu0 %v3336
    %v3357 = vpop.f32.mrf.mxu0
    %v3358 = vadd.f32 %v3335, %v3357
    %3359 = vmatmul.f32.gmra.mxu0 %v3338
    %v3360 = vpop.f32.mrf.mxu0
    %v3361 = vadd.f32 %v3335, %v3360
    %3362 = vdwg.mxu0
    %3363 = vst [vmem:[#allocation7] sm:$0xff] %v3358
    %3364 = vst [vmem:[#allocation7 + $0x8] sm:$0xff] %v3361
    // Predicated region
    $region18: #{lm_forward.1} parent=1 // pred_check
      _
    $region19: #{lm_forward.1} parent=1 // pred_check_branch
      %3366 = sbr.rel (0) target = $region21
    $region20: #{lm_forward.1} parent=1 // pred_region
      %3368 = vsyncadd [#allocation4], 0
      %s3369 = sshll.u32 [#allocation7], 4
      %s3370 = int_to_ptr.vmem [resolvable:$true] %s3369
      %s3371 = sshll.u32 %s2, 4
      %s3372 = int_to_ptr.hbm [resolvable:$true] %s3371
      %3377 = dma.vmem_to_hbm [thread:$0]  %s3370, 256, %s3372, [#allocation4], 128, 128, 8
    $region21: #{lm_forward.1} parent=1 // pred_fallthru
      _
    // Predicated region
    $region22: #{lm_forward.1} parent=1 // pred_check
      _
    $region23: #{lm_forward.1} parent=1 // pred_check_branch
      %3379 = sbr.rel (0) target = $region25
    $region24: #{lm_forward.1} parent=1 // pred_region
      %3381 = dma.done [#allocation4], 256
    $region25: #{lm_forward.1} parent=1 // pred_fallthru
      _
    %3382 = vsyncpa [#allocation3], 1
    %3383 = vsyncpa [#allocation6], 1
    %3384 = vsyncpa [#allocation4], 1

</llo_original>
